<compile_context>
chip_gen: v5e
topology: v5e:2x2
jax: 0.10.0
libtpu: 0.0.40
codegen_flags: <defaults>
</compile_context>

<pallas_src>
import functools

import jax
import jax.numpy as jnp
import numpy as np
from jax.experimental import pallas as pl
from jax.experimental.pallas import tpu as pltpu

C = 64  # temporal-conv channel count (== num_timesteps_input, forced by the module)


def gwnet_forward(x, p, *, num_nodes, t_in, t_out, cols_per_step=4096):
    B, N, T = x.shape
    assert N == num_nodes and T == t_in
    assert t_in == C, "module requires num_timesteps_input == 64 (temporal conv channels)"
    assert B % t_in == 0, "module requires batch % num_timesteps_input == 0 (final reshape)"
    assert t_out <= C
    G = B // t_in                  # number of output groups
    TB = t_in                      # batch rows per group
    total_cols = TB * C            # 4096
    CC = min(cols_per_step, total_cols)
    assert total_cols % CC == 0 and CC % 128 == 0
    NC = total_cols // CC          # column chunks per group (grid axis 1); 1 by default
    NBH = CC // 128                # packed rows per chunk (2 batch rows per packed row)

    # ---- spatial conv (Conv2d(1,64,(1,N))) hoisted to XLA.  Transpose the *input*
    #      (256 KB -> 128 KB bf16) instead of the activation slab so the dot emits the
    #      lane-dense (T, B*64) layout directly; bias add + bf16 cast fuse into the dot.
    wsp = p['spatial_w'].reshape(C, N).astype(jnp.bfloat16)                  # (64, N)
    xt = jnp.transpose(x.astype(jnp.bfloat16), (2, 0, 1))                    # (T, B, N)
    s = jnp.einsum('tbn,cn->tbc', xt, wsp,
                   preferred_element_type=jnp.float32)                       # (T, B, 64) f32
    s2 = (s + p['spatial_b'][None, None, :]).astype(jnp.bfloat16).reshape(T, B * C)
    # columns of s2 are ordered (group g, local batch b', channel c)

    # ---- pack weights.  Temporal convs: only the centre tap of each (3,1) kernel is live.
    w1c = p['t1_w'][:, :, 1, 0].astype(jnp.float32)                          # (64,64)
    w2c = p['t2_w'][:, :, 1, 0].astype(jnp.float32)                          # (64,64)
    w12 = (jnp.zeros((2 * C, 2 * C), jnp.float32)
           .at[0:C, 0:C].set(w1c)
           .at[C:2 * C, 0:C].set(w2c))                                       # (128,128)

    def blockdiag2(a):
        z = jnp.zeros_like(a)
        return jnp.concatenate([jnp.concatenate([a, z], axis=1),
                                jnp.concatenate([z, a], axis=1)], axis=0)

    # fc1 with 1/64 (channel mean) folded in; fc2 transposed & zero-padded to 64 columns.
    wfc1s = p['fc1_w'].T * (1.0 / C)                                         # (64,64) [c,j]
    wfc2t = jnp.zeros((C, C), jnp.float32).at[:, :t_out].set(p['fc2_w'].T)   # (64,64) [j,k]
    wpack = jnp.stack([w12, blockdiag2(wfc1s), blockdiag2(wfc2t)],
                      axis=0).astype(jnp.bfloat16)                           # (3,128,128)

    bcol = jnp.stack([p['t1_b'], p['t2_b']], axis=1).astype(jnp.float32)     # (64, 2)
    bfc1_big = jnp.concatenate([p['fc1_b'], p['fc1_b']]).astype(jnp.float32)         # (128,)
    bfc2_pad = jnp.zeros((2 * C,), jnp.float32).at[:t_out].set(p['fc2_b'])           # (128,)
    brow = jnp.stack([bfc1_big, bfc2_pad], axis=0)                           # (2, 128)

    inv_tb = 1.0 / TB

    def kernel(s_ref, w_ref, bcol_ref, brow_ref, out_ref, acc_ref, xpack_ref):
        j = pl.program_id(1)

        @pl.when(j == 0)
        def _init():
            acc_ref[...] = jnp.zeros_like(acc_ref)

        w1 = w_ref[0, 0:C, 0:C]          # (64,64) bf16  temporal conv 1 (centre tap)
        w2 = w_ref[0, C:2 * C, 0:C]      # (64,64) bf16  temporal conv 2 (centre tap)
        wfc1b = w_ref[1]                 # (128,128) bf16 block-diag fc1 (incl. 1/64)
        wfc2b = w_ref[2]                 # (128,128) bf16 block-diag fc2 (zero-padded)

        s = s_ref[...]                   # (64, CC) bf16, rows = time, cols = (b', c)

        # temporal conv 1 & 2: one lane-dense MXU matmul each, f32 accumulation.
        t1 = jnp.dot(w1, s, preferred_element_type=jnp.float32)
        t1 = jnp.maximum(t1 + bcol_ref[:, 0:1], 0.0).astype(jnp.bfloat16)
        t2 = jnp.dot(w2, t1, preferred_element_type=jnp.float32)
        t2 = jnp.maximum(t2 + bcol_ref[:, 1:2], 0.0)                          # (64, CC) f32

        # torch mean(dim=1): sum over conv-2 output channels (1/64 folded into fc1).
        cm = jnp.sum(t2, axis=0, keepdims=True)                               # (1, CC) f32

        # Repack the wide row into (NBH, 128): row q holds batch rows 2q (lanes 0:64) and
        # 2q+1 (lanes 64:128).  Only full-width, 128-lane-aligned stores (no masks/rotates).
        for i in range(NBH):
            xpack_ref[i:i + 1, :] = cm[0:1, i * 128:(i + 1) * 128]
        xm = xpack_ref[...].astype(jnp.bfloat16)                              # (NBH, 128)

        # fc1 + ReLU, fc2 — 128x128 block-diagonal weights act on the packed layout.
        h = jnp.dot(xm, wfc1b, preferred_element_type=jnp.float32) + brow_ref[0:1, :]
        h = jnp.maximum(h, 0.0).astype(jnp.bfloat16)
        y = jnp.dot(h, wfc2b, preferred_element_type=jnp.float32)             # (NBH, 128)

        # partial sum over this chunk's batch rows (final reshape(-1,64,T_out).mean(1)).
        ycol = jnp.sum(y, axis=0, keepdims=True)                              # (1, 128)
        acc_ref[...] += ycol[:, 0:C] + ycol[:, C:2 * C]                       # (1, 64)

        @pl.when(j == pl.num_programs(1) - 1)
        def _finalize():
            out_ref[0] = (acc_ref[...] * inv_tb
                          + brow_ref[1:2, 0:C]).astype(out_ref.dtype)

    out3 = pl.pallas_call(
        kernel,
        out_shape=jax.ShapeDtypeStruct((G, 1, C), jnp.float32),
        grid=(G, NC),
        in_specs=[
            pl.BlockSpec((T, CC), lambda g, j: (0, g * NC + j)),       # group g, chunk j
            pl.BlockSpec((3, 2 * C, 2 * C), lambda g, j: (0, 0, 0)),   # packed weights
            pl.BlockSpec((C, 2), lambda g, j: (0, 0)),                 # conv biases
            pl.BlockSpec((2, 2 * C), lambda g, j: (0, 0)),             # fc biases
        ],
        out_specs=pl.BlockSpec((1, 1, C), lambda g, j: (g, 0, 0)),
        scratch_shapes=[
            pltpu.VMEM((1, C), jnp.float32),       # per-group accumulator (64 lanes)
            pltpu.VMEM((NBH, 128), jnp.float32),   # packed channel-mean rows
        ],
        compiler_params=pltpu.CompilerParams(
            dimension_semantics=("parallel", "arbitrary")),
    )(s2, wpack, bcol, brow)

    return out3.reshape(G, C)[:, :t_out]


def reference_forward(x, p, t_in, t_out):
    """Pure-JAX mirror of the PyTorch forward (real convs, f32) for validation."""
    z = jnp.transpose(x, (0, 2, 1))[:, None]                       # (B,1,T,N)
    s = jax.lax.conv_general_dilated(z, p['spatial_w'], (1, 1), 'VALID',
                                     dimension_numbers=('NCHW', 'OIHW', 'NCHW'))
    s = s + p['spatial_b'][None, :, None, None]                    # (B,64,T,1)
    s = jnp.transpose(s, (0, 2, 3, 1))                             # (B,T,1,64)

    def tconv(u, w, b):
        v = jax.lax.conv_general_dilated(u, w, (1, 1), ((1, 1), (0, 0)),
                                         dimension_numbers=('NCHW', 'OIHW', 'NCHW'))
        return jax.nn.relu(v + b[None, :, None, None])

    t1 = tconv(s, p['t1_w'], p['t1_b'])
    t2 = tconv(t1, p['t2_w'], p['t2_b'])
    m = jnp.mean(t2, axis=1).reshape(-1, 64)
    h = jax.nn.relu(m @ p['fc1_w'].T + p['fc1_b'])
    y = h @ p['fc2_w'].T + p['fc2_b']
    return jnp.mean(y.reshape(-1, t_in, t_out), axis=1)


if __name__ == "__main__":
    num_nodes = 8
    t_in = 64      # forced by the module: temporal Conv2d reads the time axis as 64 channels
    t_out = 12
    batch = 128    # multiple of t_in (required); 2 groups -> non-trivial parallel grid axis

    keys = jax.random.split(jax.random.PRNGKey(0), 11)
    p = {
        'spatial_w': 0.2 * jax.random.normal(keys[0], (64, 1, 1, num_nodes), jnp.float32),
        'spatial_b': 0.1 * jax.random.normal(keys[1], (64,), jnp.float32),
        't1_w': 0.05 * jax.random.normal(keys[2], (64, 64, 3, 1), jnp.float32),
        't1_b': 0.1 * jax.random.normal(keys[3], (64,), jnp.float32),
        't2_w': 0.05 * jax.random.normal(keys[4], (64, 64, 3, 1), jnp.float32),
        't2_b': 0.1 * jax.random.normal(keys[5], (64,), jnp.float32),
        'fc1_w': 0.1 * jax.random.normal(keys[6], (64, 64), jnp.float32),
        'fc1_b': 0.1 * jax.random.normal(keys[7], (64,), jnp.float32),
        'fc2_w': 0.1 * jax.random.normal(keys[8], (t_out, 64), jnp.float32),
        'fc2_b': 0.1 * jax.random.normal(keys[9], (t_out,), jnp.float32),
    }
    x = jax.random.normal(keys[10], (batch, num_nodes, t_in), jnp.float32)

    fwd = jax.jit(functools.partial(gwnet_forward, num_nodes=num_nodes,
                                    t_in=t_in, t_out=t_out))
    out = jax.block_until_ready(fwd(x, p))
    ref = jax.block_until_ready(reference_forward(x, p, t_in, t_out))

    assert out.shape == (batch // t_in, t_out)
    # bf16 MXU inputs with f32 accumulation: observed error well below 1e-2 vs f32 reference.
    np.testing.assert_allclose(np.asarray(out), np.asarray(ref), rtol=1e-2, atol=1e-2)
    print("KERNEL_OK")
</pallas_src>

<mosaic_0001>
module attributes {stable_mosaic.version = 11 : i64} {
  func.func @kernel(%arg0: i32, %arg1: i32, %arg2: memref<64x4096xbf16, #tpu.memory_space<vmem>>, %arg3: memref<3x128x128xbf16, #tpu.memory_space<vmem>>, %arg4: memref<64x2xf32, #tpu.memory_space<vmem>>, %arg5: memref<2x128xf32, #tpu.memory_space<vmem>>, %arg6: memref<1x1x64xf32, #tpu.memory_space<vmem>>, %arg7: memref<1x64xf32, #tpu.memory_space<vmem>>, %arg8: memref<32x128xf32, #tpu.memory_space<vmem>>) attributes {dimension_semantics = [#tpu.dimension_semantics<parallel>, #tpu.dimension_semantics<arbitrary>], iteration_bounds = array<i64: 2, 1>, scalar_prefetch = 0 : i64, scratch_operands = 2 : i64, tpu.core_type = #tpu.core_type<tc>, window_params = [{transform_indices = @transform_0, window_bounds = array<i64: 64, 4096>}, {pipeline_mode = #tpu.pipeline_mode<synchronous>, transform_indices = @transform_1, window_bounds = array<i64: 3, 128, 128>}, {pipeline_mode = #tpu.pipeline_mode<synchronous>, transform_indices = @transform_2, window_bounds = array<i64: 64, 2>}, {pipeline_mode = #tpu.pipeline_mode<synchronous>, transform_indices = @transform_3, window_bounds = array<i64: 2, 128>}, {transform_indices = @transform_4, window_bounds = array<i64: 1, 1, 64>}]} {
    %c0_i32 = arith.constant 0 : i32
    %0 = arith.cmpi eq, %arg1, %c0_i32 : i32
    %1 = arith.extui %0 : i1 to i32
    %c0_i32_0 = arith.constant 0 : i32
    %2 = arith.cmpi ne, %1, %c0_i32_0 : i32
    scf.if %2 {
      %cst_68 = arith.constant 0.000000e+00 : f32
      %112 = vector.broadcast %cst_68 : f32 to vector<1x64xf32>
      %c0_69 = arith.constant 0 : index
      %c0_70 = arith.constant 0 : index
      %113 = vector.load %arg7[%c0_69, %c0_70] : memref<1x64xf32, #tpu.memory_space<vmem>>, vector<1x64xf32>
      tpu.vector_store %arg7[%c0_69, %c0_70], %112 {strides = array<i32>} : memref<1x64xf32, #tpu.memory_space<vmem>>, vector<1x64xf32>,
    } else {
    }
    %c0 = arith.constant 0 : index
    %c0_1 = arith.constant 0 : index
    %c0_2 = arith.constant 0 : index
    %3 = vector.load %arg3[%c0, %c0_1, %c0_2] : memref<3x128x128xbf16, #tpu.memory_space<vmem>>, vector<1x64x64xbf16>
    %4 = vector.shape_cast %3 : vector<1x64x64xbf16> to vector<64x64xbf16>
    %c0_3 = arith.constant 0 : index
    %c64 = arith.constant 64 : index
    %c0_4 = arith.constant 0 : index
    %5 = vector.load %arg3[%c0_3, %c64, %c0_4] : memref<3x128x128xbf16, #tpu.memory_space<vmem>>, vector<1x64x64xbf16>
    %6 = vector.shape_cast %5 : vector<1x64x64xbf16> to vector<64x64xbf16>
    %c1 = arith.constant 1 : index
    %c0_5 = arith.constant 0 : index
    %c0_6 = arith.constant 0 : index
    %7 = vector.load %arg3[%c1, %c0_5, %c0_6] : memref<3x128x128xbf16, #tpu.memory_space<vmem>>, vector<1x128x128xbf16>
    %8 = vector.shape_cast %7 : vector<1x128x128xbf16> to vector<128x128xbf16>
    %c2 = arith.constant 2 : index
    %c0_7 = arith.constant 0 : index
    %c0_8 = arith.constant 0 : index
    %9 = vector.load %arg3[%c2, %c0_7, %c0_8] : memref<3x128x128xbf16, #tpu.memory_space<vmem>>, vector<1x128x128xbf16>
    %10 = vector.shape_cast %9 : vector<1x128x128xbf16> to vector<128x128xbf16>
    %c0_9 = arith.constant 0 : index
    %c0_10 = arith.constant 0 : index
    %11 = vector.load %arg2[%c0_9, %c0_10] : memref<64x4096xbf16, #tpu.memory_space<vmem>>, vector<64x4096xbf16>
    %cst = arith.constant dense<0.000000e+00> : vector<64x4096xf32>
    %12 = tpu.matmul %4, %11, %cst {dimension_numbers = #tpu.dot_dimension_numbers<[1], [0], [0], [1], [0, 0, 1, 1], [], []>} : vector<64x64xbf16>, vector<64x4096xbf16>, vector<64x4096xf32> -> vector<64x4096xf32>
    %c0_11 = arith.constant 0 : index
    %c0_12 = arith.constant 0 : index
    %13 = vector.load %arg4[%c0_11, %c0_12] : memref<64x2xf32, #tpu.memory_space<vmem>>, vector<64x1xf32>
    %14 = vector.broadcast %13 : vector<64x1xf32> to vector<64x4096xf32>
    %15 = arith.addf %12, %14 : vector<64x4096xf32>
    %cst_13 = arith.constant 0.000000e+00 : f32
    %16 = vector.broadcast %cst_13 : f32 to vector<64x4096xf32>
    %17 = arith.maximumf %15, %16 : vector<64x4096xf32>
    %18 = arith.truncf %17 : vector<64x4096xf32> to vector<64x4096xbf16>
    %cst_14 = arith.constant dense<0.000000e+00> : vector<64x4096xf32>
    %19 = tpu.matmul %6, %18, %cst_14 {dimension_numbers = #tpu.dot_dimension_numbers<[1], [0], [0], [1], [0, 0, 1, 1], [], []>} : vector<64x64xbf16>, vector<64x4096xbf16>, vector<64x4096xf32> -> vector<64x4096xf32>
    %c0_15 = arith.constant 0 : index
    %c1_16 = arith.constant 1 : index
    %20 = vector.load %arg4[%c0_15, %c1_16] : memref<64x2xf32, #tpu.memory_space<vmem>>, vector<64x1xf32>
    %21 = vector.broadcast %20 : vector<64x1xf32> to vector<64x4096xf32>
    %22 = arith.addf %19, %21 : vector<64x4096xf32>
    %cst_17 = arith.constant 0.000000e+00 : f32
    %23 = vector.broadcast %cst_17 : f32 to vector<64x4096xf32>
    %24 = arith.maximumf %22, %23 : vector<64x4096xf32>
    %cst_18 = arith.constant dense<0.000000e+00> : vector<4096xf32>
    %25 = vector.multi_reduction <add>, %24, %cst_18 [0] : vector<64x4096xf32> to vector<4096xf32>
    %26 = vector.shape_cast %25 : vector<4096xf32> to vector<1x4096xf32>
    %27 = vector.extract_strided_slice %26 {offsets = [0, 0], sizes = [1, 128], strides = [1, 1]} : vector<1x4096xf32> to vector<1x128xf32>
    %c0_19 = arith.constant 0 : index
    %c0_20 = arith.constant 0 : index
    %28 = vector.load %arg8[%c0_19, %c0_20] : memref<32x128xf32, #tpu.memory_space<vmem>>, vector<1x128xf32>
    tpu.vector_store %arg8[%c0_19, %c0_20], %27 {strides = array<i32>} : memref<32x128xf32, #tpu.memory_space<vmem>>, vector<1x128xf32>,
    %29 = vector.extract_strided_slice %26 {offsets = [0, 128], sizes = [1, 128], strides = [1, 1]} : vector<1x4096xf32> to vector<1x128xf32>
    %c1_21 = arith.constant 1 : index
    %c0_22 = arith.constant 0 : index
    %30 = vector.load %arg8[%c1_21, %c0_22] : memref<32x128xf32, #tpu.memory_space<vmem>>, vector<1x128xf32>
    tpu.vector_store %arg8[%c1_21, %c0_22], %29 {strides = array<i32>} : memref<32x128xf32, #tpu.memory_space<vmem>>, vector<1x128xf32>,
    %31 = vector.extract_strided_slice %26 {offsets = [0, 256], sizes = [1, 128], strides = [1, 1]} : vector<1x4096xf32> to vector<1x128xf32>
    %c2_23 = arith.constant 2 : index
    %c0_24 = arith.constant 0 : index
    %32 = vector.load %arg8[%c2_23, %c0_24] : memref<32x128xf32, #tpu.memory_space<vmem>>, vector<1x128xf32>
    tpu.vector_store %arg8[%c2_23, %c0_24], %31 {strides = array<i32>} : memref<32x128xf32, #tpu.memory_space<vmem>>, vector<1x128xf32>,
    %33 = vector.extract_strided_slice %26 {offsets = [0, 384], sizes = [1, 128], strides = [1, 1]} : vector<1x4096xf32> to vector<1x128xf32>
    %c3 = arith.constant 3 : index
    %c0_25 = arith.constant 0 : index
    %34 = vector.load %arg8[%c3, %c0_25] : memref<32x128xf32, #tpu.memory_space<vmem>>, vector<1x128xf32>
    tpu.vector_store %arg8[%c3, %c0_25], %33 {strides = array<i32>} : memref<32x128xf32, #tpu.memory_space<vmem>>, vector<1x128xf32>,
    %35 = vector.extract_strided_slice %26 {offsets = [0, 512], sizes = [1, 128], strides = [1, 1]} : vector<1x4096xf32> to vector<1x128xf32>
    %c4 = arith.constant 4 : index
    %c0_26 = arith.constant 0 : index
    %36 = vector.load %arg8[%c4, %c0_26] : memref<32x128xf32, #tpu.memory_space<vmem>>, vector<1x128xf32>
    tpu.vector_store %arg8[%c4, %c0_26], %35 {strides = array<i32>} : memref<32x128xf32, #tpu.memory_space<vmem>>, vector<1x128xf32>,
    %37 = vector.extract_strided_slice %26 {offsets = [0, 640], sizes = [1, 128], strides = [1, 1]} : vector<1x4096xf32> to vector<1x128xf32>
    %c5 = arith.constant 5 : index
    %c0_27 = arith.constant 0 : index
    %38 = vector.load %arg8[%c5, %c0_27] : memref<32x128xf32, #tpu.memory_space<vmem>>, vector<1x128xf32>
    tpu.vector_store %arg8[%c5, %c0_27], %37 {strides = array<i32>} : memref<32x128xf32, #tpu.memory_space<vmem>>, vector<1x128xf32>,
    %39 = vector.extract_strided_slice %26 {offsets = [0, 768], sizes = [1, 128], strides = [1, 1]} : vector<1x4096xf32> to vector<1x128xf32>
    %c6 = arith.constant 6 : index
    %c0_28 = arith.constant 0 : index
    %40 = vector.load %arg8[%c6, %c0_28] : memref<32x128xf32, #tpu.memory_space<vmem>>, vector<1x128xf32>
    tpu.vector_store %arg8[%c6, %c0_28], %39 {strides = array<i32>} : memref<32x128xf32, #tpu.memory_space<vmem>>, vector<1x128xf32>,
    %41 = vector.extract_strided_slice %26 {offsets = [0, 896], sizes = [1, 128], strides = [1, 1]} : vector<1x4096xf32> to vector<1x128xf32>
    %c7 = arith.constant 7 : index
    %c0_29 = arith.constant 0 : index
    %42 = vector.load %arg8[%c7, %c0_29] : memref<32x128xf32, #tpu.memory_space<vmem>>, vector<1x128xf32>
    tpu.vector_store %arg8[%c7, %c0_29], %41 {strides = array<i32>} : memref<32x128xf32, #tpu.memory_space<vmem>>, vector<1x128xf32>,
    %43 = vector.extract_strided_slice %26 {offsets = [0, 1024], sizes = [1, 128], strides = [1, 1]} : vector<1x4096xf32> to vector<1x128xf32>
    %c8 = arith.constant 8 : index
    %c0_30 = arith.constant 0 : index
    %44 = vector.load %arg8[%c8, %c0_30] : memref<32x128xf32, #tpu.memory_space<vmem>>, vector<1x128xf32>
    tpu.vector_store %arg8[%c8, %c0_30], %43 {strides = array<i32>} : memref<32x128xf32, #tpu.memory_space<vmem>>, vector<1x128xf32>,
    %45 = vector.extract_strided_slice %26 {offsets = [0, 1152], sizes = [1, 128], strides = [1, 1]} : vector<1x4096xf32> to vector<1x128xf32>
    %c9 = arith.constant 9 : index
    %c0_31 = arith.constant 0 : index
    %46 = vector.load %arg8[%c9, %c0_31] : memref<32x128xf32, #tpu.memory_space<vmem>>, vector<1x128xf32>
    tpu.vector_store %arg8[%c9, %c0_31], %45 {strides = array<i32>} : memref<32x128xf32, #tpu.memory_space<vmem>>, vector<1x128xf32>,
    %47 = vector.extract_strided_slice %26 {offsets = [0, 1280], sizes = [1, 128], strides = [1, 1]} : vector<1x4096xf32> to vector<1x128xf32>
    %c10 = arith.constant 10 : index
    %c0_32 = arith.constant 0 : index
    %48 = vector.load %arg8[%c10, %c0_32] : memref<32x128xf32, #tpu.memory_space<vmem>>, vector<1x128xf32>
    tpu.vector_store %arg8[%c10, %c0_32], %47 {strides = array<i32>} : memref<32x128xf32, #tpu.memory_space<vmem>>, vector<1x128xf32>,
    %49 = vector.extract_strided_slice %26 {offsets = [0, 1408], sizes = [1, 128], strides = [1, 1]} : vector<1x4096xf32> to vector<1x128xf32>
    %c11 = arith.constant 11 : index
    %c0_33 = arith.constant 0 : index
    %50 = vector.load %arg8[%c11, %c0_33] : memref<32x128xf32, #tpu.memory_space<vmem>>, vector<1x128xf32>
    tpu.vector_store %arg8[%c11, %c0_33], %49 {strides = array<i32>} : memref<32x128xf32, #tpu.memory_space<vmem>>, vector<1x128xf32>,
    %51 = vector.extract_strided_slice %26 {offsets = [0, 1536], sizes = [1, 128], strides = [1, 1]} : vector<1x4096xf32> to vector<1x128xf32>
    %c12 = arith.constant 12 : index
    %c0_34 = arith.constant 0 : index
    %52 = vector.load %arg8[%c12, %c0_34] : memref<32x128xf32, #tpu.memory_space<vmem>>, vector<1x128xf32>
    tpu.vector_store %arg8[%c12, %c0_34], %51 {strides = array<i32>} : memref<32x128xf32, #tpu.memory_space<vmem>>, vector<1x128xf32>,
    %53 = vector.extract_strided_slice %26 {offsets = [0, 1664], sizes = [1, 128], strides = [1, 1]} : vector<1x4096xf32> to vector<1x128xf32>
    %c13 = arith.constant 13 : index
    %c0_35 = arith.constant 0 : index
    %54 = vector.load %arg8[%c13, %c0_35] : memref<32x128xf32, #tpu.memory_space<vmem>>, vector<1x128xf32>
    tpu.vector_store %arg8[%c13, %c0_35], %53 {strides = array<i32>} : memref<32x128xf32, #tpu.memory_space<vmem>>, vector<1x128xf32>,
    %55 = vector.extract_strided_slice %26 {offsets = [0, 1792], sizes = [1, 128], strides = [1, 1]} : vector<1x4096xf32> to vector<1x128xf32>
    %c14 = arith.constant 14 : index
    %c0_36 = arith.constant 0 : index
    %56 = vector.load %arg8[%c14, %c0_36] : memref<32x128xf32, #tpu.memory_space<vmem>>, vector<1x128xf32>
    tpu.vector_store %arg8[%c14, %c0_36], %55 {strides = array<i32>} : memref<32x128xf32, #tpu.memory_space<vmem>>, vector<1x128xf32>,
    %57 = vector.extract_strided_slice %26 {offsets = [0, 1920], sizes = [1, 128], strides = [1, 1]} : vector<1x4096xf32> to vector<1x128xf32>
    %c15 = arith.constant 15 : index
    %c0_37 = arith.constant 0 : index
    %58 = vector.load %arg8[%c15, %c0_37] : memref<32x128xf32, #tpu.memory_space<vmem>>, vector<1x128xf32>
    tpu.vector_store %arg8[%c15, %c0_37], %57 {strides = array<i32>} : memref<32x128xf32, #tpu.memory_space<vmem>>, vector<1x128xf32>,
    %59 = vector.extract_strided_slice %26 {offsets = [0, 2048], sizes = [1, 128], strides = [1, 1]} : vector<1x4096xf32> to vector<1x128xf32>
    %c16 = arith.constant 16 : index
    %c0_38 = arith.constant 0 : index
    %60 = vector.load %arg8[%c16, %c0_38] : memref<32x128xf32, #tpu.memory_space<vmem>>, vector<1x128xf32>
    tpu.vector_store %arg8[%c16, %c0_38], %59 {strides = array<i32>} : memref<32x128xf32, #tpu.memory_space<vmem>>, vector<1x128xf32>,
    %61 = vector.extract_strided_slice %26 {offsets = [0, 2176], sizes = [1, 128], strides = [1, 1]} : vector<1x4096xf32> to vector<1x128xf32>
    %c17 = arith.constant 17 : index
    %c0_39 = arith.constant 0 : index
    %62 = vector.load %arg8[%c17, %c0_39] : memref<32x128xf32, #tpu.memory_space<vmem>>, vector<1x128xf32>
    tpu.vector_store %arg8[%c17, %c0_39], %61 {strides = array<i32>} : memref<32x128xf32, #tpu.memory_space<vmem>>, vector<1x128xf32>,
    %63 = vector.extract_strided_slice %26 {offsets = [0, 2304], sizes = [1, 128], strides = [1, 1]} : vector<1x4096xf32> to vector<1x128xf32>
    %c18 = arith.constant 18 : index
    %c0_40 = arith.constant 0 : index
    %64 = vector.load %arg8[%c18, %c0_40] : memref<32x128xf32, #tpu.memory_space<vmem>>, vector<1x128xf32>
    tpu.vector_store %arg8[%c18, %c0_40], %63 {strides = array<i32>} : memref<32x128xf32, #tpu.memory_space<vmem>>, vector<1x128xf32>,
    %65 = vector.extract_strided_slice %26 {offsets = [0, 2432], sizes = [1, 128], strides = [1, 1]} : vector<1x4096xf32> to vector<1x128xf32>
    %c19 = arith.constant 19 : index
    %c0_41 = arith.constant 0 : index
    %66 = vector.load %arg8[%c19, %c0_41] : memref<32x128xf32, #tpu.memory_space<vmem>>, vector<1x128xf32>
    tpu.vector_store %arg8[%c19, %c0_41], %65 {strides = array<i32>} : memref<32x128xf32, #tpu.memory_space<vmem>>, vector<1x128xf32>,
    %67 = vector.extract_strided_slice %26 {offsets = [0, 2560], sizes = [1, 128], strides = [1, 1]} : vector<1x4096xf32> to vector<1x128xf32>
    %c20 = arith.constant 20 : index
    %c0_42 = arith.constant 0 : index
    %68 = vector.load %arg8[%c20, %c0_42] : memref<32x128xf32, #tpu.memory_space<vmem>>, vector<1x128xf32>
    tpu.vector_store %arg8[%c20, %c0_42], %67 {strides = array<i32>} : memref<32x128xf32, #tpu.memory_space<vmem>>, vector<1x128xf32>,
    %69 = vector.extract_strided_slice %26 {offsets = [0, 2688], sizes = [1, 128], strides = [1, 1]} : vector<1x4096xf32> to vector<1x128xf32>
    %c21 = arith.constant 21 : index
    %c0_43 = arith.constant 0 : index
    %70 = vector.load %arg8[%c21, %c0_43] : memref<32x128xf32, #tpu.memory_space<vmem>>, vector<1x128xf32>
    tpu.vector_store %arg8[%c21, %c0_43], %69 {strides = array<i32>} : memref<32x128xf32, #tpu.memory_space<vmem>>, vector<1x128xf32>,
    %71 = vector.extract_strided_slice %26 {offsets = [0, 2816], sizes = [1, 128], strides = [1, 1]} : vector<1x4096xf32> to vector<1x128xf32>
    %c22 = arith.constant 22 : index
    %c0_44 = arith.constant 0 : index
    %72 = vector.load %arg8[%c22, %c0_44] : memref<32x128xf32, #tpu.memory_space<vmem>>, vector<1x128xf32>
    tpu.vector_store %arg8[%c22, %c0_44], %71 {strides = array<i32>} : memref<32x128xf32, #tpu.memory_space<vmem>>, vector<1x128xf32>,
    %73 = vector.extract_strided_slice %26 {offsets = [0, 2944], sizes = [1, 128], strides = [1, 1]} : vector<1x4096xf32> to vector<1x128xf32>
    %c23 = arith.constant 23 : index
    %c0_45 = arith.constant 0 : index
    %74 = vector.load %arg8[%c23, %c0_45] : memref<32x128xf32, #tpu.memory_space<vmem>>, vector<1x128xf32>
    tpu.vector_store %arg8[%c23, %c0_45], %73 {strides = array<i32>} : memref<32x128xf32, #tpu.memory_space<vmem>>, vector<1x128xf32>,
    %75 = vector.extract_strided_slice %26 {offsets = [0, 3072], sizes = [1, 128], strides = [1, 1]} : vector<1x4096xf32> to vector<1x128xf32>
    %c24 = arith.constant 24 : index
    %c0_46 = arith.constant 0 : index
    %76 = vector.load %arg8[%c24, %c0_46] : memref<32x128xf32, #tpu.memory_space<vmem>>, vector<1x128xf32>
    tpu.vector_store %arg8[%c24, %c0_46], %75 {strides = array<i32>} : memref<32x128xf32, #tpu.memory_space<vmem>>, vector<1x128xf32>,
    %77 = vector.extract_strided_slice %26 {offsets = [0, 3200], sizes = [1, 128], strides = [1, 1]} : vector<1x4096xf32> to vector<1x128xf32>
    %c25 = arith.constant 25 : index
    %c0_47 = arith.constant 0 : index
    %78 = vector.load %arg8[%c25, %c0_47] : memref<32x128xf32, #tpu.memory_space<vmem>>, vector<1x128xf32>
    tpu.vector_store %arg8[%c25, %c0_47], %77 {strides = array<i32>} : memref<32x128xf32, #tpu.memory_space<vmem>>, vector<1x128xf32>,
    %79 = vector.extract_strided_slice %26 {offsets = [0, 3328], sizes = [1, 128], strides = [1, 1]} : vector<1x4096xf32> to vector<1x128xf32>
    %c26 = arith.constant 26 : index
    %c0_48 = arith.constant 0 : index
    %80 = vector.load %arg8[%c26, %c0_48] : memref<32x128xf32, #tpu.memory_space<vmem>>, vector<1x128xf32>
    tpu.vector_store %arg8[%c26, %c0_48], %79 {strides = array<i32>} : memref<32x128xf32, #tpu.memory_space<vmem>>, vector<1x128xf32>,
    %81 = vector.extract_strided_slice %26 {offsets = [0, 3456], sizes = [1, 128], strides = [1, 1]} : vector<1x4096xf32> to vector<1x128xf32>
    %c27 = arith.constant 27 : index
    %c0_49 = arith.constant 0 : index
    %82 = vector.load %arg8[%c27, %c0_49] : memref<32x128xf32, #tpu.memory_space<vmem>>, vector<1x128xf32>
    tpu.vector_store %arg8[%c27, %c0_49], %81 {strides = array<i32>} : memref<32x128xf32, #tpu.memory_space<vmem>>, vector<1x128xf32>,
    %83 = vector.extract_strided_slice %26 {offsets = [0, 3584], sizes = [1, 128], strides = [1, 1]} : vector<1x4096xf32> to vector<1x128xf32>
    %c28 = arith.constant 28 : index
    %c0_50 = arith.constant 0 : index
    %84 = vector.load %arg8[%c28, %c0_50] : memref<32x128xf32, #tpu.memory_space<vmem>>, vector<1x128xf32>
    tpu.vector_store %arg8[%c28, %c0_50], %83 {strides = array<i32>} : memref<32x128xf32, #tpu.memory_space<vmem>>, vector<1x128xf32>,
    %85 = vector.extract_strided_slice %26 {offsets = [0, 3712], sizes = [1, 128], strides = [1, 1]} : vector<1x4096xf32> to vector<1x128xf32>
    %c29 = arith.constant 29 : index
    %c0_51 = arith.constant 0 : index
    %86 = vector.load %arg8[%c29, %c0_51] : memref<32x128xf32, #tpu.memory_space<vmem>>, vector<1x128xf32>
    tpu.vector_store %arg8[%c29, %c0_51], %85 {strides = array<i32>} : memref<32x128xf32, #tpu.memory_space<vmem>>, vector<1x128xf32>,
    %87 = vector.extract_strided_slice %26 {offsets = [0, 3840], sizes = [1, 128], strides = [1, 1]} : vector<1x4096xf32> to vector<1x128xf32>
    %c30 = arith.constant 30 : index
    %c0_52 = arith.constant 0 : index
    %88 = vector.load %arg8[%c30, %c0_52] : memref<32x128xf32, #tpu.memory_space<vmem>>, vector<1x128xf32>
    tpu.vector_store %arg8[%c30, %c0_52], %87 {strides = array<i32>} : memref<32x128xf32, #tpu.memory_space<vmem>>, vector<1x128xf32>,
    %89 = vector.extract_strided_slice %26 {offsets = [0, 3968], sizes = [1, 128], strides = [1, 1]} : vector<1x4096xf32> to vector<1x128xf32>
    %c31 = arith.constant 31 : index
    %c0_53 = arith.constant 0 : index
    %90 = vector.load %arg8[%c31, %c0_53] : memref<32x128xf32, #tpu.memory_space<vmem>>, vector<1x128xf32>
    tpu.vector_store %arg8[%c31, %c0_53], %89 {strides = array<i32>} : memref<32x128xf32, #tpu.memory_space<vmem>>, vector<1x128xf32>,
    %c0_54 = arith.constant 0 : index
    %c0_55 = arith.constant 0 : index
    %91 = vector.load %arg8[%c0_54, %c0_55] : memref<32x128xf32, #tpu.memory_space<vmem>>, vector<32x128xf32>
    %92 = arith.truncf %91 : vector<32x128xf32> to vector<32x128xbf16>
    %cst_56 = arith.constant dense<0.000000e+00> : vector<32x128xf32>
    %93 = tpu.matmul %92, %8, %cst_56 {dimension_numbers = #tpu.dot_dimension_numbers<[1], [0], [0], [1], [0, 0, 1, 1], [], []>} : vector<32x128xbf16>, vector<128x128xbf16>, vector<32x128xf32> -> vector<32x128xf32>
    %c0_57 = arith.constant 0 : index
    %c0_58 = arith.constant 0 : index
    %94 = vector.load %arg5[%c0_57, %c0_58] : memref<2x128xf32, #tpu.memory_space<vmem>>, vector<1x128xf32>
    %95 = vector.broadcast %94 : vector<1x128xf32> to vector<32x128xf32>
    %96 = arith.addf %93, %95 : vector<32x128xf32>
    %cst_59 = arith.constant 0.000000e+00 : f32
    %97 = vector.broadcast %cst_59 : f32 to vector<32x128xf32>
    %98 = arith.maximumf %96, %97 : vector<32x128xf32>
    %99 = arith.truncf %98 : vector<32x128xf32> to vector<32x128xbf16>
    %cst_60 = arith.constant dense<0.000000e+00> : vector<32x128xf32>
    %100 = tpu.matmul %99, %10, %cst_60 {dimension_numbers = #tpu.dot_dimension_numbers<[1], [0], [0], [1], [0, 0, 1, 1], [], []>} : vector<32x128xbf16>, vector<128x128xbf16>, vector<32x128xf32> -> vector<32x128xf32>
    %cst_61 = arith.constant dense<0.000000e+00> : vector<128xf32>
    %101 = vector.multi_reduction <add>, %100, %cst_61 [0] : vector<32x128xf32> to vector<128xf32>
    %102 = vector.shape_cast %101 : vector<128xf32> to vector<1x128xf32>
    %c0_62 = arith.constant 0 : index
    %c0_63 = arith.constant 0 : index
    %103 = vector.load %arg7[%c0_62, %c0_63] : memref<1x64xf32, #tpu.memory_space<vmem>>, vector<1x64xf32>
    %104 = vector.extract_strided_slice %102 {offsets = [0, 0], sizes = [1, 64], strides = [1, 1]} : vector<1x128xf32> to vector<1x64xf32>
    %105 = vector.extract_strided_slice %102 {offsets = [0, 64], sizes = [1, 64], strides = [1, 1]} : vector<1x128xf32> to vector<1x64xf32>
    %106 = arith.addf %104, %105 : vector<1x64xf32>
    %107 = arith.addf %103, %106 : vector<1x64xf32>
    %c0_64 = arith.constant 0 : index
    %c0_65 = arith.constant 0 : index
    %108 = vector.load %arg7[%c0_64, %c0_65] : memref<1x64xf32, #tpu.memory_space<vmem>>, vector<1x64xf32>
    tpu.vector_store %arg7[%c0_64, %c0_65], %107 {strides = array<i32>} : memref<1x64xf32, #tpu.memory_space<vmem>>, vector<1x64xf32>,
    %c0_i32_66 = arith.constant 0 : i32
    %109 = arith.cmpi eq, %arg1, %c0_i32_66 : i32
    %110 = arith.extui %109 : i1 to i32
    %c0_i32_67 = arith.constant 0 : i32
    %111 = arith.cmpi ne, %110, %c0_i32_67 : i32
    scf.if %111 {
      %c0_68 = arith.constant 0 : index
      %c0_69 = arith.constant 0 : index
      %112 = vector.load %arg7[%c0_68, %c0_69] : memref<1x64xf32, #tpu.memory_space<vmem>>, vector<1x64xf32>
      %cst_70 = arith.constant 1.562500e-02 : f32
      %113 = vector.broadcast %cst_70 : f32 to vector<1x64xf32>
      %114 = arith.mulf %112, %113 : vector<1x64xf32>
      %c1_71 = arith.constant 1 : index
      %c0_72 = arith.constant 0 : index
      %115 = vector.load %arg5[%c1_71, %c0_72] : memref<2x128xf32, #tpu.memory_space<vmem>>, vector<1x64xf32>
      %116 = arith.addf %114, %115 : vector<1x64xf32>
      %c0_73 = arith.constant 0 : index
      %c0_74 = arith.constant 0 : index
      %c0_75 = arith.constant 0 : index
      %117 = vector.load %arg6[%c0_73, %c0_74, %c0_75] : memref<1x1x64xf32, #tpu.memory_space<vmem>>, vector<1x1x64xf32>
      %118 = vector.shape_cast %117 : vector<1x1x64xf32> to vector<1x64xf32>
      %119 = vector.shape_cast %116 : vector<1x64xf32> to vector<1x1x64xf32>
      tpu.vector_store %arg6[%c0_73, %c0_74, %c0_75], %119 {strides = array<i32>} : memref<1x1x64xf32, #tpu.memory_space<vmem>>, vector<1x1x64xf32>,
    } else {
    }
    return
  }
  func.func @transform_0(%arg0: i32, %arg1: i32) -> (i32, i32) {
    %c1_i32 = arith.constant 1 : i32
    %0 = arith.muli %arg0, %c1_i32 : i32
    %1 = arith.addi %0, %arg1 : i32
    %c0_i32 = arith.constant 0 : i32
    %c0_i32_0 = arith.constant 0 : i32
    return %c0_i32, %1 : i32, i32
  }
  func.func @transform_1(%arg0: i32, %arg1: i32) -> (i32, i32, i32) {
    %c0_i32 = arith.constant 0 : i32
    %c0_i32_0 = arith.constant 0 : i32
    %c0_i32_1 = arith.constant 0 : i32
    %c0_i32_2 = arith.constant 0 : i32
    return %c0_i32, %c0_i32_0, %c0_i32_1 : i32, i32, i32
  }
  func.func @transform_2(%arg0: i32, %arg1: i32) -> (i32, i32) {
    %c0_i32 = arith.constant 0 : i32
    %c0_i32_0 = arith.constant 0 : i32
    %c0_i32_1 = arith.constant 0 : i32
    return %c0_i32, %c0_i32_0 : i32, i32
  }
  func.func @transform_3(%arg0: i32, %arg1: i32) -> (i32, i32) {
    %c0_i32 = arith.constant 0 : i32
    %c0_i32_0 = arith.constant 0 : i32
    %c0_i32_1 = arith.constant 0 : i32
    return %c0_i32, %c0_i32_0 : i32, i32
  }
  func.func @transform_4(%arg0: i32, %arg1: i32) -> (i32, i32, i32) {
    %c0_i32 = arith.constant 0 : i32
    %c0_i32_0 = arith.constant 0 : i32
    %c0_i32_1 = arith.constant 0 : i32
    return %arg0, %c0_i32, %c0_i32_0 : i32, i32, i32
  }
}

</mosaic_0001>

<llo_original>
// kernel: gwnet_forward.1
$region0: #{gwnet_forward.1}
  #allocation0 [shape = 'u32[]', space=smem, size = 0x4, offset = 0x4, fixed_abs, tag = 'smem constant byte address 0x4 - core index']
  #allocation1 [shape = 'u32[72,128]{1,0:T(1,128)}', space=vmem, size = 0x9000, scoped, tag = 'internal scratch']
  #allocation2 [shape = 'f32[1,64]{1,0:T(1,128)}', space=vmem, size = 0x200, scoped, tag = 'scratch operand']
  #allocation3 [shape = 'f32[32,128]{1,0:T(8,128)}', space=vmem, size = 0x4000, scoped, tag = 'scratch operand']
  %s0 = inlined_call_operand.vmem [shape: bf16[64,8192], index: 0, kind: input, shape index: {}]
  %s1 = inlined_call_operand.vmem [shape: bf16[3,128,128], index: 1, kind: input, shape index: {}]
  %s2 = inlined_call_operand.vmem [shape: f32[64,2], index: 2, kind: input, shape index: {}]
  %s3 = inlined_call_operand.vmem [shape: f32[2,128], index: 3, kind: input, shape index: {}]
  %s4 = inlined_call_operand.hbm [shape: f32[2,1,64], index: 4, kind: output, shape index: {}]
  %s5 = sld [smem:[#allocation0]]
  $region80: #{gwnet_forward.1} parent=0
    _
  %s7 = ssub.s32 1, %s5
  %s8 = scalar_select 0, %s7, %s5
  $region1: #{gwnet_forward.1} parent=0
    #allocation4 [shape = 'u8[1048576]{0}', space=vmem, size = 0x100000, scoped, tag = 'input window, operand 0']
    #allocation5 [shape = 'u8[1024]{0}', space=vmem, size = 0x400, scoped, tag = 'output window, operand 0']
    #allocation6 [shape = 's32[2]{0}', space=sflag, size = 0x8, scoped, tag = 'scoped memory for gwnet_forward.1']
    %9 = vsyncpa [#allocation6], 0
    %s10 = scalar_lea.sflag [#allocation6], 1
    %11 = vsyncpa %s10, 0
    loop: start=0, step=1, limit=4
    $region2: #{gwnet_forward.1} parent=1 // loop_pre_header
      _
    $region3: #{gwnet_forward.1} parent=1 // loop_header
      %s13 = sphi 0, %s17
      %p14 = scmp.ge.s32.totalorder %s13, 4
      %s20 = sphi 0, %s32
      %s21 = sphi 0, %s28
      %s22 = sphi 0, %s20
      %s23 = sphi 0, %s21
      %s24 = sphi 0, %s22
      %s25 = sphi 0, %s23
      %s37 = sphi 0, %s39
      %s40 = sphi 0, %s37
      %s41 = sphi 0, %s40
      %s57 = sphi 0, %s41
      %s61 = sphi 0, %s61
      %s63 = sphi 0, %s61
      %s64 = sphi 0, %s63
      %s78 = sphi 0, %s64
      %s82 = sphi 0, %s82
      %s84 = sphi 0, %s82
      %s85 = sphi 0, %s84
      %s99 = sphi 0, %s85
      %s103 = sphi 0, %s103
      %s105 = sphi 0, %s103
      %s106 = sphi 0, %s105
      %s120 = sphi 0, %s106
      %s126 = sphi 0, %s128
      %s129 = sphi 0, %s126
      %s130 = sphi 0, %s129
      %s146 = sphi 0, %s130
    $region4: #{gwnet_forward.1} parent=1 // loop_header_branch
      %16 = sbr.rel (%p14) target = $region8
    $region5: #{gwnet_forward.1} parent=1 // loop_body
      %s18 = ssub.s32 %s13, 1
      %s19 = ssub.s32 %s13, 2
      %s26 = sadd.s32 1, %s21
      %p27 = scmp.ge.s32.totalorder %s26, 1
      %s28 = scalar_select %p27, 0, %s26
      %s29 = sadd.s32 1, %s20
      %s30 = scalar_select %p27, %s29, %s20
      %p31 = scmp.ge.s32.totalorder %s30, 2
      %s32 = scalar_select %p31, 0, %s30
      %s33 = sadd.s32 %s20, %s21
      %s34 = sadd.s32 %s32, %s28
      %s35 = ssub.s32 %s33, %s34
      %p36 = scmp.eq.s32.totalorder %s35, 0
      %s38 = sadd.s32 %s37, 1
      %s39 = scalar_select %p36, %s37, %s38
      %p42 = pneg %p36
      %p43 = scmp.eq.s32.totalorder %s13, 1
      %p44 = por %p42, %p43
      %p45 = scmp.ne.s32.totalorder %s37, %s40
      %p46 = scmp.eq.s32.totalorder %s13, 0
      %p47 = por %p45, %p46
      %p48 = scmp.ne.s32.totalorder %s37, %s40
      %p49 = scmp.eq.s32.totalorder %s18, 1
      %p50 = por %p48, %p49
      %p51 = scmp.ne.s32.totalorder %s40, %s41
      %p52 = scmp.eq.s32.totalorder %s18, 0
      %p53 = por %p51, %p52
      %p54 = scmp.ne.s32.totalorder %s40, %s41
      %p55 = scmp.eq.s32.totalorder %s19, 1
      %p56 = por %p54, %p55
      %p58 = scmp.ne.s32.totalorder %s41, %s57
      %p59 = scmp.eq.s32.totalorder %s19, 0
      %p60 = por %p58, %p59
      %s62 = sadd.s32 %s61, 1
      %p65 = scmp.eq.s32.totalorder %s13, 1
      %p66 = scmp.ne.s32.totalorder %s61, %s63
      %p67 = scmp.eq.s32.totalorder %s13, 0
      %p68 = por %p66, %p67
      %p69 = scmp.ne.s32.totalorder %s61, %s63
      %p70 = scmp.eq.s32.totalorder %s18, 1
      %p71 = por %p69, %p70
      %p72 = scmp.ne.s32.totalorder %s63, %s64
      %p73 = scmp.eq.s32.totalorder %s18, 0
      %p74 = por %p72, %p73
      %p75 = scmp.ne.s32.totalorder %s63, %s64
      %p76 = scmp.eq.s32.totalorder %s19, 1
      %p77 = por %p75, %p76
      %p79 = scmp.ne.s32.totalorder %s64, %s78
      %p80 = scmp.eq.s32.totalorder %s19, 0
      %p81 = por %p79, %p80
      %s83 = sadd.s32 %s82, 1
      %p86 = scmp.eq.s32.totalorder %s13, 1
      %p87 = scmp.ne.s32.totalorder %s82, %s84
      %p88 = scmp.eq.s32.totalorder %s13, 0
      %p89 = por %p87, %p88
      %p90 = scmp.ne.s32.totalorder %s82, %s84
      %p91 = scmp.eq.s32.totalorder %s18, 1
      %p92 = por %p90, %p91
      %p93 = scmp.ne.s32.totalorder %s84, %s85
      %p94 = scmp.eq.s32.totalorder %s18, 0
      %p95 = por %p93, %p94
      %p96 = scmp.ne.s32.totalorder %s84, %s85
      %p97 = scmp.eq.s32.totalorder %s19, 1
      %p98 = por %p96, %p97
      %p100 = scmp.ne.s32.totalorder %s85, %s99
      %p101 = scmp.eq.s32.totalorder %s19, 0
      %p102 = por %p100, %p101
      %s104 = sadd.s32 %s103, 1
      %p107 = scmp.eq.s32.totalorder %s13, 1
      %p108 = scmp.ne.s32.totalorder %s103, %s105
      %p109 = scmp.eq.s32.totalorder %s13, 0
      %p110 = por %p108, %p109
      %p111 = scmp.ne.s32.totalorder %s103, %s105
      %p112 = scmp.eq.s32.totalorder %s18, 1
      %p113 = por %p111, %p112
      %p114 = scmp.ne.s32.totalorder %s105, %s106
      %p115 = scmp.eq.s32.totalorder %s18, 0
      %p116 = por %p114, %p115
      %p117 = scmp.ne.s32.totalorder %s105, %s106
      %p118 = scmp.eq.s32.totalorder %s19, 1
      %p119 = por %p117, %p118
      %p121 = scmp.ne.s32.totalorder %s106, %s120
      %p122 = scmp.eq.s32.totalorder %s19, 0
      %p123 = por %p121, %p122
      %s124 = ssub.s32 %s20, %s32
      %p125 = scmp.eq.s32.totalorder %s124, 0
      %s127 = sadd.s32 %s126, 1
      %s128 = scalar_select %p125, %s126, %s127
      %p131 = pneg %p125
      %p132 = scmp.eq.s32.totalorder %s13, 1
      %p133 = por %p131, %p132
      %p134 = scmp.ne.s32.totalorder %s126, %s129
      %p135 = scmp.eq.s32.totalorder %s13, 0
      %p136 = por %p134, %p135
      %p137 = scmp.ne.s32.totalorder %s126, %s129
      %p138 = scmp.eq.s32.totalorder %s18, 1
      %p139 = por %p137, %p138
      %p140 = scmp.ne.s32.totalorder %s129, %s130
      %p141 = scmp.eq.s32.totalorder %s18, 0
      %p142 = por %p140, %p141
      %p143 = scmp.ne.s32.totalorder %s129, %s130
      %p144 = scmp.eq.s32.totalorder %s19, 1
      %p145 = por %p143, %p144
      %p147 = scmp.ne.s32.totalorder %s130, %s146
      %p148 = scmp.eq.s32.totalorder %s19, 0
      %p149 = por %p147, %p148
      %p150 = scmp.le.s32.totalorder 1, %s13
      %p151 = scmp.lt.s32.totalorder %s13, 3
      %p152 = pnand %p150, %p151
      %p153 = pneg %p152
      // Predicated region
      $region9: #{gwnet_forward.1} parent=5 // pred_check
        _
      $region10: #{gwnet_forward.1} parent=5 // pred_check_branch
        %155 = sbr.rel (%p152) target = $region12
      $region11: #{gwnet_forward.1} parent=5 // pred_region
        %s156 = ssub.s32 %s13, 1
        // Predicated region
        $region13: #{gwnet_forward.1} parent=11 // pred_check
          %p157 = pneg %p74
        $region14: #{gwnet_forward.1} parent=11 // pred_check_branch
          %159 = sbr.rel (%p157) target = $region16
        $region15: #{gwnet_forward.1} parent=11 // pred_region
          _
        $region16: #{gwnet_forward.1} parent=11 // pred_fallthru
          _
        // Predicated region
        $region17: #{gwnet_forward.1} parent=11 // pred_check
          %p160 = pneg %p95
        $region18: #{gwnet_forward.1} parent=11 // pred_check_branch
          %162 = sbr.rel (%p160) target = $region20
        $region19: #{gwnet_forward.1} parent=11 // pred_region
          _
        $region20: #{gwnet_forward.1} parent=11 // pred_fallthru
          _
        // Predicated region
        $region21: #{gwnet_forward.1} parent=11 // pred_check
          %p163 = pneg %p116
        $region22: #{gwnet_forward.1} parent=11 // pred_check_branch
          %165 = sbr.rel (%p163) target = $region24
        $region23: #{gwnet_forward.1} parent=11 // pred_region
          _
        $region24: #{gwnet_forward.1} parent=11 // pred_fallthru
          _
      $region12: #{gwnet_forward.1} parent=5 // pred_fallthru
        _
      %p166 = scmp.lt.s32.totalorder %s13, 2
      // Predicated region
      $region25: #{gwnet_forward.1} parent=5 // pred_check
        %p167 = pneg %p166
      $region26: #{gwnet_forward.1} parent=5 // pred_check_branch
        %169 = sbr.rel (%p167) target = $region28
      $region27: #{gwnet_forward.1} parent=5 // pred_region
        // Predicated region
        $region29: #{gwnet_forward.1} parent=27 // pred_check
          %p170 = pneg %p47
        $region30: #{gwnet_forward.1} parent=27 // pred_check_branch
          %172 = sbr.rel (%p170) target = $region32
        $region31: #{gwnet_forward.1} parent=27 // pred_region
          %s173 = sand.u32 %s37, 1
          %s174 = sand.u32 %s37, 1
          %s175 = smul.addr %s174, 1024
          %s176 = scalar_lea.vmem [#allocation4], %s175
          %s177 = sadd.s32 %s20, %s21
          %s178 = smul.u32 32, %s177
          %s179 = smul.addr %s178, 4
          %s180 = scalar_lea.vmem %s0, %s179
          // Predicated region
          $region33: #{gwnet_forward.1} parent=31 // pred_check
            _
          $region34: #{gwnet_forward.1} parent=31 // pred_check_branch
            %182 = sbr.rel (0) target = $region36
          $region35: #{gwnet_forward.1} parent=31 // pred_region
            // Predicated region
            $region37: #{gwnet_forward.1} parent=35 // pred_check
              _
            $region38: #{gwnet_forward.1} parent=35 // pred_check_branch
              %184 = sbr.rel (0) target = $region40
            $region39: #{gwnet_forward.1} parent=35 // pred_region
              loop: start=0, step=1, limit=1
              $region41: #{gwnet_forward.1} parent=39 // loop_pre_header
                _
              $region42: #{gwnet_forward.1} parent=39 // loop_header
                %s186 = sphi 0, %s190
                %p187 = scmp.ge.s32.totalorder %s186, 1
                %s191 = sphi %s180, %s180
                %s192 = sphi %s176, %s176
              $region43: #{gwnet_forward.1} parent=39 // loop_header_branch
                %189 = sbr.rel (%p187) target = $region47
              $region44: #{gwnet_forward.1} parent=39 // loop_body
                %v193 = vld [vmem:[%s191] sm:$0xff]
                %194 = vst [vmem:[%s192] sm:$0xff] %v193
                %v195 = vld [vmem:[%s191 + $0x8] sm:$0xff]
                %196 = vst [vmem:[%s192 + $0x8] sm:$0xff] %v195
                %v197 = vld [vmem:[%s191 + $0x10] sm:$0xff]
                %198 = vst [vmem:[%s192 + $0x10] sm:$0xff] %v197
                %v199 = vld [vmem:[%s191 + $0x18] sm:$0xff]
                %200 = vst [vmem:[%s192 + $0x18] sm:$0xff] %v199
                %v201 = vld [vmem:[%s191 + $0x20] sm:$0xff]
                %202 = vst [vmem:[%s192 + $0x20] sm:$0xff] %v201
                %v203 = vld [vmem:[%s191 + $0x28] sm:$0xff]
                %204 = vst [vmem:[%s192 + $0x28] sm:$0xff] %v203
                %v205 = vld [vmem:[%s191 + $0x30] sm:$0xff]
                %206 = vst [vmem:[%s192 + $0x30] sm:$0xff] %v205
                %v207 = vld [vmem:[%s191 + $0x38] sm:$0xff]
                %208 = vst [vmem:[%s192 + $0x38] sm:$0xff] %v207
                %v209 = vld [vmem:[%s191 + $0x40] sm:$0xff]
                %210 = vst [vmem:[%s192 + $0x40] sm:$0xff] %v209
                %v211 = vld [vmem:[%s191 + $0x48] sm:$0xff]
                %212 = vst [vmem:[%s192 + $0x48] sm:$0xff] %v211
                %v213 = vld [vmem:[%s191 + $0x50] sm:$0xff]
                %214 = vst [vmem:[%s192 + $0x50] sm:$0xff] %v213
                %v215 = vld [vmem:[%s191 + $0x58] sm:$0xff]
                %216 = vst [vmem:[%s192 + $0x58] sm:$0xff] %v215
                %v217 = vld [vmem:[%s191 + $0x60] sm:$0xff]
                %218 = vst [vmem:[%s192 + $0x60] sm:$0xff] %v217
                %v219 = vld [vmem:[%s191 + $0x68] sm:$0xff]
                %220 = vst [vmem:[%s192 + $0x68] sm:$0xff] %v219
                %v221 = vld [vmem:[%s191 + $0x70] sm:$0xff]
                %222 = vst [vmem:[%s192 + $0x70] sm:$0xff] %v221
                %v223 = vld [vmem:[%s191 + $0x78] sm:$0xff]
                %224 = vst [vmem:[%s192 + $0x78] sm:$0xff] %v223
                %v225 = vld [vmem:[%s191 + $0x100] sm:$0xff]
                %226 = vst [vmem:[%s192 + $0x80] sm:$0xff] %v225
                %v227 = vld [vmem:[%s191 + $0x108] sm:$0xff]
                %228 = vst [vmem:[%s192 + $0x88] sm:$0xff] %v227
                %v229 = vld [vmem:[%s191 + $0x110] sm:$0xff]
                %230 = vst [vmem:[%s192 + $0x90] sm:$0xff] %v229
                %v231 = vld [vmem:[%s191 + $0x118] sm:$0xff]
                %232 = vst [vmem:[%s192 + $0x98] sm:$0xff] %v231
                %v233 = vld [vmem:[%s191 + $0x120] sm:$0xff]
                %234 = vst [vmem:[%s192 + $0xa0] sm:$0xff] %v233
                %v235 = vld [vmem:[%s191 + $0x128] sm:$0xff]
                %236 = vst [vmem:[%s192 + $0xa8] sm:$0xff] %v235
                %v237 = vld [vmem:[%s191 + $0x130] sm:$0xff]
                %238 = vst [vmem:[%s192 + $0xb0] sm:$0xff] %v237
                %v239 = vld [vmem:[%s191 + $0x138] sm:$0xff]
                %240 = vst [vmem:[%s192 + $0xb8] sm:$0xff] %v239
                %v241 = vld [vmem:[%s191 + $0x140] sm:$0xff]
                %242 = vst [vmem:[%s192 + $0xc0] sm:$0xff] %v241
                %v243 = vld [vmem:[%s191 + $0x148] sm:$0xff]
                %244 = vst [vmem:[%s192 + $0xc8] sm:$0xff] %v243
                %v245 = vld [vmem:[%s191 + $0x150] sm:$0xff]
                %246 = vst [vmem:[%s192 + $0xd0] sm:$0xff] %v245
                %v247 = vld [vmem:[%s191 + $0x158] sm:$0xff]
                %248 = vst [vmem:[%s192 + $0xd8] sm:$0xff] %v247
                %v249 = vld [vmem:[%s191 + $0x160] sm:$0xff]
                %250 = vst [vmem:[%s192 + $0xe0] sm:$0xff] %v249
                %v251 = vld [vmem:[%s191 + $0x168] sm:$0xff]
                %252 = vst [vmem:[%s192 + $0xe8] sm:$0xff] %v251
                %v253 = vld [vmem:[%s191 + $0x170] sm:$0xff]
                %254 = vst [vmem:[%s192 + $0xf0] sm:$0xff] %v253
                %v255 = vld [vmem:[%s191 + $0x178] sm:$0xff]
                %256 = vst [vmem:[%s192 + $0xf8] sm:$0xff] %v255
                %v257 = vld [vmem:[%s191 + $0x200] sm:$0xff]
                %258 = vst [vmem:[%s192 + $0x100] sm:$0xff] %v257
                %v259 = vld [vmem:[%s191 + $0x208] sm:$0xff]
                %260 = vst [vmem:[%s192 + $0x108] sm:$0xff] %v259
                %v261 = vld [vmem:[%s191 + $0x210] sm:$0xff]
                %262 = vst [vmem:[%s192 + $0x110] sm:$0xff] %v261
                %v263 = vld [vmem:[%s191 + $0x218] sm:$0xff]
                %264 = vst [vmem:[%s192 + $0x118] sm:$0xff] %v263
                %v265 = vld [vmem:[%s191 + $0x220] sm:$0xff]
                %266 = vst [vmem:[%s192 + $0x120] sm:$0xff] %v265
                %v267 = vld [vmem:[%s191 + $0x228] sm:$0xff]
                %268 = vst [vmem:[%s192 + $0x128] sm:$0xff] %v267
                %v269 = vld [vmem:[%s191 + $0x230] sm:$0xff]
                %270 = vst [vmem:[%s192 + $0x130] sm:$0xff] %v269
                %v271 = vld [vmem:[%s191 + $0x238] sm:$0xff]
                %272 = vst [vmem:[%s192 + $0x138] sm:$0xff] %v271
                %v273 = vld [vmem:[%s191 + $0x240] sm:$0xff]
                %274 = vst [vmem:[%s192 + $0x140] sm:$0xff] %v273
                %v275 = vld [vmem:[%s191 + $0x248] sm:$0xff]
                %276 = vst [vmem:[%s192 + $0x148] sm:$0xff] %v275
                %v277 = vld [vmem:[%s191 + $0x250] sm:$0xff]
                %278 = vst [vmem:[%s192 + $0x150] sm:$0xff] %v277
                %v279 = vld [vmem:[%s191 + $0x258] sm:$0xff]
                %280 = vst [vmem:[%s192 + $0x158] sm:$0xff] %v279
                %v281 = vld [vmem:[%s191 + $0x260] sm:$0xff]
                %282 = vst [vmem:[%s192 + $0x160] sm:$0xff] %v281
                %v283 = vld [vmem:[%s191 + $0x268] sm:$0xff]
                %284 = vst [vmem:[%s192 + $0x168] sm:$0xff] %v283
                %v285 = vld [vmem:[%s191 + $0x270] sm:$0xff]
                %286 = vst [vmem:[%s192 + $0x170] sm:$0xff] %v285
                %v287 = vld [vmem:[%s191 + $0x278] sm:$0xff]
                %288 = vst [vmem:[%s192 + $0x178] sm:$0xff] %v287
                %v289 = vld [vmem:[%s191 + $0x300] sm:$0xff]
                %290 = vst [vmem:[%s192 + $0x180] sm:$0xff] %v289
                %v291 = vld [vmem:[%s191 + $0x308] sm:$0xff]
                %292 = vst [vmem:[%s192 + $0x188] sm:$0xff] %v291
                %v293 = vld [vmem:[%s191 + $0x310] sm:$0xff]
                %294 = vst [vmem:[%s192 + $0x190] sm:$0xff] %v293
                %v295 = vld [vmem:[%s191 + $0x318] sm:$0xff]
                %296 = vst [vmem:[%s192 + $0x198] sm:$0xff] %v295
                %v297 = vld [vmem:[%s191 + $0x320] sm:$0xff]
                %298 = vst [vmem:[%s192 + $0x1a0] sm:$0xff] %v297
                %v299 = vld [vmem:[%s191 + $0x328] sm:$0xff]
                %300 = vst [vmem:[%s192 + $0x1a8] sm:$0xff] %v299
                %v301 = vld [vmem:[%s191 + $0x330] sm:$0xff]
                %302 = vst [vmem:[%s192 + $0x1b0] sm:$0xff] %v301
                %v303 = vld [vmem:[%s191 + $0x338] sm:$0xff]
                %304 = vst [vmem:[%s192 + $0x1b8] sm:$0xff] %v303
                %v305 = vld [vmem:[%s191 + $0x340] sm:$0xff]
                %306 = vst [vmem:[%s192 + $0x1c0] sm:$0xff] %v305
                %v307 = vld [vmem:[%s191 + $0x348] sm:$0xff]
                %308 = vst [vmem:[%s192 + $0x1c8] sm:$0xff] %v307
                %v309 = vld [vmem:[%s191 + $0x350] sm:$0xff]
                %310 = vst [vmem:[%s192 + $0x1d0] sm:$0xff] %v309
                %v311 = vld [vmem:[%s191 + $0x358] sm:$0xff]
                %312 = vst [vmem:[%s192 + $0x1d8] sm:$0xff] %v311
                %v313 = vld [vmem:[%s191 + $0x360] sm:$0xff]
                %314 = vst [vmem:[%s192 + $0x1e0] sm:$0xff] %v313
                %v315 = vld [vmem:[%s191 + $0x368] sm:$0xff]
                %316 = vst [vmem:[%s192 + $0x1e8] sm:$0xff] %v315
                %v317 = vld [vmem:[%s191 + $0x370] sm:$0xff]
                %318 = vst [vmem:[%s192 + $0x1f0] sm:$0xff] %v317
                %v319 = vld [vmem:[%s191 + $0x378] sm:$0xff]
                %320 = vst [vmem:[%s192 + $0x1f8] sm:$0xff] %v319
                %v321 = vld [vmem:[%s191 + $0x400] sm:$0xff]
                %322 = vst [vmem:[%s192 + $0x200] sm:$0xff] %v321
                %v323 = vld [vmem:[%s191 + $0x408] sm:$0xff]
                %324 = vst [vmem:[%s192 + $0x208] sm:$0xff] %v323
                %v325 = vld [vmem:[%s191 + $0x410] sm:$0xff]
                %326 = vst [vmem:[%s192 + $0x210] sm:$0xff] %v325
                %v327 = vld [vmem:[%s191 + $0x418] sm:$0xff]
                %328 = vst [vmem:[%s192 + $0x218] sm:$0xff] %v327
                %v329 = vld [vmem:[%s191 + $0x420] sm:$0xff]
                %330 = vst [vmem:[%s192 + $0x220] sm:$0xff] %v329
                %v331 = vld [vmem:[%s191 + $0x428] sm:$0xff]
                %332 = vst [vmem:[%s192 + $0x228] sm:$0xff] %v331
                %v333 = vld [vmem:[%s191 + $0x430] sm:$0xff]
                %334 = vst [vmem:[%s192 + $0x230] sm:$0xff] %v333
                %v335 = vld [vmem:[%s191 + $0x438] sm:$0xff]
                %336 = vst [vmem:[%s192 + $0x238] sm:$0xff] %v335
                %v337 = vld [vmem:[%s191 + $0x440] sm:$0xff]
                %338 = vst [vmem:[%s192 + $0x240] sm:$0xff] %v337
                %v339 = vld [vmem:[%s191 + $0x448] sm:$0xff]
                %340 = vst [vmem:[%s192 + $0x248] sm:$0xff] %v339
                %v341 = vld [vmem:[%s191 + $0x450] sm:$0xff]
                %342 = vst [vmem:[%s192 + $0x250] sm:$0xff] %v341
                %v343 = vld [vmem:[%s191 + $0x458] sm:$0xff]
                %344 = vst [vmem:[%s192 + $0x258] sm:$0xff] %v343
                %v345 = vld [vmem:[%s191 + $0x460] sm:$0xff]
                %346 = vst [vmem:[%s192 + $0x260] sm:$0xff] %v345
                %v347 = vld [vmem:[%s191 + $0x468] sm:$0xff]
                %348 = vst [vmem:[%s192 + $0x268] sm:$0xff] %v347
                %v349 = vld [vmem:[%s191 + $0x470] sm:$0xff]
                %350 = vst [vmem:[%s192 + $0x270] sm:$0xff] %v349
                %v351 = vld [vmem:[%s191 + $0x478] sm:$0xff]
                %352 = vst [vmem:[%s192 + $0x278] sm:$0xff] %v351
                %v353 = vld [vmem:[%s191 + $0x500] sm:$0xff]
                %354 = vst [vmem:[%s192 + $0x280] sm:$0xff] %v353
                %v355 = vld [vmem:[%s191 + $0x508] sm:$0xff]
                %356 = vst [vmem:[%s192 + $0x288] sm:$0xff] %v355
                %v357 = vld [vmem:[%s191 + $0x510] sm:$0xff]
                %358 = vst [vmem:[%s192 + $0x290] sm:$0xff] %v357
                %v359 = vld [vmem:[%s191 + $0x518] sm:$0xff]
                %360 = vst [vmem:[%s192 + $0x298] sm:$0xff] %v359
                %v361 = vld [vmem:[%s191 + $0x520] sm:$0xff]
                %362 = vst [vmem:[%s192 + $0x2a0] sm:$0xff] %v361
                %v363 = vld [vmem:[%s191 + $0x528] sm:$0xff]
                %364 = vst [vmem:[%s192 + $0x2a8] sm:$0xff] %v363
                %v365 = vld [vmem:[%s191 + $0x530] sm:$0xff]
                %366 = vst [vmem:[%s192 + $0x2b0] sm:$0xff] %v365
                %v367 = vld [vmem:[%s191 + $0x538] sm:$0xff]
                %368 = vst [vmem:[%s192 + $0x2b8] sm:$0xff] %v367
                %v369 = vld [vmem:[%s191 + $0x540] sm:$0xff]
                %370 = vst [vmem:[%s192 + $0x2c0] sm:$0xff] %v369
                %v371 = vld [vmem:[%s191 + $0x548] sm:$0xff]
                %372 = vst [vmem:[%s192 + $0x2c8] sm:$0xff] %v371
                %v373 = vld [vmem:[%s191 + $0x550] sm:$0xff]
                %374 = vst [vmem:[%s192 + $0x2d0] sm:$0xff] %v373
                %v375 = vld [vmem:[%s191 + $0x558] sm:$0xff]
                %376 = vst [vmem:[%s192 + $0x2d8] sm:$0xff] %v375
                %v377 = vld [vmem:[%s191 + $0x560] sm:$0xff]
                %378 = vst [vmem:[%s192 + $0x2e0] sm:$0xff] %v377
                %v379 = vld [vmem:[%s191 + $0x568] sm:$0xff]
                %380 = vst [vmem:[%s192 + $0x2e8] sm:$0xff] %v379
                %v381 = vld [vmem:[%s191 + $0x570] sm:$0xff]
                %382 = vst [vmem:[%s192 + $0x2f0] sm:$0xff] %v381
                %v383 = vld [vmem:[%s191 + $0x578] sm:$0xff]
                %384 = vst [vmem:[%s192 + $0x2f8] sm:$0xff] %v383
                %v385 = vld [vmem:[%s191 + $0x600] sm:$0xff]
                %386 = vst [vmem:[%s192 + $0x300] sm:$0xff] %v385
                %v387 = vld [vmem:[%s191 + $0x608] sm:$0xff]
                %388 = vst [vmem:[%s192 + $0x308] sm:$0xff] %v387
                %v389 = vld [vmem:[%s191 + $0x610] sm:$0xff]
                %390 = vst [vmem:[%s192 + $0x310] sm:$0xff] %v389
                %v391 = vld [vmem:[%s191 + $0x618] sm:$0xff]
                %392 = vst [vmem:[%s192 + $0x318] sm:$0xff] %v391
                %v393 = vld [vmem:[%s191 + $0x620] sm:$0xff]
                %394 = vst [vmem:[%s192 + $0x320] sm:$0xff] %v393
                %v395 = vld [vmem:[%s191 + $0x628] sm:$0xff]
                %396 = vst [vmem:[%s192 + $0x328] sm:$0xff] %v395
                %v397 = vld [vmem:[%s191 + $0x630] sm:$0xff]
                %398 = vst [vmem:[%s192 + $0x330] sm:$0xff] %v397
                %v399 = vld [vmem:[%s191 + $0x638] sm:$0xff]
                %400 = vst [vmem:[%s192 + $0x338] sm:$0xff] %v399
                %v401 = vld [vmem:[%s191 + $0x640] sm:$0xff]
                %402 = vst [vmem:[%s192 + $0x340] sm:$0xff] %v401
                %v403 = vld [vmem:[%s191 + $0x648] sm:$0xff]
                %404 = vst [vmem:[%s192 + $0x348] sm:$0xff] %v403
                %v405 = vld [vmem:[%s191 + $0x650] sm:$0xff]
                %406 = vst [vmem:[%s192 + $0x350] sm:$0xff] %v405
                %v407 = vld [vmem:[%s191 + $0x658] sm:$0xff]
                %408 = vst [vmem:[%s192 + $0x358] sm:$0xff] %v407
                %v409 = vld [vmem:[%s191 + $0x660] sm:$0xff]
                %410 = vst [vmem:[%s192 + $0x360] sm:$0xff] %v409
                %v411 = vld [vmem:[%s191 + $0x668] sm:$0xff]
                %412 = vst [vmem:[%s192 + $0x368] sm:$0xff] %v411
                %v413 = vld [vmem:[%s191 + $0x670] sm:$0xff]
                %414 = vst [vmem:[%s192 + $0x370] sm:$0xff] %v413
                %v415 = vld [vmem:[%s191 + $0x678] sm:$0xff]
                %416 = vst [vmem:[%s192 + $0x378] sm:$0xff] %v415
                %v417 = vld [vmem:[%s191 + $0x700] sm:$0xff]
                %418 = vst [vmem:[%s192 + $0x380] sm:$0xff] %v417
                %v419 = vld [vmem:[%s191 + $0x708] sm:$0xff]
                %420 = vst [vmem:[%s192 + $0x388] sm:$0xff] %v419
                %v421 = vld [vmem:[%s191 + $0x710] sm:$0xff]
                %422 = vst [vmem:[%s192 + $0x390] sm:$0xff] %v421
                %v423 = vld [vmem:[%s191 + $0x718] sm:$0xff]
                %424 = vst [vmem:[%s192 + $0x398] sm:$0xff] %v423
                %v425 = vld [vmem:[%s191 + $0x720] sm:$0xff]
                %426 = vst [vmem:[%s192 + $0x3a0] sm:$0xff] %v425
                %v427 = vld [vmem:[%s191 + $0x728] sm:$0xff]
                %428 = vst [vmem:[%s192 + $0x3a8] sm:$0xff] %v427
                %v429 = vld [vmem:[%s191 + $0x730] sm:$0xff]
                %430 = vst [vmem:[%s192 + $0x3b0] sm:$0xff] %v429
                %v431 = vld [vmem:[%s191 + $0x738] sm:$0xff]
                %432 = vst [vmem:[%s192 + $0x3b8] sm:$0xff] %v431
                %v433 = vld [vmem:[%s191 + $0x740] sm:$0xff]
                %434 = vst [vmem:[%s192 + $0x3c0] sm:$0xff] %v433
                %v435 = vld [vmem:[%s191 + $0x748] sm:$0xff]
                %436 = vst [vmem:[%s192 + $0x3c8] sm:$0xff] %v435
                %v437 = vld [vmem:[%s191 + $0x750] sm:$0xff]
                %438 = vst [vmem:[%s192 + $0x3d0] sm:$0xff] %v437
                %v439 = vld [vmem:[%s191 + $0x758] sm:$0xff]
                %440 = vst [vmem:[%s192 + $0x3d8] sm:$0xff] %v439
                %v441 = vld [vmem:[%s191 + $0x760] sm:$0xff]
                %442 = vst [vmem:[%s192 + $0x3e0] sm:$0xff] %v441
                %v443 = vld [vmem:[%s191 + $0x768] sm:$0xff]
                %444 = vst [vmem:[%s192 + $0x3e8] sm:$0xff] %v443
                %v445 = vld [vmem:[%s191 + $0x770] sm:$0xff]
                %446 = vst [vmem:[%s192 + $0x3f0] sm:$0xff] %v445
                %v447 = vld [vmem:[%s191 + $0x778] sm:$0xff]
                %448 = vst [vmem:[%s192 + $0x3f8] sm:$0xff] %v447
              $region45: #{gwnet_forward.1} parent=39 // loop_footer
                %s190 = sadd.s32 1, %s186
              $region46: #{gwnet_forward.1} parent=39 // loop_footer_branch
                %185 = sbr.rel target = $region42
              $region47: #{gwnet_forward.1} parent=39 // loop_exit
                _
            $region40: #{gwnet_forward.1} parent=35 // pred_fallthru
              _
            // Predicated region
            $region48: #{gwnet_forward.1} parent=35 // pred_check
              _
            $region49: #{gwnet_forward.1} parent=35 // pred_check_branch
              %450 = sbr.rel target = $region51
            $region50: #{gwnet_forward.1} parent=35 // pred_region
              _
            $region51: #{gwnet_forward.1} parent=35 // pred_fallthru
              _
          $region36: #{gwnet_forward.1} parent=31 // pred_fallthru
            _
          %451 = vnop
        $region32: #{gwnet_forward.1} parent=27 // pred_fallthru
          _
      $region28: #{gwnet_forward.1} parent=5 // pred_fallthru
        _
      %p452 = scmp.le.s32.totalorder 1, %s13
      %p453 = scmp.lt.s32.totalorder %s13, 3
      %p454 = pnand %p452, %p453
      %p455 = pneg %p454
      // Predicated region
      $region52: #{gwnet_forward.1} parent=5 // pred_check
        _
      $region53: #{gwnet_forward.1} parent=5 // pred_check_branch
        %457 = sbr.rel (%p454) target = $region55
      $region54: #{gwnet_forward.1} parent=5 // pred_region
        %s458 = ssub.s32 %s13, 1
        %s459 = sand.u32 %s40, 1
        %s460 = sand.u32 %s40, 1
        %s461 = smul.addr %s460, 1024
        %s462 = scalar_lea.vmem [#allocation4], %s461
        // Predicated region
        $region56: #{gwnet_forward.1} parent=54 // pred_check
          %p463 = pneg %p53
        $region57: #{gwnet_forward.1} parent=54 // pred_check_branch
          %465 = sbr.rel (%p463) target = $region59
        $region58: #{gwnet_forward.1} parent=54 // pred_region
          _
        $region59: #{gwnet_forward.1} parent=54 // pred_fallthru
          _
        %s466 = sand.u32 %s40, 1
        %s467 = sand.u32 %s40, 1
        %s468 = smul.addr %s467, 1024
        %s469 = scalar_lea.vmem [#allocation4], %s468
        %p470 = pneg %p53
        %p471 = pneg %p50
        %p472 = pneg %p74
        %p473 = pneg %p71
        %p474 = pneg %p95
        %p475 = pneg %p92
        %p476 = pneg %p116
        %p477 = pneg %p113
        %p478 = pneg %p142
        %p479 = pneg %p139
        %s480 = sand.u32 %s129, 1
        %s481 = scalar_lea.sflag [#allocation6], %s480
        %s482 = sand.u32 %s129, 1
        %s483 = scalar_lea.vmem [#allocation5], %s482
        %s484 = sadd.s32 %s22, %s23
        %s485 = smul.u32 32, %s484
        %p487 = scmp.eq.s32.totalorder %s23, 0
        // Predicated region
        $region60: #{gwnet_forward.1} parent=54 // pred_check
          %p488 = pneg %p487
        $region61: #{gwnet_forward.1} parent=54 // pred_check_branch
          %490 = sbr.rel (%p488) target = $region63
        $region62: #{gwnet_forward.1} parent=54 // pred_region
          %vm491 = vcmask 516096
          %492 = vst.msk [vmem:[#allocation2] sm:$0x1] %vm491, 0.0
        $region63: #{gwnet_forward.1} parent=54 // pred_fallthru
          _
        %v493 = vld [vmem:[%s1] sm:$0xf]
        %v494 = vld [vmem:[%s1 + $0x4] sm:$0xf]
        %v495 = vld [vmem:[%s1 + $0x8] sm:$0xf]
        %v496 = vld [vmem:[%s1 + $0xc] sm:$0xf]
        %v497 = vld [vmem:[%s1 + $0x10] sm:$0xf]
        %v498 = vld [vmem:[%s1 + $0x14] sm:$0xf]
        %v499 = vld [vmem:[%s1 + $0x18] sm:$0xf]
        %v500 = vld [vmem:[%s1 + $0x1c] sm:$0xf]
        %v501 = vld [vmem:[%s1 + $0x20] sm:$0xf]
        %v502 = vld [vmem:[%s1 + $0x24] sm:$0xf]
        %v503 = vld [vmem:[%s1 + $0x28] sm:$0xf]
        %v504 = vld [vmem:[%s1 + $0x2c] sm:$0xf]
        %v505 = vld [vmem:[%s1 + $0x30] sm:$0xf]
        %v506 = vld [vmem:[%s1 + $0x34] sm:$0xf]
        %v507 = vld [vmem:[%s1 + $0x38] sm:$0xf]
        %v508 = vld [vmem:[%s1 + $0x3c] sm:$0xf]
        %s509 = scalar_lea.vmem %s1, 64
        %v510 = vld [vmem:[%s509] sm:$0xf]
        %v511 = vld [vmem:[%s509 + $0x4] sm:$0xf]
        %v512 = vld [vmem:[%s509 + $0x8] sm:$0xf]
        %v513 = vld [vmem:[%s509 + $0xc] sm:$0xf]
        %v514 = vld [vmem:[%s509 + $0x10] sm:$0xf]
        %v515 = vld [vmem:[%s509 + $0x14] sm:$0xf]
        %v516 = vld [vmem:[%s509 + $0x18] sm:$0xf]
        %v517 = vld [vmem:[%s509 + $0x1c] sm:$0xf]
        %v518 = vld [vmem:[%s509 + $0x20] sm:$0xf]
        %v519 = vld [vmem:[%s509 + $0x24] sm:$0xf]
        %v520 = vld [vmem:[%s509 + $0x28] sm:$0xf]
        %v521 = vld [vmem:[%s509 + $0x2c] sm:$0xf]
        %v522 = vld [vmem:[%s509 + $0x30] sm:$0xf]
        %v523 = vld [vmem:[%s509 + $0x34] sm:$0xf]
        %v524 = vld [vmem:[%s509 + $0x38] sm:$0xf]
        %v525 = vld [vmem:[%s509 + $0x3c] sm:$0xf]
        %s526 = scalar_lea.vmem %s1, 128
        %v527 = vld [vmem:[%s526] sm:$0xf]
        %v528 = vld [vmem:[%s526 + $0x4] sm:$0xf]
        %v529 = vld [vmem:[%s526 + $0x8] sm:$0xf]
        %v530 = vld [vmem:[%s526 + $0xc] sm:$0xf]
        %v531 = vld [vmem:[%s526 + $0x10] sm:$0xf]
        %v532 = vld [vmem:[%s526 + $0x14] sm:$0xf]
        %v533 = vld [vmem:[%s526 + $0x18] sm:$0xf]
        %v534 = vld [vmem:[%s526 + $0x1c] sm:$0xf]
        %v535 = vld [vmem:[%s526 + $0x20] sm:$0xf]
        %v536 = vld [vmem:[%s526 + $0x24] sm:$0xf]
        %v537 = vld [vmem:[%s526 + $0x28] sm:$0xf]
        %v538 = vld [vmem:[%s526 + $0x2c] sm:$0xf]
        %v539 = vld [vmem:[%s526 + $0x30] sm:$0xf]
        %v540 = vld [vmem:[%s526 + $0x34] sm:$0xf]
        %v541 = vld [vmem:[%s526 + $0x38] sm:$0xf]
        %v542 = vld [vmem:[%s526 + $0x3c] sm:$0xf]
        %v543 = vld [vmem:[%s462] sm:$0xff]
        %v544 = vld [vmem:[%s462 + $0x8] sm:$0xff]
        %v545 = vld [vmem:[%s462 + $0x10] sm:$0xff]
        %v546 = vld [vmem:[%s462 + $0x18] sm:$0xff]
        %v547 = vld [vmem:[%s462 + $0x20] sm:$0xff]
        %v548 = vld [vmem:[%s462 + $0x28] sm:$0xff]
        %v549 = vld [vmem:[%s462 + $0x30] sm:$0xff]
        %v550 = vld [vmem:[%s462 + $0x38] sm:$0xff]
        %v551 = vld [vmem:[%s462 + $0x40] sm:$0xff]
        %v552 = vld [vmem:[%s462 + $0x48] sm:$0xff]
        %v553 = vld [vmem:[%s462 + $0x50] sm:$0xff]
        %v554 = vld [vmem:[%s462 + $0x58] sm:$0xff]
        %v555 = vld [vmem:[%s462 + $0x60] sm:$0xff]
        %v556 = vld [vmem:[%s462 + $0x68] sm:$0xff]
        %v557 = vld [vmem:[%s462 + $0x70] sm:$0xff]
        %v558 = vld [vmem:[%s462 + $0x78] sm:$0xff]
        %v559 = vld [vmem:[%s462 + $0x80] sm:$0xff]
        %v560 = vld [vmem:[%s462 + $0x88] sm:$0xff]
        %v561 = vld [vmem:[%s462 + $0x90] sm:$0xff]
        %v562 = vld [vmem:[%s462 + $0x98] sm:$0xff]
        %v563 = vld [vmem:[%s462 + $0xa0] sm:$0xff]
        %v564 = vld [vmem:[%s462 + $0xa8] sm:$0xff]
        %v565 = vld [vmem:[%s462 + $0xb0] sm:$0xff]
        %v566 = vld [vmem:[%s462 + $0xb8] sm:$0xff]
        %v567 = vld [vmem:[%s462 + $0xc0] sm:$0xff]
        %v568 = vld [vmem:[%s462 + $0xc8] sm:$0xff]
        %v569 = vld [vmem:[%s462 + $0xd0] sm:$0xff]
        %v570 = vld [vmem:[%s462 + $0xd8] sm:$0xff]
        %v571 = vld [vmem:[%s462 + $0xe0] sm:$0xff]
        %v572 = vld [vmem:[%s462 + $0xe8] sm:$0xff]
        %v573 = vld [vmem:[%s462 + $0xf0] sm:$0xff]
        %v574 = vld [vmem:[%s462 + $0xf8] sm:$0xff]
        %v575 = vld [vmem:[%s462 + $0x100] sm:$0xff]
        %v576 = vld [vmem:[%s462 + $0x108] sm:$0xff]
        %v577 = vld [vmem:[%s462 + $0x110] sm:$0xff]
        %v578 = vld [vmem:[%s462 + $0x118] sm:$0xff]
        %v579 = vld [vmem:[%s462 + $0x120] sm:$0xff]
        %v580 = vld [vmem:[%s462 + $0x128] sm:$0xff]
        %v581 = vld [vmem:[%s462 + $0x130] sm:$0xff]
        %v582 = vld [vmem:[%s462 + $0x138] sm:$0xff]
        %v583 = vld [vmem:[%s462 + $0x140] sm:$0xff]
        %v584 = vld [vmem:[%s462 + $0x148] sm:$0xff]
        %v585 = vld [vmem:[%s462 + $0x150] sm:$0xff]
        %v586 = vld [vmem:[%s462 + $0x158] sm:$0xff]
        %v587 = vld [vmem:[%s462 + $0x160] sm:$0xff]
        %v588 = vld [vmem:[%s462 + $0x168] sm:$0xff]
        %v589 = vld [vmem:[%s462 + $0x170] sm:$0xff]
        %v590 = vld [vmem:[%s462 + $0x178] sm:$0xff]
        %v591 = vld [vmem:[%s462 + $0x180] sm:$0xff]
        %v592 = vld [vmem:[%s462 + $0x188] sm:$0xff]
        %v593 = vld [vmem:[%s462 + $0x190] sm:$0xff]
        %v594 = vld [vmem:[%s462 + $0x198] sm:$0xff]
        %v595 = vld [vmem:[%s462 + $0x1a0] sm:$0xff]
        %v596 = vld [vmem:[%s462 + $0x1a8] sm:$0xff]
        %v597 = vld [vmem:[%s462 + $0x1b0] sm:$0xff]
        %v598 = vld [vmem:[%s462 + $0x1b8] sm:$0xff]
        %v599 = vld [vmem:[%s462 + $0x1c0] sm:$0xff]
        %v600 = vld [vmem:[%s462 + $0x1c8] sm:$0xff]
        %v601 = vld [vmem:[%s462 + $0x1d0] sm:$0xff]
        %v602 = vld [vmem:[%s462 + $0x1d8] sm:$0xff]
        %v603 = vld [vmem:[%s462 + $0x1e0] sm:$0xff]
        %v604 = vld [vmem:[%s462 + $0x1e8] sm:$0xff]
        %v605 = vld [vmem:[%s462 + $0x1f0] sm:$0xff]
        %v606 = vld [vmem:[%s462 + $0x1f8] sm:$0xff]
        %v607 = vld [vmem:[%s462 + $0x200] sm:$0xff]
        %v608 = vld [vmem:[%s462 + $0x208] sm:$0xff]
        %v609 = vld [vmem:[%s462 + $0x210] sm:$0xff]
        %v610 = vld [vmem:[%s462 + $0x218] sm:$0xff]
        %v611 = vld [vmem:[%s462 + $0x220] sm:$0xff]
        %v612 = vld [vmem:[%s462 + $0x228] sm:$0xff]
        %v613 = vld [vmem:[%s462 + $0x230] sm:$0xff]
        %v614 = vld [vmem:[%s462 + $0x238] sm:$0xff]
        %v615 = vld [vmem:[%s462 + $0x240] sm:$0xff]
        %v616 = vld [vmem:[%s462 + $0x248] sm:$0xff]
        %v617 = vld [vmem:[%s462 + $0x250] sm:$0xff]
        %v618 = vld [vmem:[%s462 + $0x258] sm:$0xff]
        %v619 = vld [vmem:[%s462 + $0x260] sm:$0xff]
        %v620 = vld [vmem:[%s462 + $0x268] sm:$0xff]
        %v621 = vld [vmem:[%s462 + $0x270] sm:$0xff]
        %v622 = vld [vmem:[%s462 + $0x278] sm:$0xff]
        %v623 = vld [vmem:[%s462 + $0x280] sm:$0xff]
        %v624 = vld [vmem:[%s462 + $0x288] sm:$0xff]
        %v625 = vld [vmem:[%s462 + $0x290] sm:$0xff]
        %v626 = vld [vmem:[%s462 + $0x298] sm:$0xff]
        %v627 = vld [vmem:[%s462 + $0x2a0] sm:$0xff]
        %v628 = vld [vmem:[%s462 + $0x2a8] sm:$0xff]
        %v629 = vld [vmem:[%s462 + $0x2b0] sm:$0xff]
        %v630 = vld [vmem:[%s462 + $0x2b8] sm:$0xff]
        %v631 = vld [vmem:[%s462 + $0x2c0] sm:$0xff]
        %v632 = vld [vmem:[%s462 + $0x2c8] sm:$0xff]
        %v633 = vld [vmem:[%s462 + $0x2d0] sm:$0xff]
        %v634 = vld [vmem:[%s462 + $0x2d8] sm:$0xff]
        %v635 = vld [vmem:[%s462 + $0x2e0] sm:$0xff]
        %v636 = vld [vmem:[%s462 + $0x2e8] sm:$0xff]
        %v637 = vld [vmem:[%s462 + $0x2f0] sm:$0xff]
        %v638 = vld [vmem:[%s462 + $0x2f8] sm:$0xff]
        %v639 = vld [vmem:[%s462 + $0x300] sm:$0xff]
        %v640 = vld [vmem:[%s462 + $0x308] sm:$0xff]
        %v641 = vld [vmem:[%s462 + $0x310] sm:$0xff]
        %v642 = vld [vmem:[%s462 + $0x318] sm:$0xff]
        %v643 = vld [vmem:[%s462 + $0x320] sm:$0xff]
        %v644 = vld [vmem:[%s462 + $0x328] sm:$0xff]
        %v645 = vld [vmem:[%s462 + $0x330] sm:$0xff]
        %v646 = vld [vmem:[%s462 + $0x338] sm:$0xff]
        %v647 = vld [vmem:[%s462 + $0x340] sm:$0xff]
        %v648 = vld [vmem:[%s462 + $0x348] sm:$0xff]
        %v649 = vld [vmem:[%s462 + $0x350] sm:$0xff]
        %v650 = vld [vmem:[%s462 + $0x358] sm:$0xff]
        %v651 = vld [vmem:[%s462 + $0x360] sm:$0xff]
        %v652 = vld [vmem:[%s462 + $0x368] sm:$0xff]
        %v653 = vld [vmem:[%s462 + $0x370] sm:$0xff]
        %v654 = vld [vmem:[%s462 + $0x378] sm:$0xff]
        %v655 = vld [vmem:[%s462 + $0x380] sm:$0xff]
        %v656 = vld [vmem:[%s462 + $0x388] sm:$0xff]
        %v657 = vld [vmem:[%s462 + $0x390] sm:$0xff]
        %v658 = vld [vmem:[%s462 + $0x398] sm:$0xff]
        %v659 = vld [vmem:[%s462 + $0x3a0] sm:$0xff]
        %v660 = vld [vmem:[%s462 + $0x3a8] sm:$0xff]
        %v661 = vld [vmem:[%s462 + $0x3b0] sm:$0xff]
        %v662 = vld [vmem:[%s462 + $0x3b8] sm:$0xff]
        %v663 = vld [vmem:[%s462 + $0x3c0] sm:$0xff]
        %v664 = vld [vmem:[%s462 + $0x3c8] sm:$0xff]
        %v665 = vld [vmem:[%s462 + $0x3d0] sm:$0xff]
        %v666 = vld [vmem:[%s462 + $0x3d8] sm:$0xff]
        %v667 = vld [vmem:[%s462 + $0x3e0] sm:$0xff]
        %v668 = vld [vmem:[%s462 + $0x3e8] sm:$0xff]
        %v669 = vld [vmem:[%s462 + $0x3f0] sm:$0xff]
        %v670 = vld [vmem:[%s462 + $0x3f8] sm:$0xff]
        %v671 = vld [vmem:[%s2] sm:$0xff]
        %v672 = vld [vmem:[%s2 + $0x8] sm:$0xff]
        %v673 = vld [vmem:[%s2 + $0x10] sm:$0xff]
        %v674 = vld [vmem:[%s2 + $0x18] sm:$0xff]
        %v675 = vld [vmem:[%s2 + $0x20] sm:$0xff]
        %v676 = vld [vmem:[%s2 + $0x28] sm:$0xff]
        %v677 = vld [vmem:[%s2 + $0x30] sm:$0xff]
        %v678 = vld [vmem:[%s2 + $0x38] sm:$0xff]
        %680 = vset.pattern.permute.xlu0 0
        %681 = vperm.xlu0 %680, %v671
        %v682 = vpop.permute.xlu0 %681
        %685 = vset.pattern.permute.xlu0 0
        %686 = vperm.xlu0 %685, %v672
        %v687 = vpop.permute.xlu0 %686
        %690 = vset.pattern.permute.xlu0 0
        %691 = vperm.xlu0 %690, %v673
        %v692 = vpop.permute.xlu0 %691
        %695 = vset.pattern.permute.xlu0 0
        %696 = vperm.xlu0 %695, %v674
        %v697 = vpop.permute.xlu0 %696
        %700 = vset.pattern.permute.xlu0 0
        %701 = vperm.xlu0 %700, %v675
        %v702 = vpop.permute.xlu0 %701
        %705 = vset.pattern.permute.xlu0 0
        %706 = vperm.xlu0 %705, %v676
        %v707 = vpop.permute.xlu0 %706
        %710 = vset.pattern.permute.xlu0 0
        %711 = vperm.xlu0 %710, %v677
        %v712 = vpop.permute.xlu0 %711
        %715 = vset.pattern.permute.xlu0 0
        %716 = vperm.xlu0 %715, %v678
        %v717 = vpop.permute.xlu0 %716
        %v727 = vunpack.c.l.b16 %v493
        %v728 = vunpack.c.l.b16 %v494
        %v729 = vunpack.c.l.b16 %v495
        %v730 = vunpack.c.l.b16 %v496
        %v731 = vunpack.c.l.b16 %v497
        %v732 = vunpack.c.l.b16 %v498
        %v733 = vunpack.c.l.b16 %v499
        %v734 = vunpack.c.l.b16 %v500
        %v735 = vpack.c.b16 %v728, %v727
        %v736 = vpack.c.b16 %v730, %v729
        %v737 = vpack.c.b16 %v732, %v731
        %v738 = vpack.c.b16 %v734, %v733
        %v867 = vunpack.c.l.b16 %v543
        %v868 = vunpack.c.h.b16 %v543
        %v869 = vunpack.c.l.b16 %v544
        %v870 = vunpack.c.h.b16 %v544
        %v871 = vunpack.c.l.b16 %v545
        %v872 = vunpack.c.h.b16 %v545
        %v873 = vunpack.c.l.b16 %v546
        %v874 = vunpack.c.h.b16 %v546
        %v875 = vunpack.c.l.b16 %v547
        %v876 = vunpack.c.h.b16 %v547
        %v877 = vunpack.c.l.b16 %v548
        %v878 = vunpack.c.h.b16 %v548
        %v879 = vunpack.c.l.b16 %v549
        %v880 = vunpack.c.h.b16 %v549
        %v881 = vunpack.c.l.b16 %v550
        %v882 = vunpack.c.h.b16 %v550
        %v883 = vunpack.c.l.b16 %v551
        %v884 = vunpack.c.h.b16 %v551
        %v885 = vunpack.c.l.b16 %v552
        %v886 = vunpack.c.h.b16 %v552
        %v887 = vunpack.c.l.b16 %v553
        %v888 = vunpack.c.h.b16 %v553
        %v889 = vunpack.c.l.b16 %v554
        %v890 = vunpack.c.h.b16 %v554
        %v891 = vunpack.c.l.b16 %v555
        %v892 = vunpack.c.h.b16 %v555
        %v893 = vunpack.c.l.b16 %v556
        %v894 = vunpack.c.h.b16 %v556
        %v895 = vunpack.c.l.b16 %v557
        %v896 = vunpack.c.h.b16 %v557
        %v897 = vunpack.c.l.b16 %v558
        %v898 = vunpack.c.h.b16 %v558
        %v899 = vunpack.c.l.b16 %v559
        %v900 = vunpack.c.h.b16 %v559
        %v901 = vunpack.c.l.b16 %v560
        %v902 = vunpack.c.h.b16 %v560
        %v903 = vunpack.c.l.b16 %v561
        %v904 = vunpack.c.h.b16 %v561
        %v905 = vunpack.c.l.b16 %v562
        %v906 = vunpack.c.h.b16 %v562
        %v907 = vunpack.c.l.b16 %v563
        %v908 = vunpack.c.h.b16 %v563
        %v909 = vunpack.c.l.b16 %v564
        %v910 = vunpack.c.h.b16 %v564
        %v911 = vunpack.c.l.b16 %v565
        %v912 = vunpack.c.h.b16 %v565
        %v913 = vunpack.c.l.b16 %v566
        %v914 = vunpack.c.h.b16 %v566
        %v915 = vunpack.c.l.b16 %v567
        %v916 = vunpack.c.h.b16 %v567
        %v917 = vunpack.c.l.b16 %v568
        %v918 = vunpack.c.h.b16 %v568
        %v919 = vunpack.c.l.b16 %v569
        %v920 = vunpack.c.h.b16 %v569
        %v921 = vunpack.c.l.b16 %v570
        %v922 = vunpack.c.h.b16 %v570
        %v923 = vunpack.c.l.b16 %v571
        %v924 = vunpack.c.h.b16 %v571
        %v925 = vunpack.c.l.b16 %v572
        %v926 = vunpack.c.h.b16 %v572
        %v927 = vunpack.c.l.b16 %v573
        %v928 = vunpack.c.h.b16 %v573
        %v929 = vunpack.c.l.b16 %v574
        %v930 = vunpack.c.h.b16 %v574
        %v931 = vunpack.c.l.b16 %v575
        %v932 = vunpack.c.h.b16 %v575
        %v933 = vunpack.c.l.b16 %v576
        %v934 = vunpack.c.h.b16 %v576
        %v935 = vunpack.c.l.b16 %v577
        %v936 = vunpack.c.h.b16 %v577
        %v937 = vunpack.c.l.b16 %v578
        %v938 = vunpack.c.h.b16 %v578
        %v939 = vunpack.c.l.b16 %v579
        %v940 = vunpack.c.h.b16 %v579
        %v941 = vunpack.c.l.b16 %v580
        %v942 = vunpack.c.h.b16 %v580
        %v943 = vunpack.c.l.b16 %v581
        %v944 = vunpack.c.h.b16 %v581
        %v945 = vunpack.c.l.b16 %v582
        %v946 = vunpack.c.h.b16 %v582
        %v947 = vunpack.c.l.b16 %v583
        %v948 = vunpack.c.h.b16 %v583
        %v949 = vunpack.c.l.b16 %v584
        %v950 = vunpack.c.h.b16 %v584
        %v951 = vunpack.c.l.b16 %v585
        %v952 = vunpack.c.h.b16 %v585
        %v953 = vunpack.c.l.b16 %v586
        %v954 = vunpack.c.h.b16 %v586
        %v955 = vunpack.c.l.b16 %v587
        %v956 = vunpack.c.h.b16 %v587
        %v957 = vunpack.c.l.b16 %v588
        %v958 = vunpack.c.h.b16 %v588
        %v959 = vunpack.c.l.b16 %v589
        %v960 = vunpack.c.h.b16 %v589
        %v961 = vunpack.c.l.b16 %v590
        %v962 = vunpack.c.h.b16 %v590
        %v963 = vunpack.c.l.b16 %v591
        %v964 = vunpack.c.h.b16 %v591
        %v965 = vunpack.c.l.b16 %v592
        %v966 = vunpack.c.h.b16 %v592
        %v967 = vunpack.c.l.b16 %v593
        %v968 = vunpack.c.h.b16 %v593
        %v969 = vunpack.c.l.b16 %v594
        %v970 = vunpack.c.h.b16 %v594
        %v971 = vunpack.c.l.b16 %v595
        %v972 = vunpack.c.h.b16 %v595
        %v973 = vunpack.c.l.b16 %v596
        %v974 = vunpack.c.h.b16 %v596
        %v975 = vunpack.c.l.b16 %v597
        %v976 = vunpack.c.h.b16 %v597
        %v977 = vunpack.c.l.b16 %v598
        %v978 = vunpack.c.h.b16 %v598
        %v979 = vunpack.c.l.b16 %v599
        %v980 = vunpack.c.h.b16 %v599
        %v981 = vunpack.c.l.b16 %v600
        %v982 = vunpack.c.h.b16 %v600
        %v983 = vunpack.c.l.b16 %v601
        %v984 = vunpack.c.h.b16 %v601
        %v985 = vunpack.c.l.b16 %v602
        %v986 = vunpack.c.h.b16 %v602
        %v987 = vunpack.c.l.b16 %v603
        %v988 = vunpack.c.h.b16 %v603
        %v989 = vunpack.c.l.b16 %v604
        %v990 = vunpack.c.h.b16 %v604
        %v991 = vunpack.c.l.b16 %v605
        %v992 = vunpack.c.h.b16 %v605
        %v993 = vunpack.c.l.b16 %v606
        %v994 = vunpack.c.h.b16 %v606
        %v995 = vunpack.c.l.b16 %v607
        %v996 = vunpack.c.h.b16 %v607
        %v997 = vunpack.c.l.b16 %v608
        %v998 = vunpack.c.h.b16 %v608
        %v999 = vunpack.c.l.b16 %v609
        %v1000 = vunpack.c.h.b16 %v609
        %v1001 = vunpack.c.l.b16 %v610
        %v1002 = vunpack.c.h.b16 %v610
        %v1003 = vunpack.c.l.b16 %v611
        %v1004 = vunpack.c.h.b16 %v611
        %v1005 = vunpack.c.l.b16 %v612
        %v1006 = vunpack.c.h.b16 %v612
        %v1007 = vunpack.c.l.b16 %v613
        %v1008 = vunpack.c.h.b16 %v613
        %v1009 = vunpack.c.l.b16 %v614
        %v1010 = vunpack.c.h.b16 %v614
        %v1011 = vunpack.c.l.b16 %v615
        %v1012 = vunpack.c.h.b16 %v615
        %v1013 = vunpack.c.l.b16 %v616
        %v1014 = vunpack.c.h.b16 %v616
        %v1015 = vunpack.c.l.b16 %v617
        %v1016 = vunpack.c.h.b16 %v617
        %v1017 = vunpack.c.l.b16 %v618
        %v1018 = vunpack.c.h.b16 %v618
        %v1019 = vunpack.c.l.b16 %v619
        %v1020 = vunpack.c.h.b16 %v619
        %v1021 = vunpack.c.l.b16 %v620
        %v1022 = vunpack.c.h.b16 %v620
        %v1023 = vunpack.c.l.b16 %v621
        %v1024 = vunpack.c.h.b16 %v621
        %v1025 = vunpack.c.l.b16 %v622
        %v1026 = vunpack.c.h.b16 %v622
        %v1027 = vunpack.c.l.b16 %v623
        %v1028 = vunpack.c.h.b16 %v623
        %v1029 = vunpack.c.l.b16 %v624
        %v1030 = vunpack.c.h.b16 %v624
        %v1031 = vunpack.c.l.b16 %v625
        %v1032 = vunpack.c.h.b16 %v625
        %v1033 = vunpack.c.l.b16 %v626
        %v1034 = vunpack.c.h.b16 %v626
        %v1035 = vunpack.c.l.b16 %v627
        %v1036 = vunpack.c.h.b16 %v627
        %v1037 = vunpack.c.l.b16 %v628
        %v1038 = vunpack.c.h.b16 %v628
        %v1039 = vunpack.c.l.b16 %v629
        %v1040 = vunpack.c.h.b16 %v629
        %v1041 = vunpack.c.l.b16 %v630
        %v1042 = vunpack.c.h.b16 %v630
        %v1043 = vunpack.c.l.b16 %v631
        %v1044 = vunpack.c.h.b16 %v631
        %v1045 = vunpack.c.l.b16 %v632
        %v1046 = vunpack.c.h.b16 %v632
        %v1047 = vunpack.c.l.b16 %v633
        %v1048 = vunpack.c.h.b16 %v633
        %v1049 = vunpack.c.l.b16 %v634
        %v1050 = vunpack.c.h.b16 %v634
        %v1051 = vunpack.c.l.b16 %v635
        %v1052 = vunpack.c.h.b16 %v635
        %v1053 = vunpack.c.l.b16 %v636
        %v1054 = vunpack.c.h.b16 %v636
        %v1055 = vunpack.c.l.b16 %v637
        %v1056 = vunpack.c.h.b16 %v637
        %v1057 = vunpack.c.l.b16 %v638
        %v1058 = vunpack.c.h.b16 %v638
        %v1059 = vunpack.c.l.b16 %v639
        %v1060 = vunpack.c.h.b16 %v639
        %v1061 = vunpack.c.l.b16 %v640
        %v1062 = vunpack.c.h.b16 %v640
        %v1063 = vunpack.c.l.b16 %v641
        %v1064 = vunpack.c.h.b16 %v641
        %v1065 = vunpack.c.l.b16 %v642
        %v1066 = vunpack.c.h.b16 %v642
        %v1067 = vunpack.c.l.b16 %v643
        %v1068 = vunpack.c.h.b16 %v643
        %v1069 = vunpack.c.l.b16 %v644
        %v1070 = vunpack.c.h.b16 %v644
        %v1071 = vunpack.c.l.b16 %v645
        %v1072 = vunpack.c.h.b16 %v645
        %v1073 = vunpack.c.l.b16 %v646
        %v1074 = vunpack.c.h.b16 %v646
        %v1075 = vunpack.c.l.b16 %v647
        %v1076 = vunpack.c.h.b16 %v647
        %v1077 = vunpack.c.l.b16 %v648
        %v1078 = vunpack.c.h.b16 %v648
        %v1079 = vunpack.c.l.b16 %v649
        %v1080 = vunpack.c.h.b16 %v649
        %v1081 = vunpack.c.l.b16 %v650
        %v1082 = vunpack.c.h.b16 %v650
        %v1083 = vunpack.c.l.b16 %v651
        %v1084 = vunpack.c.h.b16 %v651
        %v1085 = vunpack.c.l.b16 %v652
        %v1086 = vunpack.c.h.b16 %v652
        %v1087 = vunpack.c.l.b16 %v653
        %v1088 = vunpack.c.h.b16 %v653
        %v1089 = vunpack.c.l.b16 %v654
        %v1090 = vunpack.c.h.b16 %v654
        %v1091 = vunpack.c.l.b16 %v655
        %v1092 = vunpack.c.h.b16 %v655
        %v1093 = vunpack.c.l.b16 %v656
        %v1094 = vunpack.c.h.b16 %v656
        %v1095 = vunpack.c.l.b16 %v657
        %v1096 = vunpack.c.h.b16 %v657
        %v1097 = vunpack.c.l.b16 %v658
        %v1098 = vunpack.c.h.b16 %v658
        %v1099 = vunpack.c.l.b16 %v659
        %v1100 = vunpack.c.h.b16 %v659
        %v1101 = vunpack.c.l.b16 %v660
        %v1102 = vunpack.c.h.b16 %v660
        %v1103 = vunpack.c.l.b16 %v661
        %v1104 = vunpack.c.h.b16 %v661
        %v1105 = vunpack.c.l.b16 %v662
        %v1106 = vunpack.c.h.b16 %v662
        %v1107 = vunpack.c.l.b16 %v663
        %v1108 = vunpack.c.h.b16 %v663
        %v1109 = vunpack.c.l.b16 %v664
        %v1110 = vunpack.c.h.b16 %v664
        %v1111 = vunpack.c.l.b16 %v665
        %v1112 = vunpack.c.h.b16 %v665
        %v1113 = vunpack.c.l.b16 %v666
        %v1114 = vunpack.c.h.b16 %v666
        %v1115 = vunpack.c.l.b16 %v667
        %v1116 = vunpack.c.h.b16 %v667
        %v1117 = vunpack.c.l.b16 %v668
        %v1118 = vunpack.c.h.b16 %v668
        %v1119 = vunpack.c.l.b16 %v669
        %v1120 = vunpack.c.h.b16 %v669
        %v1121 = vunpack.c.l.b16 %v670
        %v1122 = vunpack.c.h.b16 %v670
        %v1123 = vpack.c.b16 %v899, %v867
        %v1124 = vpack.c.b16 %v900, %v868
        %v1125 = vpack.c.b16 %v901, %v869
        %v1126 = vpack.c.b16 %v902, %v870
        %v1127 = vpack.c.b16 %v903, %v871
        %v1128 = vpack.c.b16 %v904, %v872
        %v1129 = vpack.c.b16 %v905, %v873
        %v1130 = vpack.c.b16 %v906, %v874
        %v1131 = vpack.c.b16 %v907, %v875
        %v1132 = vpack.c.b16 %v908, %v876
        %v1133 = vpack.c.b16 %v909, %v877
        %v1134 = vpack.c.b16 %v910, %v878
        %v1135 = vpack.c.b16 %v911, %v879
        %v1136 = vpack.c.b16 %v912, %v880
        %v1137 = vpack.c.b16 %v913, %v881
        %v1138 = vpack.c.b16 %v914, %v882
        %v1139 = vpack.c.b16 %v915, %v883
        %v1140 = vpack.c.b16 %v916, %v884
        %v1141 = vpack.c.b16 %v917, %v885
        %v1142 = vpack.c.b16 %v918, %v886
        %v1143 = vpack.c.b16 %v919, %v887
        %v1144 = vpack.c.b16 %v920, %v888
        %v1145 = vpack.c.b16 %v921, %v889
        %v1146 = vpack.c.b16 %v922, %v890
        %v1147 = vpack.c.b16 %v923, %v891
        %v1148 = vpack.c.b16 %v924, %v892
        %v1149 = vpack.c.b16 %v925, %v893
        %v1150 = vpack.c.b16 %v926, %v894
        %v1151 = vpack.c.b16 %v927, %v895
        %v1152 = vpack.c.b16 %v928, %v896
        %v1153 = vpack.c.b16 %v929, %v897
        %v1154 = vpack.c.b16 %v930, %v898
        %v1155 = vpack.c.b16 %v963, %v931
        %v1156 = vpack.c.b16 %v964, %v932
        %v1157 = vpack.c.b16 %v965, %v933
        %v1158 = vpack.c.b16 %v966, %v934
        %v1159 = vpack.c.b16 %v967, %v935
        %v1160 = vpack.c.b16 %v968, %v936
        %v1161 = vpack.c.b16 %v969, %v937
        %v1162 = vpack.c.b16 %v970, %v938
        %v1163 = vpack.c.b16 %v971, %v939
        %v1164 = vpack.c.b16 %v972, %v940
        %v1165 = vpack.c.b16 %v973, %v941
        %v1166 = vpack.c.b16 %v974, %v942
        %v1167 = vpack.c.b16 %v975, %v943
        %v1168 = vpack.c.b16 %v976, %v944
        %v1169 = vpack.c.b16 %v977, %v945
        %v1170 = vpack.c.b16 %v978, %v946
        %v1171 = vpack.c.b16 %v979, %v947
        %v1172 = vpack.c.b16 %v980, %v948
        %v1173 = vpack.c.b16 %v981, %v949
        %v1174 = vpack.c.b16 %v982, %v950
        %v1175 = vpack.c.b16 %v983, %v951
        %v1176 = vpack.c.b16 %v984, %v952
        %v1177 = vpack.c.b16 %v985, %v953
        %v1178 = vpack.c.b16 %v986, %v954
        %v1179 = vpack.c.b16 %v987, %v955
        %v1180 = vpack.c.b16 %v988, %v956
        %v1181 = vpack.c.b16 %v989, %v957
        %v1182 = vpack.c.b16 %v990, %v958
        %v1183 = vpack.c.b16 %v991, %v959
        %v1184 = vpack.c.b16 %v992, %v960
        %v1185 = vpack.c.b16 %v993, %v961
        %v1186 = vpack.c.b16 %v994, %v962
        %v1187 = vpack.c.b16 %v1027, %v995
        %v1188 = vpack.c.b16 %v1028, %v996
        %v1189 = vpack.c.b16 %v1029, %v997
        %v1190 = vpack.c.b16 %v1030, %v998
        %v1191 = vpack.c.b16 %v1031, %v999
        %v1192 = vpack.c.b16 %v1032, %v1000
        %v1193 = vpack.c.b16 %v1033, %v1001
        %v1194 = vpack.c.b16 %v1034, %v1002
        %v1195 = vpack.c.b16 %v1035, %v1003
        %v1196 = vpack.c.b16 %v1036, %v1004
        %v1197 = vpack.c.b16 %v1037, %v1005
        %v1198 = vpack.c.b16 %v1038, %v1006
        %v1199 = vpack.c.b16 %v1039, %v1007
        %v1200 = vpack.c.b16 %v1040, %v1008
        %v1201 = vpack.c.b16 %v1041, %v1009
        %v1202 = vpack.c.b16 %v1042, %v1010
        %v1203 = vpack.c.b16 %v1043, %v1011
        %v1204 = vpack.c.b16 %v1044, %v1012
        %v1205 = vpack.c.b16 %v1045, %v1013
        %v1206 = vpack.c.b16 %v1046, %v1014
        %v1207 = vpack.c.b16 %v1047, %v1015
        %v1208 = vpack.c.b16 %v1048, %v1016
        %v1209 = vpack.c.b16 %v1049, %v1017
        %v1210 = vpack.c.b16 %v1050, %v1018
        %v1211 = vpack.c.b16 %v1051, %v1019
        %v1212 = vpack.c.b16 %v1052, %v1020
        %v1213 = vpack.c.b16 %v1053, %v1021
        %v1214 = vpack.c.b16 %v1054, %v1022
        %v1215 = vpack.c.b16 %v1055, %v1023
        %v1216 = vpack.c.b16 %v1056, %v1024
        %v1217 = vpack.c.b16 %v1057, %v1025
        %v1218 = vpack.c.b16 %v1058, %v1026
        %v1219 = vpack.c.b16 %v1091, %v1059
        %v1220 = vpack.c.b16 %v1092, %v1060
        %v1221 = vpack.c.b16 %v1093, %v1061
        %v1222 = vpack.c.b16 %v1094, %v1062
        %v1223 = vpack.c.b16 %v1095, %v1063
        %v1224 = vpack.c.b16 %v1096, %v1064
        %v1225 = vpack.c.b16 %v1097, %v1065
        %v1226 = vpack.c.b16 %v1098, %v1066
        %v1227 = vpack.c.b16 %v1099, %v1067
        %v1228 = vpack.c.b16 %v1100, %v1068
        %v1229 = vpack.c.b16 %v1101, %v1069
        %v1230 = vpack.c.b16 %v1102, %v1070
        %v1231 = vpack.c.b16 %v1103, %v1071
        %v1232 = vpack.c.b16 %v1104, %v1072
        %v1233 = vpack.c.b16 %v1105, %v1073
        %v1234 = vpack.c.b16 %v1106, %v1074
        %v1235 = vpack.c.b16 %v1107, %v1075
        %v1236 = vpack.c.b16 %v1108, %v1076
        %v1237 = vpack.c.b16 %v1109, %v1077
        %v1238 = vpack.c.b16 %v1110, %v1078
        %v1239 = vpack.c.b16 %v1111, %v1079
        %v1240 = vpack.c.b16 %v1112, %v1080
        %v1241 = vpack.c.b16 %v1113, %v1081
        %v1242 = vpack.c.b16 %v1114, %v1082
        %v1243 = vpack.c.b16 %v1115, %v1083
        %v1244 = vpack.c.b16 %v1116, %v1084
        %v1245 = vpack.c.b16 %v1117, %v1085
        %v1246 = vpack.c.b16 %v1118, %v1086
        %v1247 = vpack.c.b16 %v1119, %v1087
        %v1248 = vpack.c.b16 %v1120, %v1088
        %v1249 = vpack.c.b16 %v1121, %v1089
        %v1250 = vpack.c.b16 %v1122, %v1090
        %vm1379 = vcmask 523264
        %v1381 = vsel %vm1379, %v735, 0
        %v1384 = vsel %vm1379, %v736, 0
        %v1387 = vsel %vm1379, %v737, 0
        %v1390 = vsel %vm1379, %v738, 0
        %1392 = vmatpush.bf16.msra.mxu0 0
        %1393 = vmatpush.bf16.msra.mxu0 0
        %1394 = vmatpush.bf16.msra.mxu0 0
        %1395 = vmatpush.bf16.msra.mxu0 0
        %1396 = vmatpush.bf16.msra.mxu0 %v1219
        %1397 = vmatpush.bf16.msra.mxu0 %v1187
        %1398 = vmatpush.bf16.msra.mxu0 %v1155
        %1399 = vmatpush.bf16.msra.mxu0 %v1123
        %1400 = vmatmul.bf16.gmra.mxu0 %v1381
        %v1401 = vpop.f32.mrf.mxu0
        %v1402 = vadd.f32 %v682, %v1401
        %v1403 = vpop.f32.mrf.mxu0
        %v1404 = vadd.f32 %v687, %v1403
        %1405 = vmatmul.bf16.gmra.mxu0 %v1384
        %v1406 = vpop.f32.mrf.mxu0
        %v1407 = vadd.f32 %v692, %v1406
        %v1408 = vpop.f32.mrf.mxu0
        %v1409 = vadd.f32 %v697, %v1408
        %1410 = vmatmul.bf16.gmra.mxu0 %v1387
        %v1411 = vpop.f32.mrf.mxu0
        %v1412 = vadd.f32 %v702, %v1411
        %v1413 = vpop.f32.mrf.mxu0
        %v1414 = vadd.f32 %v707, %v1413
        %1415 = vmatmul.bf16.gmra.mxu0 %v1390
        %v1416 = vpop.f32.mrf.mxu0
        %v1417 = vadd.f32 %v712, %v1416
        %v1418 = vpop.f32.mrf.mxu0
        %v1419 = vadd.f32 %v717, %v1418
        %1420 = vdwg.mxu0
        %1421 = vmatpush.bf16.msra.mxu0 0
        %1422 = vmatpush.bf16.msra.mxu0 0
        %1423 = vmatpush.bf16.msra.mxu0 0
        %1424 = vmatpush.bf16.msra.mxu0 0
        %1425 = vmatpush.bf16.msra.mxu0 %v1220
        %1426 = vmatpush.bf16.msra.mxu0 %v1188
        %1427 = vmatpush.bf16.msra.mxu0 %v1156
        %1428 = vmatpush.bf16.msra.mxu0 %v1124
        %1429 = vmatmul.bf16.gmra.mxu0 %v1381
        %v1430 = vpop.f32.mrf.mxu0
        %v1431 = vadd.f32 %v682, %v1430
        %v1432 = vpop.f32.mrf.mxu0
        %v1433 = vadd.f32 %v687, %v1432
        %1434 = vmatmul.bf16.gmra.mxu0 %v1384
        %v1435 = vpop.f32.mrf.mxu0
        %v1436 = vadd.f32 %v692, %v1435
        %v1437 = vpop.f32.mrf.mxu0
        %v1438 = vadd.f32 %v697, %v1437
        %1439 = vmatmul.bf16.gmra.mxu0 %v1387
        %v1440 = vpop.f32.mrf.mxu0
        %v1441 = vadd.f32 %v702, %v1440
        %v1442 = vpop.f32.mrf.mxu0
        %v1443 = vadd.f32 %v707, %v1442
        %1444 = vmatmul.bf16.gmra.mxu0 %v1390
        %v1445 = vpop.f32.mrf.mxu0
        %v1446 = vadd.f32 %v712, %v1445
        %v1447 = vpop.f32.mrf.mxu0
        %v1448 = vadd.f32 %v717, %v1447
        %1449 = vdwg.mxu0
        %1450 = vmatpush.bf16.msra.mxu0 0
        %1451 = vmatpush.bf16.msra.mxu0 0
        %1452 = vmatpush.bf16.msra.mxu0 0
        %1453 = vmatpush.bf16.msra.mxu0 0
        %1454 = vmatpush.bf16.msra.mxu0 %v1221
        %1455 = vmatpush.bf16.msra.mxu0 %v1189
        %1456 = vmatpush.bf16.msra.mxu0 %v1157
        %1457 = vmatpush.bf16.msra.mxu0 %v1125
        %1458 = vmatmul.bf16.gmra.mxu0 %v1381
        %v1459 = vpop.f32.mrf.mxu0
        %v1460 = vadd.f32 %v682, %v1459
        %v1461 = vpop.f32.mrf.mxu0
        %v1462 = vadd.f32 %v687, %v1461
        %1463 = vmatmul.bf16.gmra.mxu0 %v1384
        %v1464 = vpop.f32.mrf.mxu0
        %v1465 = vadd.f32 %v692, %v1464
        %v1466 = vpop.f32.mrf.mxu0
        %v1467 = vadd.f32 %v697, %v1466
        %1468 = vmatmul.bf16.gmra.mxu0 %v1387
        %v1469 = vpop.f32.mrf.mxu0
        %v1470 = vadd.f32 %v702, %v1469
        %v1471 = vpop.f32.mrf.mxu0
        %v1472 = vadd.f32 %v707, %v1471
        %1473 = vmatmul.bf16.gmra.mxu0 %v1390
        %v1474 = vpop.f32.mrf.mxu0
        %v1475 = vadd.f32 %v712, %v1474
        %v1476 = vpop.f32.mrf.mxu0
        %v1477 = vadd.f32 %v717, %v1476
        %1478 = vdwg.mxu0
        %1479 = vmatpush.bf16.msra.mxu0 0
        %1480 = vmatpush.bf16.msra.mxu0 0
        %1481 = vmatpush.bf16.msra.mxu0 0
        %1482 = vmatpush.bf16.msra.mxu0 0
        %1483 = vmatpush.bf16.msra.mxu0 %v1222
        %1484 = vmatpush.bf16.msra.mxu0 %v1190
        %1485 = vmatpush.bf16.msra.mxu0 %v1158
        %1486 = vmatpush.bf16.msra.mxu0 %v1126
        %1487 = vmatmul.bf16.gmra.mxu0 %v1381
        %v1488 = vpop.f32.mrf.mxu0
        %v1489 = vadd.f32 %v682, %v1488
        %v1490 = vpop.f32.mrf.mxu0
        %v1491 = vadd.f32 %v687, %v1490
        %1492 = vmatmul.bf16.gmra.mxu0 %v1384
        %v1493 = vpop.f32.mrf.mxu0
        %v1494 = vadd.f32 %v692, %v1493
        %v1495 = vpop.f32.mrf.mxu0
        %v1496 = vadd.f32 %v697, %v1495
        %1497 = vmatmul.bf16.gmra.mxu0 %v1387
        %v1498 = vpop.f32.mrf.mxu0
        %v1499 = vadd.f32 %v702, %v1498
        %v1500 = vpop.f32.mrf.mxu0
        %v1501 = vadd.f32 %v707, %v1500
        %1502 = vmatmul.bf16.gmra.mxu0 %v1390
        %v1503 = vpop.f32.mrf.mxu0
        %v1504 = vadd.f32 %v712, %v1503
        %v1505 = vpop.f32.mrf.mxu0
        %v1506 = vadd.f32 %v717, %v1505
        %1507 = vdwg.mxu0
        %1508 = vmatpush.bf16.msra.mxu0 0
        %1509 = vmatpush.bf16.msra.mxu0 0
        %1510 = vmatpush.bf16.msra.mxu0 0
        %1511 = vmatpush.bf16.msra.mxu0 0
        %1512 = vmatpush.bf16.msra.mxu0 %v1223
        %1513 = vmatpush.bf16.msra.mxu0 %v1191
        %1514 = vmatpush.bf16.msra.mxu0 %v1159
        %1515 = vmatpush.bf16.msra.mxu0 %v1127
        %1516 = vmatmul.bf16.gmra.mxu0 %v1381
        %v1517 = vpop.f32.mrf.mxu0
        %v1518 = vadd.f32 %v682, %v1517
        %v1519 = vpop.f32.mrf.mxu0
        %v1520 = vadd.f32 %v687, %v1519
        %1521 = vmatmul.bf16.gmra.mxu0 %v1384
        %v1522 = vpop.f32.mrf.mxu0
        %v1523 = vadd.f32 %v692, %v1522
        %v1524 = vpop.f32.mrf.mxu0
        %v1525 = vadd.f32 %v697, %v1524
        %1526 = vmatmul.bf16.gmra.mxu0 %v1387
        %v1527 = vpop.f32.mrf.mxu0
        %v1528 = vadd.f32 %v702, %v1527
        %v1529 = vpop.f32.mrf.mxu0
        %v1530 = vadd.f32 %v707, %v1529
        %1531 = vmatmul.bf16.gmra.mxu0 %v1390
        %v1532 = vpop.f32.mrf.mxu0
        %v1533 = vadd.f32 %v712, %v1532
        %v1534 = vpop.f32.mrf.mxu0
        %v1535 = vadd.f32 %v717, %v1534
        %1536 = vdwg.mxu0
        %1537 = vmatpush.bf16.msra.mxu0 0
        %1538 = vmatpush.bf16.msra.mxu0 0
        %1539 = vmatpush.bf16.msra.mxu0 0
        %1540 = vmatpush.bf16.msra.mxu0 0
        %1541 = vmatpush.bf16.msra.mxu0 %v1224
        %1542 = vmatpush.bf16.msra.mxu0 %v1192
        %1543 = vmatpush.bf16.msra.mxu0 %v1160
        %1544 = vmatpush.bf16.msra.mxu0 %v1128
        %1545 = vmatmul.bf16.gmra.mxu0 %v1381
        %v1546 = vpop.f32.mrf.mxu0
        %v1547 = vadd.f32 %v682, %v1546
        %v1548 = vpop.f32.mrf.mxu0
        %v1549 = vadd.f32 %v687, %v1548
        %1550 = vmatmul.bf16.gmra.mxu0 %v1384
        %v1551 = vpop.f32.mrf.mxu0
        %v1552 = vadd.f32 %v692, %v1551
        %v1553 = vpop.f32.mrf.mxu0
        %v1554 = vadd.f32 %v697, %v1553
        %1555 = vmatmul.bf16.gmra.mxu0 %v1387
        %v1556 = vpop.f32.mrf.mxu0
        %v1557 = vadd.f32 %v702, %v1556
        %v1558 = vpop.f32.mrf.mxu0
        %v1559 = vadd.f32 %v707, %v1558
        %1560 = vmatmul.bf16.gmra.mxu0 %v1390
        %v1561 = vpop.f32.mrf.mxu0
        %v1562 = vadd.f32 %v712, %v1561
        %v1563 = vpop.f32.mrf.mxu0
        %v1564 = vadd.f32 %v717, %v1563
        %1565 = vdwg.mxu0
        %1566 = vmatpush.bf16.msra.mxu0 0
        %1567 = vmatpush.bf16.msra.mxu0 0
        %1568 = vmatpush.bf16.msra.mxu0 0
        %1569 = vmatpush.bf16.msra.mxu0 0
        %1570 = vmatpush.bf16.msra.mxu0 %v1225
        %1571 = vmatpush.bf16.msra.mxu0 %v1193
        %1572 = vmatpush.bf16.msra.mxu0 %v1161
        %1573 = vmatpush.bf16.msra.mxu0 %v1129
        %1574 = vmatmul.bf16.gmra.mxu0 %v1381
        %v1575 = vpop.f32.mrf.mxu0
        %v1576 = vadd.f32 %v682, %v1575
        %v1577 = vpop.f32.mrf.mxu0
        %v1578 = vadd.f32 %v687, %v1577
        %1579 = vmatmul.bf16.gmra.mxu0 %v1384
        %v1580 = vpop.f32.mrf.mxu0
        %v1581 = vadd.f32 %v692, %v1580
        %v1582 = vpop.f32.mrf.mxu0
        %v1583 = vadd.f32 %v697, %v1582
        %1584 = vmatmul.bf16.gmra.mxu0 %v1387
        %v1585 = vpop.f32.mrf.mxu0
        %v1586 = vadd.f32 %v702, %v1585
        %v1587 = vpop.f32.mrf.mxu0
        %v1588 = vadd.f32 %v707, %v1587
        %1589 = vmatmul.bf16.gmra.mxu0 %v1390
        %v1590 = vpop.f32.mrf.mxu0
        %v1591 = vadd.f32 %v712, %v1590
        %v1592 = vpop.f32.mrf.mxu0
        %v1593 = vadd.f32 %v717, %v1592
        %1594 = vdwg.mxu0
        %1595 = vmatpush.bf16.msra.mxu0 0
        %1596 = vmatpush.bf16.msra.mxu0 0
        %1597 = vmatpush.bf16.msra.mxu0 0
        %1598 = vmatpush.bf16.msra.mxu0 0
        %1599 = vmatpush.bf16.msra.mxu0 %v1226
        %1600 = vmatpush.bf16.msra.mxu0 %v1194
        %1601 = vmatpush.bf16.msra.mxu0 %v1162
        %1602 = vmatpush.bf16.msra.mxu0 %v1130
        %1603 = vmatmul.bf16.gmra.mxu0 %v1381
        %v1604 = vpop.f32.mrf.mxu0
        %v1605 = vadd.f32 %v682, %v1604
        %v1606 = vpop.f32.mrf.mxu0
        %v1607 = vadd.f32 %v687, %v1606
        %1608 = vmatmul.bf16.gmra.mxu0 %v1384
        %v1609 = vpop.f32.mrf.mxu0
        %v1610 = vadd.f32 %v692, %v1609
        %v1611 = vpop.f32.mrf.mxu0
        %v1612 = vadd.f32 %v697, %v1611
        %1613 = vmatmul.bf16.gmra.mxu0 %v1387
        %v1614 = vpop.f32.mrf.mxu0
        %v1615 = vadd.f32 %v702, %v1614
        %v1616 = vpop.f32.mrf.mxu0
        %v1617 = vadd.f32 %v707, %v1616
        %1618 = vmatmul.bf16.gmra.mxu0 %v1390
        %v1619 = vpop.f32.mrf.mxu0
        %v1620 = vadd.f32 %v712, %v1619
        %v1621 = vpop.f32.mrf.mxu0
        %v1622 = vadd.f32 %v717, %v1621
        %1623 = vdwg.mxu0
        %1624 = vmatpush.bf16.msra.mxu0 0
        %1625 = vmatpush.bf16.msra.mxu0 0
        %1626 = vmatpush.bf16.msra.mxu0 0
        %1627 = vmatpush.bf16.msra.mxu0 0
        %1628 = vmatpush.bf16.msra.mxu0 %v1227
        %1629 = vmatpush.bf16.msra.mxu0 %v1195
        %1630 = vmatpush.bf16.msra.mxu0 %v1163
        %1631 = vmatpush.bf16.msra.mxu0 %v1131
        %1632 = vmatmul.bf16.gmra.mxu0 %v1381
        %v1633 = vpop.f32.mrf.mxu0
        %v1634 = vadd.f32 %v682, %v1633
        %v1635 = vpop.f32.mrf.mxu0
        %v1636 = vadd.f32 %v687, %v1635
        %1637 = vmatmul.bf16.gmra.mxu0 %v1384
        %v1638 = vpop.f32.mrf.mxu0
        %v1639 = vadd.f32 %v692, %v1638
        %v1640 = vpop.f32.mrf.mxu0
        %v1641 = vadd.f32 %v697, %v1640
        %1642 = vmatmul.bf16.gmra.mxu0 %v1387
        %v1643 = vpop.f32.mrf.mxu0
        %v1644 = vadd.f32 %v702, %v1643
        %v1645 = vpop.f32.mrf.mxu0
        %v1646 = vadd.f32 %v707, %v1645
        %1647 = vmatmul.bf16.gmra.mxu0 %v1390
        %v1648 = vpop.f32.mrf.mxu0
        %v1649 = vadd.f32 %v712, %v1648
        %v1650 = vpop.f32.mrf.mxu0
        %v1651 = vadd.f32 %v717, %v1650
        %1652 = vdwg.mxu0
        %1653 = vmatpush.bf16.msra.mxu0 0
        %1654 = vmatpush.bf16.msra.mxu0 0
        %1655 = vmatpush.bf16.msra.mxu0 0
        %1656 = vmatpush.bf16.msra.mxu0 0
        %1657 = vmatpush.bf16.msra.mxu0 %v1228
        %1658 = vmatpush.bf16.msra.mxu0 %v1196
        %1659 = vmatpush.bf16.msra.mxu0 %v1164
        %1660 = vmatpush.bf16.msra.mxu0 %v1132
        %1661 = vmatmul.bf16.gmra.mxu0 %v1381
        %v1662 = vpop.f32.mrf.mxu0
        %v1663 = vadd.f32 %v682, %v1662
        %v1664 = vpop.f32.mrf.mxu0
        %v1665 = vadd.f32 %v687, %v1664
        %1666 = vmatmul.bf16.gmra.mxu0 %v1384
        %v1667 = vpop.f32.mrf.mxu0
        %v1668 = vadd.f32 %v692, %v1667
        %v1669 = vpop.f32.mrf.mxu0
        %v1670 = vadd.f32 %v697, %v1669
        %1671 = vmatmul.bf16.gmra.mxu0 %v1387
        %v1672 = vpop.f32.mrf.mxu0
        %v1673 = vadd.f32 %v702, %v1672
        %v1674 = vpop.f32.mrf.mxu0
        %v1675 = vadd.f32 %v707, %v1674
        %1676 = vmatmul.bf16.gmra.mxu0 %v1390
        %v1677 = vpop.f32.mrf.mxu0
        %v1678 = vadd.f32 %v712, %v1677
        %v1679 = vpop.f32.mrf.mxu0
        %v1680 = vadd.f32 %v717, %v1679
        %1681 = vdwg.mxu0
        %1682 = vmatpush.bf16.msra.mxu0 0
        %1683 = vmatpush.bf16.msra.mxu0 0
        %1684 = vmatpush.bf16.msra.mxu0 0
        %1685 = vmatpush.bf16.msra.mxu0 0
        %1686 = vmatpush.bf16.msra.mxu0 %v1229
        %1687 = vmatpush.bf16.msra.mxu0 %v1197
        %1688 = vmatpush.bf16.msra.mxu0 %v1165
        %1689 = vmatpush.bf16.msra.mxu0 %v1133
        %1690 = vmatmul.bf16.gmra.mxu0 %v1381
        %v1691 = vpop.f32.mrf.mxu0
        %v1692 = vadd.f32 %v682, %v1691
        %v1693 = vpop.f32.mrf.mxu0
        %v1694 = vadd.f32 %v687, %v1693
        %1695 = vmatmul.bf16.gmra.mxu0 %v1384
        %v1696 = vpop.f32.mrf.mxu0
        %v1697 = vadd.f32 %v692, %v1696
        %v1698 = vpop.f32.mrf.mxu0
        %v1699 = vadd.f32 %v697, %v1698
        %1700 = vmatmul.bf16.gmra.mxu0 %v1387
        %v1701 = vpop.f32.mrf.mxu0
        %v1702 = vadd.f32 %v702, %v1701
        %v1703 = vpop.f32.mrf.mxu0
        %v1704 = vadd.f32 %v707, %v1703
        %1705 = vmatmul.bf16.gmra.mxu0 %v1390
        %v1706 = vpop.f32.mrf.mxu0
        %v1707 = vadd.f32 %v712, %v1706
        %v1708 = vpop.f32.mrf.mxu0
        %v1709 = vadd.f32 %v717, %v1708
        %1710 = vdwg.mxu0
        %1711 = vmatpush.bf16.msra.mxu0 0
        %1712 = vmatpush.bf16.msra.mxu0 0
        %1713 = vmatpush.bf16.msra.mxu0 0
        %1714 = vmatpush.bf16.msra.mxu0 0
        %1715 = vmatpush.bf16.msra.mxu0 %v1230
        %1716 = vmatpush.bf16.msra.mxu0 %v1198
        %1717 = vmatpush.bf16.msra.mxu0 %v1166
        %1718 = vmatpush.bf16.msra.mxu0 %v1134
        %1719 = vmatmul.bf16.gmra.mxu0 %v1381
        %v1720 = vpop.f32.mrf.mxu0
        %v1721 = vadd.f32 %v682, %v1720
        %v1722 = vpop.f32.mrf.mxu0
        %v1723 = vadd.f32 %v687, %v1722
        %1724 = vmatmul.bf16.gmra.mxu0 %v1384
        %v1725 = vpop.f32.mrf.mxu0
        %v1726 = vadd.f32 %v692, %v1725
        %v1727 = vpop.f32.mrf.mxu0
        %v1728 = vadd.f32 %v697, %v1727
        %1729 = vmatmul.bf16.gmra.mxu0 %v1387
        %v1730 = vpop.f32.mrf.mxu0
        %v1731 = vadd.f32 %v702, %v1730
        %v1732 = vpop.f32.mrf.mxu0
        %v1733 = vadd.f32 %v707, %v1732
        %1734 = vmatmul.bf16.gmra.mxu0 %v1390
        %v1735 = vpop.f32.mrf.mxu0
        %v1736 = vadd.f32 %v712, %v1735
        %v1737 = vpop.f32.mrf.mxu0
        %v1738 = vadd.f32 %v717, %v1737
        %1739 = vdwg.mxu0
        %1740 = vmatpush.bf16.msra.mxu0 0
        %1741 = vmatpush.bf16.msra.mxu0 0
        %1742 = vmatpush.bf16.msra.mxu0 0
        %1743 = vmatpush.bf16.msra.mxu0 0
        %1744 = vmatpush.bf16.msra.mxu0 %v1231
        %1745 = vmatpush.bf16.msra.mxu0 %v1199
        %1746 = vmatpush.bf16.msra.mxu0 %v1167
        %1747 = vmatpush.bf16.msra.mxu0 %v1135
        %1748 = vmatmul.bf16.gmra.mxu0 %v1381
        %v1749 = vpop.f32.mrf.mxu0
        %v1750 = vadd.f32 %v682, %v1749
        %v1751 = vpop.f32.mrf.mxu0
        %v1752 = vadd.f32 %v687, %v1751
        %1753 = vmatmul.bf16.gmra.mxu0 %v1384
        %v1754 = vpop.f32.mrf.mxu0
        %v1755 = vadd.f32 %v692, %v1754
        %v1756 = vpop.f32.mrf.mxu0
        %v1757 = vadd.f32 %v697, %v1756
        %1758 = vmatmul.bf16.gmra.mxu0 %v1387
        %v1759 = vpop.f32.mrf.mxu0
        %v1760 = vadd.f32 %v702, %v1759
        %v1761 = vpop.f32.mrf.mxu0
        %v1762 = vadd.f32 %v707, %v1761
        %1763 = vmatmul.bf16.gmra.mxu0 %v1390
        %v1764 = vpop.f32.mrf.mxu0
        %v1765 = vadd.f32 %v712, %v1764
        %v1766 = vpop.f32.mrf.mxu0
        %v1767 = vadd.f32 %v717, %v1766
        %1768 = vdwg.mxu0
        %1769 = vmatpush.bf16.msra.mxu0 0
        %1770 = vmatpush.bf16.msra.mxu0 0
        %1771 = vmatpush.bf16.msra.mxu0 0
        %1772 = vmatpush.bf16.msra.mxu0 0
        %1773 = vmatpush.bf16.msra.mxu0 %v1232
        %1774 = vmatpush.bf16.msra.mxu0 %v1200
        %1775 = vmatpush.bf16.msra.mxu0 %v1168
        %1776 = vmatpush.bf16.msra.mxu0 %v1136
        %1777 = vmatmul.bf16.gmra.mxu0 %v1381
        %v1778 = vpop.f32.mrf.mxu0
        %v1779 = vadd.f32 %v682, %v1778
        %v1780 = vpop.f32.mrf.mxu0
        %v1781 = vadd.f32 %v687, %v1780
        %1782 = vmatmul.bf16.gmra.mxu0 %v1384
        %v1783 = vpop.f32.mrf.mxu0
        %v1784 = vadd.f32 %v692, %v1783
        %v1785 = vpop.f32.mrf.mxu0
        %v1786 = vadd.f32 %v697, %v1785
        %1787 = vmatmul.bf16.gmra.mxu0 %v1387
        %v1788 = vpop.f32.mrf.mxu0
        %v1789 = vadd.f32 %v702, %v1788
        %v1790 = vpop.f32.mrf.mxu0
        %v1791 = vadd.f32 %v707, %v1790
        %1792 = vmatmul.bf16.gmra.mxu0 %v1390
        %v1793 = vpop.f32.mrf.mxu0
        %v1794 = vadd.f32 %v712, %v1793
        %v1795 = vpop.f32.mrf.mxu0
        %v1796 = vadd.f32 %v717, %v1795
        %1797 = vdwg.mxu0
        %1798 = vmatpush.bf16.msra.mxu0 0
        %1799 = vmatpush.bf16.msra.mxu0 0
        %1800 = vmatpush.bf16.msra.mxu0 0
        %1801 = vmatpush.bf16.msra.mxu0 0
        %1802 = vmatpush.bf16.msra.mxu0 %v1233
        %1803 = vmatpush.bf16.msra.mxu0 %v1201
        %1804 = vmatpush.bf16.msra.mxu0 %v1169
        %1805 = vmatpush.bf16.msra.mxu0 %v1137
        %1806 = vmatmul.bf16.gmra.mxu0 %v1381
        %v1807 = vpop.f32.mrf.mxu0
        %v1808 = vadd.f32 %v682, %v1807
        %v1809 = vpop.f32.mrf.mxu0
        %v1810 = vadd.f32 %v687, %v1809
        %1811 = vmatmul.bf16.gmra.mxu0 %v1384
        %v1812 = vpop.f32.mrf.mxu0
        %v1813 = vadd.f32 %v692, %v1812
        %v1814 = vpop.f32.mrf.mxu0
        %v1815 = vadd.f32 %v697, %v1814
        %1816 = vmatmul.bf16.gmra.mxu0 %v1387
        %v1817 = vpop.f32.mrf.mxu0
        %v1818 = vadd.f32 %v702, %v1817
        %v1819 = vpop.f32.mrf.mxu0
        %v1820 = vadd.f32 %v707, %v1819
        %1821 = vmatmul.bf16.gmra.mxu0 %v1390
        %v1822 = vpop.f32.mrf.mxu0
        %v1823 = vadd.f32 %v712, %v1822
        %v1824 = vpop.f32.mrf.mxu0
        %v1825 = vadd.f32 %v717, %v1824
        %1826 = vdwg.mxu0
        %1827 = vmatpush.bf16.msra.mxu0 0
        %1828 = vmatpush.bf16.msra.mxu0 0
        %1829 = vmatpush.bf16.msra.mxu0 0
        %1830 = vmatpush.bf16.msra.mxu0 0
        %1831 = vmatpush.bf16.msra.mxu0 %v1234
        %1832 = vmatpush.bf16.msra.mxu0 %v1202
        %1833 = vmatpush.bf16.msra.mxu0 %v1170
        %1834 = vmatpush.bf16.msra.mxu0 %v1138
        %1835 = vmatmul.bf16.gmra.mxu0 %v1381
        %v1836 = vpop.f32.mrf.mxu0
        %v1837 = vadd.f32 %v682, %v1836
        %v1838 = vpop.f32.mrf.mxu0
        %v1839 = vadd.f32 %v687, %v1838
        %1840 = vmatmul.bf16.gmra.mxu0 %v1384
        %v1841 = vpop.f32.mrf.mxu0
        %v1842 = vadd.f32 %v692, %v1841
        %v1843 = vpop.f32.mrf.mxu0
        %v1844 = vadd.f32 %v697, %v1843
        %1845 = vmatmul.bf16.gmra.mxu0 %v1387
        %v1846 = vpop.f32.mrf.mxu0
        %v1847 = vadd.f32 %v702, %v1846
        %v1848 = vpop.f32.mrf.mxu0
        %v1849 = vadd.f32 %v707, %v1848
        %1850 = vmatmul.bf16.gmra.mxu0 %v1390
        %v1851 = vpop.f32.mrf.mxu0
        %v1852 = vadd.f32 %v712, %v1851
        %v1853 = vpop.f32.mrf.mxu0
        %v1854 = vadd.f32 %v717, %v1853
        %1855 = vdwg.mxu0
        %1856 = vmatpush.bf16.msra.mxu0 0
        %1857 = vmatpush.bf16.msra.mxu0 0
        %1858 = vmatpush.bf16.msra.mxu0 0
        %1859 = vmatpush.bf16.msra.mxu0 0
        %1860 = vmatpush.bf16.msra.mxu0 %v1235
        %1861 = vmatpush.bf16.msra.mxu0 %v1203
        %1862 = vmatpush.bf16.msra.mxu0 %v1171
        %1863 = vmatpush.bf16.msra.mxu0 %v1139
        %1864 = vmatmul.bf16.gmra.mxu0 %v1381
        %v1865 = vpop.f32.mrf.mxu0
        %v1866 = vadd.f32 %v682, %v1865
        %v1867 = vpop.f32.mrf.mxu0
        %v1868 = vadd.f32 %v687, %v1867
        %1869 = vmatmul.bf16.gmra.mxu0 %v1384
        %v1870 = vpop.f32.mrf.mxu0
        %v1871 = vadd.f32 %v692, %v1870
        %v1872 = vpop.f32.mrf.mxu0
        %v1873 = vadd.f32 %v697, %v1872
        %1874 = vmatmul.bf16.gmra.mxu0 %v1387
        %v1875 = vpop.f32.mrf.mxu0
        %v1876 = vadd.f32 %v702, %v1875
        %v1877 = vpop.f32.mrf.mxu0
        %v1878 = vadd.f32 %v707, %v1877
        %1879 = vmatmul.bf16.gmra.mxu0 %v1390
        %v1880 = vpop.f32.mrf.mxu0
        %v1881 = vadd.f32 %v712, %v1880
        %v1882 = vpop.f32.mrf.mxu0
        %v1883 = vadd.f32 %v717, %v1882
        %1884 = vdwg.mxu0
        %1885 = vmatpush.bf16.msra.mxu0 0
        %1886 = vmatpush.bf16.msra.mxu0 0
        %1887 = vmatpush.bf16.msra.mxu0 0
        %1888 = vmatpush.bf16.msra.mxu0 0
        %1889 = vmatpush.bf16.msra.mxu0 %v1236
        %1890 = vmatpush.bf16.msra.mxu0 %v1204
        %1891 = vmatpush.bf16.msra.mxu0 %v1172
        %1892 = vmatpush.bf16.msra.mxu0 %v1140
        %1893 = vmatmul.bf16.gmra.mxu0 %v1381
        %v1894 = vpop.f32.mrf.mxu0
        %v1895 = vadd.f32 %v682, %v1894
        %v1896 = vpop.f32.mrf.mxu0
        %v1897 = vadd.f32 %v687, %v1896
        %1898 = vmatmul.bf16.gmra.mxu0 %v1384
        %v1899 = vpop.f32.mrf.mxu0
        %v1900 = vadd.f32 %v692, %v1899
        %v1901 = vpop.f32.mrf.mxu0
        %v1902 = vadd.f32 %v697, %v1901
        %1903 = vmatmul.bf16.gmra.mxu0 %v1387
        %v1904 = vpop.f32.mrf.mxu0
        %v1905 = vadd.f32 %v702, %v1904
        %v1906 = vpop.f32.mrf.mxu0
        %v1907 = vadd.f32 %v707, %v1906
        %1908 = vmatmul.bf16.gmra.mxu0 %v1390
        %v1909 = vpop.f32.mrf.mxu0
        %v1910 = vadd.f32 %v712, %v1909
        %v1911 = vpop.f32.mrf.mxu0
        %v1912 = vadd.f32 %v717, %v1911
        %1913 = vdwg.mxu0
        %1914 = vmatpush.bf16.msra.mxu0 0
        %1915 = vmatpush.bf16.msra.mxu0 0
        %1916 = vmatpush.bf16.msra.mxu0 0
        %1917 = vmatpush.bf16.msra.mxu0 0
        %1918 = vmatpush.bf16.msra.mxu0 %v1237
        %1919 = vmatpush.bf16.msra.mxu0 %v1205
        %1920 = vmatpush.bf16.msra.mxu0 %v1173
        %1921 = vmatpush.bf16.msra.mxu0 %v1141
        %1922 = vmatmul.bf16.gmra.mxu0 %v1381
        %v1923 = vpop.f32.mrf.mxu0
        %v1924 = vadd.f32 %v682, %v1923
        %v1925 = vpop.f32.mrf.mxu0
        %v1926 = vadd.f32 %v687, %v1925
        %1927 = vmatmul.bf16.gmra.mxu0 %v1384
        %v1928 = vpop.f32.mrf.mxu0
        %v1929 = vadd.f32 %v692, %v1928
        %v1930 = vpop.f32.mrf.mxu0
        %v1931 = vadd.f32 %v697, %v1930
        %1932 = vmatmul.bf16.gmra.mxu0 %v1387
        %v1933 = vpop.f32.mrf.mxu0
        %v1934 = vadd.f32 %v702, %v1933
        %v1935 = vpop.f32.mrf.mxu0
        %v1936 = vadd.f32 %v707, %v1935
        %1937 = vmatmul.bf16.gmra.mxu0 %v1390
        %v1938 = vpop.f32.mrf.mxu0
        %v1939 = vadd.f32 %v712, %v1938
        %v1940 = vpop.f32.mrf.mxu0
        %v1941 = vadd.f32 %v717, %v1940
        %1942 = vdwg.mxu0
        %1943 = vmatpush.bf16.msra.mxu0 0
        %1944 = vmatpush.bf16.msra.mxu0 0
        %1945 = vmatpush.bf16.msra.mxu0 0
        %1946 = vmatpush.bf16.msra.mxu0 0
        %1947 = vmatpush.bf16.msra.mxu0 %v1238
        %1948 = vmatpush.bf16.msra.mxu0 %v1206
        %1949 = vmatpush.bf16.msra.mxu0 %v1174
        %1950 = vmatpush.bf16.msra.mxu0 %v1142
        %1951 = vmatmul.bf16.gmra.mxu0 %v1381
        %v1952 = vpop.f32.mrf.mxu0
        %v1953 = vadd.f32 %v682, %v1952
        %v1954 = vpop.f32.mrf.mxu0
        %v1955 = vadd.f32 %v687, %v1954
        %1956 = vmatmul.bf16.gmra.mxu0 %v1384
        %v1957 = vpop.f32.mrf.mxu0
        %v1958 = vadd.f32 %v692, %v1957
        %v1959 = vpop.f32.mrf.mxu0
        %v1960 = vadd.f32 %v697, %v1959
        %1961 = vmatmul.bf16.gmra.mxu0 %v1387
        %v1962 = vpop.f32.mrf.mxu0
        %v1963 = vadd.f32 %v702, %v1962
        %v1964 = vpop.f32.mrf.mxu0
        %v1965 = vadd.f32 %v707, %v1964
        %1966 = vmatmul.bf16.gmra.mxu0 %v1390
        %v1967 = vpop.f32.mrf.mxu0
        %v1968 = vadd.f32 %v712, %v1967
        %v1969 = vpop.f32.mrf.mxu0
        %v1970 = vadd.f32 %v717, %v1969
        %1971 = vdwg.mxu0
        %1972 = vmatpush.bf16.msra.mxu0 0
        %1973 = vmatpush.bf16.msra.mxu0 0
        %1974 = vmatpush.bf16.msra.mxu0 0
        %1975 = vmatpush.bf16.msra.mxu0 0
        %1976 = vmatpush.bf16.msra.mxu0 %v1239
        %1977 = vmatpush.bf16.msra.mxu0 %v1207
        %1978 = vmatpush.bf16.msra.mxu0 %v1175
        %1979 = vmatpush.bf16.msra.mxu0 %v1143
        %1980 = vmatmul.bf16.gmra.mxu0 %v1381
        %v1981 = vpop.f32.mrf.mxu0
        %v1982 = vadd.f32 %v682, %v1981
        %v1983 = vpop.f32.mrf.mxu0
        %v1984 = vadd.f32 %v687, %v1983
        %1985 = vmatmul.bf16.gmra.mxu0 %v1384
        %v1986 = vpop.f32.mrf.mxu0
        %v1987 = vadd.f32 %v692, %v1986
        %v1988 = vpop.f32.mrf.mxu0
        %v1989 = vadd.f32 %v697, %v1988
        %1990 = vmatmul.bf16.gmra.mxu0 %v1387
        %v1991 = vpop.f32.mrf.mxu0
        %v1992 = vadd.f32 %v702, %v1991
        %v1993 = vpop.f32.mrf.mxu0
        %v1994 = vadd.f32 %v707, %v1993
        %1995 = vmatmul.bf16.gmra.mxu0 %v1390
        %v1996 = vpop.f32.mrf.mxu0
        %v1997 = vadd.f32 %v712, %v1996
        %v1998 = vpop.f32.mrf.mxu0
        %v1999 = vadd.f32 %v717, %v1998
        %2000 = vdwg.mxu0
        %2001 = vmatpush.bf16.msra.mxu0 0
        %2002 = vmatpush.bf16.msra.mxu0 0
        %2003 = vmatpush.bf16.msra.mxu0 0
        %2004 = vmatpush.bf16.msra.mxu0 0
        %2005 = vmatpush.bf16.msra.mxu0 %v1240
        %2006 = vmatpush.bf16.msra.mxu0 %v1208
        %2007 = vmatpush.bf16.msra.mxu0 %v1176
        %2008 = vmatpush.bf16.msra.mxu0 %v1144
        %2009 = vmatmul.bf16.gmra.mxu0 %v1381
        %v2010 = vpop.f32.mrf.mxu0
        %v2011 = vadd.f32 %v682, %v2010
        %v2012 = vpop.f32.mrf.mxu0
        %v2013 = vadd.f32 %v687, %v2012
        %2014 = vmatmul.bf16.gmra.mxu0 %v1384
        %v2015 = vpop.f32.mrf.mxu0
        %v2016 = vadd.f32 %v692, %v2015
        %v2017 = vpop.f32.mrf.mxu0
        %v2018 = vadd.f32 %v697, %v2017
        %2019 = vmatmul.bf16.gmra.mxu0 %v1387
        %v2020 = vpop.f32.mrf.mxu0
        %v2021 = vadd.f32 %v702, %v2020
        %v2022 = vpop.f32.mrf.mxu0
        %v2023 = vadd.f32 %v707, %v2022
        %2024 = vmatmul.bf16.gmra.mxu0 %v1390
        %v2025 = vpop.f32.mrf.mxu0
        %v2026 = vadd.f32 %v712, %v2025
        %v2027 = vpop.f32.mrf.mxu0
        %v2028 = vadd.f32 %v717, %v2027
        %2029 = vdwg.mxu0
        %2030 = vmatpush.bf16.msra.mxu0 0
        %2031 = vmatpush.bf16.msra.mxu0 0
        %2032 = vmatpush.bf16.msra.mxu0 0
        %2033 = vmatpush.bf16.msra.mxu0 0
        %2034 = vmatpush.bf16.msra.mxu0 %v1241
        %2035 = vmatpush.bf16.msra.mxu0 %v1209
        %2036 = vmatpush.bf16.msra.mxu0 %v1177
        %2037 = vmatpush.bf16.msra.mxu0 %v1145
        %2038 = vmatmul.bf16.gmra.mxu0 %v1381
        %v2039 = vpop.f32.mrf.mxu0
        %v2040 = vadd.f32 %v682, %v2039
        %v2041 = vpop.f32.mrf.mxu0
        %v2042 = vadd.f32 %v687, %v2041
        %2043 = vmatmul.bf16.gmra.mxu0 %v1384
        %v2044 = vpop.f32.mrf.mxu0
        %v2045 = vadd.f32 %v692, %v2044
        %v2046 = vpop.f32.mrf.mxu0
        %v2047 = vadd.f32 %v697, %v2046
        %2048 = vmatmul.bf16.gmra.mxu0 %v1387
        %v2049 = vpop.f32.mrf.mxu0
        %v2050 = vadd.f32 %v702, %v2049
        %v2051 = vpop.f32.mrf.mxu0
        %v2052 = vadd.f32 %v707, %v2051
        %2053 = vmatmul.bf16.gmra.mxu0 %v1390
        %v2054 = vpop.f32.mrf.mxu0
        %v2055 = vadd.f32 %v712, %v2054
        %v2056 = vpop.f32.mrf.mxu0
        %v2057 = vadd.f32 %v717, %v2056
        %2058 = vdwg.mxu0
        %2059 = vmatpush.bf16.msra.mxu0 0
        %2060 = vmatpush.bf16.msra.mxu0 0
        %2061 = vmatpush.bf16.msra.mxu0 0
        %2062 = vmatpush.bf16.msra.mxu0 0
        %2063 = vmatpush.bf16.msra.mxu0 %v1242
        %2064 = vmatpush.bf16.msra.mxu0 %v1210
        %2065 = vmatpush.bf16.msra.mxu0 %v1178
        %2066 = vmatpush.bf16.msra.mxu0 %v1146
        %2067 = vmatmul.bf16.gmra.mxu0 %v1381
        %v2068 = vpop.f32.mrf.mxu0
        %v2069 = vadd.f32 %v682, %v2068
        %v2070 = vpop.f32.mrf.mxu0
        %v2071 = vadd.f32 %v687, %v2070
        %2072 = vmatmul.bf16.gmra.mxu0 %v1384
        %v2073 = vpop.f32.mrf.mxu0
        %v2074 = vadd.f32 %v692, %v2073
        %v2075 = vpop.f32.mrf.mxu0
        %v2076 = vadd.f32 %v697, %v2075
        %2077 = vmatmul.bf16.gmra.mxu0 %v1387
        %v2078 = vpop.f32.mrf.mxu0
        %v2079 = vadd.f32 %v702, %v2078
        %v2080 = vpop.f32.mrf.mxu0
        %v2081 = vadd.f32 %v707, %v2080
        %2082 = vmatmul.bf16.gmra.mxu0 %v1390
        %v2083 = vpop.f32.mrf.mxu0
        %v2084 = vadd.f32 %v712, %v2083
        %v2085 = vpop.f32.mrf.mxu0
        %v2086 = vadd.f32 %v717, %v2085
        %2087 = vdwg.mxu0
        %2088 = vmatpush.bf16.msra.mxu0 0
        %2089 = vmatpush.bf16.msra.mxu0 0
        %2090 = vmatpush.bf16.msra.mxu0 0
        %2091 = vmatpush.bf16.msra.mxu0 0
        %2092 = vmatpush.bf16.msra.mxu0 %v1243
        %2093 = vmatpush.bf16.msra.mxu0 %v1211
        %2094 = vmatpush.bf16.msra.mxu0 %v1179
        %2095 = vmatpush.bf16.msra.mxu0 %v1147
        %2096 = vmatmul.bf16.gmra.mxu0 %v1381
        %v2097 = vpop.f32.mrf.mxu0
        %v2098 = vadd.f32 %v682, %v2097
        %v2099 = vpop.f32.mrf.mxu0
        %v2100 = vadd.f32 %v687, %v2099
        %2101 = vmatmul.bf16.gmra.mxu0 %v1384
        %v2102 = vpop.f32.mrf.mxu0
        %v2103 = vadd.f32 %v692, %v2102
        %v2104 = vpop.f32.mrf.mxu0
        %v2105 = vadd.f32 %v697, %v2104
        %2106 = vmatmul.bf16.gmra.mxu0 %v1387
        %v2107 = vpop.f32.mrf.mxu0
        %v2108 = vadd.f32 %v702, %v2107
        %v2109 = vpop.f32.mrf.mxu0
        %v2110 = vadd.f32 %v707, %v2109
        %2111 = vmatmul.bf16.gmra.mxu0 %v1390
        %v2112 = vpop.f32.mrf.mxu0
        %v2113 = vadd.f32 %v712, %v2112
        %v2114 = vpop.f32.mrf.mxu0
        %v2115 = vadd.f32 %v717, %v2114
        %2116 = vdwg.mxu0
        %2117 = vmatpush.bf16.msra.mxu0 0
        %2118 = vmatpush.bf16.msra.mxu0 0
        %2119 = vmatpush.bf16.msra.mxu0 0
        %2120 = vmatpush.bf16.msra.mxu0 0
        %2121 = vmatpush.bf16.msra.mxu0 %v1244
        %2122 = vmatpush.bf16.msra.mxu0 %v1212
        %2123 = vmatpush.bf16.msra.mxu0 %v1180
        %2124 = vmatpush.bf16.msra.mxu0 %v1148
        %2125 = vmatmul.bf16.gmra.mxu0 %v1381
        %v2126 = vpop.f32.mrf.mxu0
        %v2127 = vadd.f32 %v682, %v2126
        %v2128 = vpop.f32.mrf.mxu0
        %v2129 = vadd.f32 %v687, %v2128
        %2130 = vmatmul.bf16.gmra.mxu0 %v1384
        %v2131 = vpop.f32.mrf.mxu0
        %v2132 = vadd.f32 %v692, %v2131
        %v2133 = vpop.f32.mrf.mxu0
        %v2134 = vadd.f32 %v697, %v2133
        %2135 = vmatmul.bf16.gmra.mxu0 %v1387
        %v2136 = vpop.f32.mrf.mxu0
        %v2137 = vadd.f32 %v702, %v2136
        %v2138 = vpop.f32.mrf.mxu0
        %v2139 = vadd.f32 %v707, %v2138
        %2140 = vmatmul.bf16.gmra.mxu0 %v1390
        %v2141 = vpop.f32.mrf.mxu0
        %v2142 = vadd.f32 %v712, %v2141
        %v2143 = vpop.f32.mrf.mxu0
        %v2144 = vadd.f32 %v717, %v2143
        %2145 = vdwg.mxu0
        %2146 = vmatpush.bf16.msra.mxu0 0
        %2147 = vmatpush.bf16.msra.mxu0 0
        %2148 = vmatpush.bf16.msra.mxu0 0
        %2149 = vmatpush.bf16.msra.mxu0 0
        %2150 = vmatpush.bf16.msra.mxu0 %v1245
        %2151 = vmatpush.bf16.msra.mxu0 %v1213
        %2152 = vmatpush.bf16.msra.mxu0 %v1181
        %2153 = vmatpush.bf16.msra.mxu0 %v1149
        %2154 = vmatmul.bf16.gmra.mxu0 %v1381
        %v2155 = vpop.f32.mrf.mxu0
        %v2156 = vadd.f32 %v682, %v2155
        %v2157 = vpop.f32.mrf.mxu0
        %v2158 = vadd.f32 %v687, %v2157
        %2159 = vmatmul.bf16.gmra.mxu0 %v1384
        %v2160 = vpop.f32.mrf.mxu0
        %v2161 = vadd.f32 %v692, %v2160
        %v2162 = vpop.f32.mrf.mxu0
        %v2163 = vadd.f32 %v697, %v2162
        %2164 = vmatmul.bf16.gmra.mxu0 %v1387
        %v2165 = vpop.f32.mrf.mxu0
        %v2166 = vadd.f32 %v702, %v2165
        %v2167 = vpop.f32.mrf.mxu0
        %v2168 = vadd.f32 %v707, %v2167
        %2169 = vmatmul.bf16.gmra.mxu0 %v1390
        %v2170 = vpop.f32.mrf.mxu0
        %v2171 = vadd.f32 %v712, %v2170
        %v2172 = vpop.f32.mrf.mxu0
        %v2173 = vadd.f32 %v717, %v2172
        %2174 = vdwg.mxu0
        %2175 = vmatpush.bf16.msra.mxu0 0
        %2176 = vmatpush.bf16.msra.mxu0 0
        %2177 = vmatpush.bf16.msra.mxu0 0
        %2178 = vmatpush.bf16.msra.mxu0 0
        %2179 = vmatpush.bf16.msra.mxu0 %v1246
        %2180 = vmatpush.bf16.msra.mxu0 %v1214
        %2181 = vmatpush.bf16.msra.mxu0 %v1182
        %2182 = vmatpush.bf16.msra.mxu0 %v1150
        %2183 = vmatmul.bf16.gmra.mxu0 %v1381
        %v2184 = vpop.f32.mrf.mxu0
        %v2185 = vadd.f32 %v682, %v2184
        %v2186 = vpop.f32.mrf.mxu0
        %v2187 = vadd.f32 %v687, %v2186
        %2188 = vmatmul.bf16.gmra.mxu0 %v1384
        %v2189 = vpop.f32.mrf.mxu0
        %v2190 = vadd.f32 %v692, %v2189
        %v2191 = vpop.f32.mrf.mxu0
        %v2192 = vadd.f32 %v697, %v2191
        %2193 = vmatmul.bf16.gmra.mxu0 %v1387
        %v2194 = vpop.f32.mrf.mxu0
        %v2195 = vadd.f32 %v702, %v2194
        %v2196 = vpop.f32.mrf.mxu0
        %v2197 = vadd.f32 %v707, %v2196
        %2198 = vmatmul.bf16.gmra.mxu0 %v1390
        %v2199 = vpop.f32.mrf.mxu0
        %v2200 = vadd.f32 %v712, %v2199
        %v2201 = vpop.f32.mrf.mxu0
        %v2202 = vadd.f32 %v717, %v2201
        %2203 = vdwg.mxu0
        %2204 = vmatpush.bf16.msra.mxu0 0
        %2205 = vmatpush.bf16.msra.mxu0 0
        %2206 = vmatpush.bf16.msra.mxu0 0
        %2207 = vmatpush.bf16.msra.mxu0 0
        %2208 = vmatpush.bf16.msra.mxu0 %v1247
        %2209 = vmatpush.bf16.msra.mxu0 %v1215
        %2210 = vmatpush.bf16.msra.mxu0 %v1183
        %2211 = vmatpush.bf16.msra.mxu0 %v1151
        %2212 = vmatmul.bf16.gmra.mxu0 %v1381
        %v2213 = vpop.f32.mrf.mxu0
        %v2214 = vadd.f32 %v682, %v2213
        %v2215 = vpop.f32.mrf.mxu0
        %v2216 = vadd.f32 %v687, %v2215
        %2217 = vmatmul.bf16.gmra.mxu0 %v1384
        %v2218 = vpop.f32.mrf.mxu0
        %v2219 = vadd.f32 %v692, %v2218
        %v2220 = vpop.f32.mrf.mxu0
        %v2221 = vadd.f32 %v697, %v2220
        %2222 = vmatmul.bf16.gmra.mxu0 %v1387
        %v2223 = vpop.f32.mrf.mxu0
        %v2224 = vadd.f32 %v702, %v2223
        %v2225 = vpop.f32.mrf.mxu0
        %v2226 = vadd.f32 %v707, %v2225
        %2227 = vmatmul.bf16.gmra.mxu0 %v1390
        %v2228 = vpop.f32.mrf.mxu0
        %v2229 = vadd.f32 %v712, %v2228
        %v2230 = vpop.f32.mrf.mxu0
        %v2231 = vadd.f32 %v717, %v2230
        %2232 = vdwg.mxu0
        %2233 = vmatpush.bf16.msra.mxu0 0
        %2234 = vmatpush.bf16.msra.mxu0 0
        %2235 = vmatpush.bf16.msra.mxu0 0
        %2236 = vmatpush.bf16.msra.mxu0 0
        %2237 = vmatpush.bf16.msra.mxu0 %v1248
        %2238 = vmatpush.bf16.msra.mxu0 %v1216
        %2239 = vmatpush.bf16.msra.mxu0 %v1184
        %2240 = vmatpush.bf16.msra.mxu0 %v1152
        %2241 = vmatmul.bf16.gmra.mxu0 %v1381
        %v2242 = vpop.f32.mrf.mxu0
        %v2243 = vadd.f32 %v682, %v2242
        %v2244 = vpop.f32.mrf.mxu0
        %v2245 = vadd.f32 %v687, %v2244
        %2246 = vmatmul.bf16.gmra.mxu0 %v1384
        %v2247 = vpop.f32.mrf.mxu0
        %v2248 = vadd.f32 %v692, %v2247
        %v2249 = vpop.f32.mrf.mxu0
        %v2250 = vadd.f32 %v697, %v2249
        %2251 = vmatmul.bf16.gmra.mxu0 %v1387
        %v2252 = vpop.f32.mrf.mxu0
        %v2253 = vadd.f32 %v702, %v2252
        %v2254 = vpop.f32.mrf.mxu0
        %v2255 = vadd.f32 %v707, %v2254
        %2256 = vmatmul.bf16.gmra.mxu0 %v1390
        %v2257 = vpop.f32.mrf.mxu0
        %v2258 = vadd.f32 %v712, %v2257
        %v2259 = vpop.f32.mrf.mxu0
        %v2260 = vadd.f32 %v717, %v2259
        %2261 = vdwg.mxu0
        %2262 = vmatpush.bf16.msra.mxu0 0
        %2263 = vmatpush.bf16.msra.mxu0 0
        %2264 = vmatpush.bf16.msra.mxu0 0
        %2265 = vmatpush.bf16.msra.mxu0 0
        %2266 = vmatpush.bf16.msra.mxu0 %v1249
        %2267 = vmatpush.bf16.msra.mxu0 %v1217
        %2268 = vmatpush.bf16.msra.mxu0 %v1185
        %2269 = vmatpush.bf16.msra.mxu0 %v1153
        %2270 = vmatmul.bf16.gmra.mxu0 %v1381
        %v2271 = vpop.f32.mrf.mxu0
        %v2272 = vadd.f32 %v682, %v2271
        %v2273 = vpop.f32.mrf.mxu0
        %v2274 = vadd.f32 %v687, %v2273
        %2275 = vmatmul.bf16.gmra.mxu0 %v1384
        %v2276 = vpop.f32.mrf.mxu0
        %v2277 = vadd.f32 %v692, %v2276
        %v2278 = vpop.f32.mrf.mxu0
        %v2279 = vadd.f32 %v697, %v2278
        %2280 = vmatmul.bf16.gmra.mxu0 %v1387
        %v2281 = vpop.f32.mrf.mxu0
        %v2282 = vadd.f32 %v702, %v2281
        %v2283 = vpop.f32.mrf.mxu0
        %v2284 = vadd.f32 %v707, %v2283
        %2285 = vmatmul.bf16.gmra.mxu0 %v1390
        %v2286 = vpop.f32.mrf.mxu0
        %v2287 = vadd.f32 %v712, %v2286
        %v2288 = vpop.f32.mrf.mxu0
        %v2289 = vadd.f32 %v717, %v2288
        %2290 = vdwg.mxu0
        %2291 = vmatpush.bf16.msra.mxu0 0
        %2292 = vmatpush.bf16.msra.mxu0 0
        %2293 = vmatpush.bf16.msra.mxu0 0
        %2294 = vmatpush.bf16.msra.mxu0 0
        %2295 = vmatpush.bf16.msra.mxu0 %v1250
        %2296 = vmatpush.bf16.msra.mxu0 %v1218
        %2297 = vmatpush.bf16.msra.mxu0 %v1186
        %2298 = vmatpush.bf16.msra.mxu0 %v1154
        %2299 = vmatmul.bf16.gmra.mxu0 %v1381
        %v2300 = vpop.f32.mrf.mxu0
        %v2301 = vadd.f32 %v682, %v2300
        %v2302 = vpop.f32.mrf.mxu0
        %v2303 = vadd.f32 %v687, %v2302
        %2304 = vmatmul.bf16.gmra.mxu0 %v1384
        %v2305 = vpop.f32.mrf.mxu0
        %v2306 = vadd.f32 %v692, %v2305
        %v2307 = vpop.f32.mrf.mxu0
        %v2308 = vadd.f32 %v697, %v2307
        %2309 = vmatmul.bf16.gmra.mxu0 %v1387
        %v2310 = vpop.f32.mrf.mxu0
        %v2311 = vadd.f32 %v702, %v2310
        %v2312 = vpop.f32.mrf.mxu0
        %v2313 = vadd.f32 %v707, %v2312
        %2314 = vmatmul.bf16.gmra.mxu0 %v1390
        %v2315 = vpop.f32.mrf.mxu0
        %v2316 = vadd.f32 %v712, %v2315
        %v2317 = vpop.f32.mrf.mxu0
        %v2318 = vadd.f32 %v717, %v2317
        %2319 = vdwg.mxu0
        %v2320 = vmax.f32 %v1402, 0.0
        %v2321 = vmax.f32 %v1431, 0.0
        %v2322 = vmax.f32 %v1460, 0.0
        %v2323 = vmax.f32 %v1489, 0.0
        %v2324 = vmax.f32 %v1518, 0.0
        %v2325 = vmax.f32 %v1547, 0.0
        %v2326 = vmax.f32 %v1576, 0.0
        %v2327 = vmax.f32 %v1605, 0.0
        %v2328 = vmax.f32 %v1634, 0.0
        %v2329 = vmax.f32 %v1663, 0.0
        %v2330 = vmax.f32 %v1692, 0.0
        %v2331 = vmax.f32 %v1721, 0.0
        %v2332 = vmax.f32 %v1750, 0.0
        %v2333 = vmax.f32 %v1779, 0.0
        %v2334 = vmax.f32 %v1808, 0.0
        %v2335 = vmax.f32 %v1837, 0.0
        %v2336 = vmax.f32 %v1866, 0.0
        %v2337 = vmax.f32 %v1895, 0.0
        %v2338 = vmax.f32 %v1924, 0.0
        %v2339 = vmax.f32 %v1953, 0.0
        %v2340 = vmax.f32 %v1982, 0.0
        %v2341 = vmax.f32 %v2011, 0.0
        %v2342 = vmax.f32 %v2040, 0.0
        %v2343 = vmax.f32 %v2069, 0.0
        %v2344 = vmax.f32 %v2098, 0.0
        %v2345 = vmax.f32 %v2127, 0.0
        %v2346 = vmax.f32 %v2156, 0.0
        %v2347 = vmax.f32 %v2185, 0.0
        %v2348 = vmax.f32 %v2214, 0.0
        %v2349 = vmax.f32 %v2243, 0.0
        %v2350 = vmax.f32 %v2272, 0.0
        %v2351 = vmax.f32 %v2301, 0.0
        %v2352 = vmax.f32 %v1404, 0.0
        %v2353 = vmax.f32 %v1433, 0.0
        %v2354 = vmax.f32 %v1462, 0.0
        %v2355 = vmax.f32 %v1491, 0.0
        %v2356 = vmax.f32 %v1520, 0.0
        %v2357 = vmax.f32 %v1549, 0.0
        %v2358 = vmax.f32 %v1578, 0.0
        %v2359 = vmax.f32 %v1607, 0.0
        %v2360 = vmax.f32 %v1636, 0.0
        %v2361 = vmax.f32 %v1665, 0.0
        %v2362 = vmax.f32 %v1694, 0.0
        %v2363 = vmax.f32 %v1723, 0.0
        %v2364 = vmax.f32 %v1752, 0.0
        %v2365 = vmax.f32 %v1781, 0.0
        %v2366 = vmax.f32 %v1810, 0.0
        %v2367 = vmax.f32 %v1839, 0.0
        %v2368 = vmax.f32 %v1868, 0.0
        %v2369 = vmax.f32 %v1897, 0.0
        %v2370 = vmax.f32 %v1926, 0.0
        %v2371 = vmax.f32 %v1955, 0.0
        %v2372 = vmax.f32 %v1984, 0.0
        %v2373 = vmax.f32 %v2013, 0.0
        %v2374 = vmax.f32 %v2042, 0.0
        %v2375 = vmax.f32 %v2071, 0.0
        %v2376 = vmax.f32 %v2100, 0.0
        %v2377 = vmax.f32 %v2129, 0.0
        %v2378 = vmax.f32 %v2158, 0.0
        %v2379 = vmax.f32 %v2187, 0.0
        %v2380 = vmax.f32 %v2216, 0.0
        %v2381 = vmax.f32 %v2245, 0.0
        %v2382 = vmax.f32 %v2274, 0.0
        %v2383 = vmax.f32 %v2303, 0.0
        %v2384 = vmax.f32 %v1407, 0.0
        %v2385 = vmax.f32 %v1436, 0.0
        %v2386 = vmax.f32 %v1465, 0.0
        %v2387 = vmax.f32 %v1494, 0.0
        %v2388 = vmax.f32 %v1523, 0.0
        %v2389 = vmax.f32 %v1552, 0.0
        %v2390 = vmax.f32 %v1581, 0.0
        %v2391 = vmax.f32 %v1610, 0.0
        %v2392 = vmax.f32 %v1639, 0.0
        %v2393 = vmax.f32 %v1668, 0.0
        %v2394 = vmax.f32 %v1697, 0.0
        %v2395 = vmax.f32 %v1726, 0.0
        %v2396 = vmax.f32 %v1755, 0.0
        %v2397 = vmax.f32 %v1784, 0.0
        %v2398 = vmax.f32 %v1813, 0.0
        %v2399 = vmax.f32 %v1842, 0.0
        %v2400 = vmax.f32 %v1871, 0.0
        %v2401 = vmax.f32 %v1900, 0.0
        %v2402 = vmax.f32 %v1929, 0.0
        %v2403 = vmax.f32 %v1958, 0.0
        %v2404 = vmax.f32 %v1987, 0.0
        %v2405 = vmax.f32 %v2016, 0.0
        %v2406 = vmax.f32 %v2045, 0.0
        %v2407 = vmax.f32 %v2074, 0.0
        %v2408 = vmax.f32 %v2103, 0.0
        %v2409 = vmax.f32 %v2132, 0.0
        %v2410 = vmax.f32 %v2161, 0.0
        %v2411 = vmax.f32 %v2190, 0.0
        %v2412 = vmax.f32 %v2219, 0.0
        %v2413 = vmax.f32 %v2248, 0.0
        %v2414 = vmax.f32 %v2277, 0.0
        %v2415 = vmax.f32 %v2306, 0.0
        %v2416 = vmax.f32 %v1409, 0.0
        %v2417 = vmax.f32 %v1438, 0.0
        %v2418 = vmax.f32 %v1467, 0.0
        %v2419 = vmax.f32 %v1496, 0.0
        %v2420 = vmax.f32 %v1525, 0.0
        %v2421 = vmax.f32 %v1554, 0.0
        %v2422 = vmax.f32 %v1583, 0.0
        %v2423 = vmax.f32 %v1612, 0.0
        %v2424 = vmax.f32 %v1641, 0.0
        %v2425 = vmax.f32 %v1670, 0.0
        %v2426 = vmax.f32 %v1699, 0.0
        %v2427 = vmax.f32 %v1728, 0.0
        %v2428 = vmax.f32 %v1757, 0.0
        %v2429 = vmax.f32 %v1786, 0.0
        %v2430 = vmax.f32 %v1815, 0.0
        %v2431 = vmax.f32 %v1844, 0.0
        %v2432 = vmax.f32 %v1873, 0.0
        %v2433 = vmax.f32 %v1902, 0.0
        %v2434 = vmax.f32 %v1931, 0.0
        %v2435 = vmax.f32 %v1960, 0.0
        %v2436 = vmax.f32 %v1989, 0.0
        %v2437 = vmax.f32 %v2018, 0.0
        %v2438 = vmax.f32 %v2047, 0.0
        %v2439 = vmax.f32 %v2076, 0.0
        %v2440 = vmax.f32 %v2105, 0.0
        %v2441 = vmax.f32 %v2134, 0.0
        %v2442 = vmax.f32 %v2163, 0.0
        %v2443 = vmax.f32 %v2192, 0.0
        %v2444 = vmax.f32 %v2221, 0.0
        %v2445 = vmax.f32 %v2250, 0.0
        %v2446 = vmax.f32 %v2279, 0.0
        %v2447 = vmax.f32 %v2308, 0.0
        %v2448 = vmax.f32 %v1412, 0.0
        %v2449 = vmax.f32 %v1441, 0.0
        %v2450 = vmax.f32 %v1470, 0.0
        %v2451 = vmax.f32 %v1499, 0.0
        %v2452 = vmax.f32 %v1528, 0.0
        %v2453 = vmax.f32 %v1557, 0.0
        %v2454 = vmax.f32 %v1586, 0.0
        %v2455 = vmax.f32 %v1615, 0.0
        %v2456 = vmax.f32 %v1644, 0.0
        %v2457 = vmax.f32 %v1673, 0.0
        %v2458 = vmax.f32 %v1702, 0.0
        %v2459 = vmax.f32 %v1731, 0.0
        %v2460 = vmax.f32 %v1760, 0.0
        %v2461 = vmax.f32 %v1789, 0.0
        %v2462 = vmax.f32 %v1818, 0.0
        %v2463 = vmax.f32 %v1847, 0.0
        %v2464 = vmax.f32 %v1876, 0.0
        %v2465 = vmax.f32 %v1905, 0.0
        %v2466 = vmax.f32 %v1934, 0.0
        %v2467 = vmax.f32 %v1963, 0.0
        %v2468 = vmax.f32 %v1992, 0.0
        %v2469 = vmax.f32 %v2021, 0.0
        %v2470 = vmax.f32 %v2050, 0.0
        %v2471 = vmax.f32 %v2079, 0.0
        %v2472 = vmax.f32 %v2108, 0.0
        %v2473 = vmax.f32 %v2137, 0.0
        %v2474 = vmax.f32 %v2166, 0.0
        %v2475 = vmax.f32 %v2195, 0.0
        %v2476 = vmax.f32 %v2224, 0.0
        %v2477 = vmax.f32 %v2253, 0.0
        %v2478 = vmax.f32 %v2282, 0.0
        %v2479 = vmax.f32 %v2311, 0.0
        %v2480 = vmax.f32 %v1414, 0.0
        %v2481 = vmax.f32 %v1443, 0.0
        %v2482 = vmax.f32 %v1472, 0.0
        %v2483 = vmax.f32 %v1501, 0.0
        %v2484 = vmax.f32 %v1530, 0.0
        %v2485 = vmax.f32 %v1559, 0.0
        %v2486 = vmax.f32 %v1588, 0.0
        %v2487 = vmax.f32 %v1617, 0.0
        %v2488 = vmax.f32 %v1646, 0.0
        %v2489 = vmax.f32 %v1675, 0.0
        %v2490 = vmax.f32 %v1704, 0.0
        %v2491 = vmax.f32 %v1733, 0.0
        %v2492 = vmax.f32 %v1762, 0.0
        %v2493 = vmax.f32 %v1791, 0.0
        %v2494 = vmax.f32 %v1820, 0.0
        %v2495 = vmax.f32 %v1849, 0.0
        %v2496 = vmax.f32 %v1878, 0.0
        %v2497 = vmax.f32 %v1907, 0.0
        %v2498 = vmax.f32 %v1936, 0.0
        %v2499 = vmax.f32 %v1965, 0.0
        %v2500 = vmax.f32 %v1994, 0.0
        %v2501 = vmax.f32 %v2023, 0.0
        %v2502 = vmax.f32 %v2052, 0.0
        %v2503 = vmax.f32 %v2081, 0.0
        %v2504 = vmax.f32 %v2110, 0.0
        %v2505 = vmax.f32 %v2139, 0.0
        %v2506 = vmax.f32 %v2168, 0.0
        %v2507 = vmax.f32 %v2197, 0.0
        %v2508 = vmax.f32 %v2226, 0.0
        %v2509 = vmax.f32 %v2255, 0.0
        %v2510 = vmax.f32 %v2284, 0.0
        %v2511 = vmax.f32 %v2313, 0.0
        %v2512 = vmax.f32 %v1417, 0.0
        %v2513 = vmax.f32 %v1446, 0.0
        %v2514 = vmax.f32 %v1475, 0.0
        %v2515 = vmax.f32 %v1504, 0.0
        %v2516 = vmax.f32 %v1533, 0.0
        %v2517 = vmax.f32 %v1562, 0.0
        %v2518 = vmax.f32 %v1591, 0.0
        %v2519 = vmax.f32 %v1620, 0.0
        %v2520 = vmax.f32 %v1649, 0.0
        %v2521 = vmax.f32 %v1678, 0.0
        %v2522 = vmax.f32 %v1707, 0.0
        %v2523 = vmax.f32 %v1736, 0.0
        %v2524 = vmax.f32 %v1765, 0.0
        %v2525 = vmax.f32 %v1794, 0.0
        %v2526 = vmax.f32 %v1823, 0.0
        %v2527 = vmax.f32 %v1852, 0.0
        %v2528 = vmax.f32 %v1881, 0.0
        %v2529 = vmax.f32 %v1910, 0.0
        %v2530 = vmax.f32 %v1939, 0.0
        %v2531 = vmax.f32 %v1968, 0.0
        %v2532 = vmax.f32 %v1997, 0.0
        %v2533 = vmax.f32 %v2026, 0.0
        %v2534 = vmax.f32 %v2055, 0.0
        %v2535 = vmax.f32 %v2084, 0.0
        %v2536 = vmax.f32 %v2113, 0.0
        %v2537 = vmax.f32 %v2142, 0.0
        %v2538 = vmax.f32 %v2171, 0.0
        %v2539 = vmax.f32 %v2200, 0.0
        %v2540 = vmax.f32 %v2229, 0.0
        %v2541 = vmax.f32 %v2258, 0.0
        %v2542 = vmax.f32 %v2287, 0.0
        %v2543 = vmax.f32 %v2316, 0.0
        %v2544 = vmax.f32 %v1419, 0.0
        %v2545 = vmax.f32 %v1448, 0.0
        %v2546 = vmax.f32 %v1477, 0.0
        %v2547 = vmax.f32 %v1506, 0.0
        %v2548 = vmax.f32 %v1535, 0.0
        %v2549 = vmax.f32 %v1564, 0.0
        %v2550 = vmax.f32 %v1593, 0.0
        %v2551 = vmax.f32 %v1622, 0.0
        %v2552 = vmax.f32 %v1651, 0.0
        %v2553 = vmax.f32 %v1680, 0.0
        %v2554 = vmax.f32 %v1709, 0.0
        %v2555 = vmax.f32 %v1738, 0.0
        %v2556 = vmax.f32 %v1767, 0.0
        %v2557 = vmax.f32 %v1796, 0.0
        %v2558 = vmax.f32 %v1825, 0.0
        %v2559 = vmax.f32 %v1854, 0.0
        %v2560 = vmax.f32 %v1883, 0.0
        %v2561 = vmax.f32 %v1912, 0.0
        %v2562 = vmax.f32 %v1941, 0.0
        %v2563 = vmax.f32 %v1970, 0.0
        %v2564 = vmax.f32 %v1999, 0.0
        %v2565 = vmax.f32 %v2028, 0.0
        %v2566 = vmax.f32 %v2057, 0.0
        %v2567 = vmax.f32 %v2086, 0.0
        %v2568 = vmax.f32 %v2115, 0.0
        %v2569 = vmax.f32 %v2144, 0.0
        %v2570 = vmax.f32 %v2173, 0.0
        %v2571 = vmax.f32 %v2202, 0.0
        %v2572 = vmax.f32 %v2231, 0.0
        %v2573 = vmax.f32 %v2260, 0.0
        %v2574 = vmax.f32 %v2289, 0.0
        %v2575 = vmax.f32 %v2318, 0.0
        %v2576 = vpack.c.bf16 %v2352, %v2320
        %v2577 = vpack.c.bf16 %v2353, %v2321
        %v2578 = vpack.c.bf16 %v2354, %v2322
        %v2579 = vpack.c.bf16 %v2355, %v2323
        %v2580 = vpack.c.bf16 %v2356, %v2324
        %v2581 = vpack.c.bf16 %v2357, %v2325
        %v2582 = vpack.c.bf16 %v2358, %v2326
        %v2583 = vpack.c.bf16 %v2359, %v2327
        %v2584 = vpack.c.bf16 %v2360, %v2328
        %v2585 = vpack.c.bf16 %v2361, %v2329
        %v2586 = vpack.c.bf16 %v2362, %v2330
        %v2587 = vpack.c.bf16 %v2363, %v2331
        %v2588 = vpack.c.bf16 %v2364, %v2332
        %v2589 = vpack.c.bf16 %v2365, %v2333
        %v2590 = vpack.c.bf16 %v2366, %v2334
        %v2591 = vpack.c.bf16 %v2367, %v2335
        %v2592 = vpack.c.bf16 %v2368, %v2336
        %v2593 = vpack.c.bf16 %v2369, %v2337
        %v2594 = vpack.c.bf16 %v2370, %v2338
        %v2595 = vpack.c.bf16 %v2371, %v2339
        %v2596 = vpack.c.bf16 %v2372, %v2340
        %v2597 = vpack.c.bf16 %v2373, %v2341
        %v2598 = vpack.c.bf16 %v2374, %v2342
        %v2599 = vpack.c.bf16 %v2375, %v2343
        %v2600 = vpack.c.bf16 %v2376, %v2344
        %v2601 = vpack.c.bf16 %v2377, %v2345
        %v2602 = vpack.c.bf16 %v2378, %v2346
        %v2603 = vpack.c.bf16 %v2379, %v2347
        %v2604 = vpack.c.bf16 %v2380, %v2348
        %v2605 = vpack.c.bf16 %v2381, %v2349
        %v2606 = vpack.c.bf16 %v2382, %v2350
        %v2607 = vpack.c.bf16 %v2383, %v2351
        %v2608 = vpack.c.bf16 %v2416, %v2384
        %v2609 = vpack.c.bf16 %v2417, %v2385
        %v2610 = vpack.c.bf16 %v2418, %v2386
        %v2611 = vpack.c.bf16 %v2419, %v2387
        %v2612 = vpack.c.bf16 %v2420, %v2388
        %v2613 = vpack.c.bf16 %v2421, %v2389
        %v2614 = vpack.c.bf16 %v2422, %v2390
        %v2615 = vpack.c.bf16 %v2423, %v2391
        %v2616 = vpack.c.bf16 %v2424, %v2392
        %v2617 = vpack.c.bf16 %v2425, %v2393
        %v2618 = vpack.c.bf16 %v2426, %v2394
        %v2619 = vpack.c.bf16 %v2427, %v2395
        %v2620 = vpack.c.bf16 %v2428, %v2396
        %v2621 = vpack.c.bf16 %v2429, %v2397
        %v2622 = vpack.c.bf16 %v2430, %v2398
        %v2623 = vpack.c.bf16 %v2431, %v2399
        %v2624 = vpack.c.bf16 %v2432, %v2400
        %v2625 = vpack.c.bf16 %v2433, %v2401
        %v2626 = vpack.c.bf16 %v2434, %v2402
        %v2627 = vpack.c.bf16 %v2435, %v2403
        %v2628 = vpack.c.bf16 %v2436, %v2404
        %v2629 = vpack.c.bf16 %v2437, %v2405
        %v2630 = vpack.c.bf16 %v2438, %v2406
        %v2631 = vpack.c.bf16 %v2439, %v2407
        %v2632 = vpack.c.bf16 %v2440, %v2408
        %v2633 = vpack.c.bf16 %v2441, %v2409
        %v2634 = vpack.c.bf16 %v2442, %v2410
        %v2635 = vpack.c.bf16 %v2443, %v2411
        %v2636 = vpack.c.bf16 %v2444, %v2412
        %v2637 = vpack.c.bf16 %v2445, %v2413
        %v2638 = vpack.c.bf16 %v2446, %v2414
        %v2639 = vpack.c.bf16 %v2447, %v2415
        %v2640 = vpack.c.bf16 %v2480, %v2448
        %v2641 = vpack.c.bf16 %v2481, %v2449
        %v2642 = vpack.c.bf16 %v2482, %v2450
        %v2643 = vpack.c.bf16 %v2483, %v2451
        %v2644 = vpack.c.bf16 %v2484, %v2452
        %v2645 = vpack.c.bf16 %v2485, %v2453
        %v2646 = vpack.c.bf16 %v2486, %v2454
        %v2647 = vpack.c.bf16 %v2487, %v2455
        %v2648 = vpack.c.bf16 %v2488, %v2456
        %v2649 = vpack.c.bf16 %v2489, %v2457
        %v2650 = vpack.c.bf16 %v2490, %v2458
        %v2651 = vpack.c.bf16 %v2491, %v2459
        %v2652 = vpack.c.bf16 %v2492, %v2460
        %v2653 = vpack.c.bf16 %v2493, %v2461
        %v2654 = vpack.c.bf16 %v2494, %v2462
        %v2655 = vpack.c.bf16 %v2495, %v2463
        %v2656 = vpack.c.bf16 %v2496, %v2464
        %v2657 = vpack.c.bf16 %v2497, %v2465
        %v2658 = vpack.c.bf16 %v2498, %v2466
        %v2659 = vpack.c.bf16 %v2499, %v2467
        %v2660 = vpack.c.bf16 %v2500, %v2468
        %v2661 = vpack.c.bf16 %v2501, %v2469
        %v2662 = vpack.c.bf16 %v2502, %v2470
        %v2663 = vpack.c.bf16 %v2503, %v2471
        %v2664 = vpack.c.bf16 %v2504, %v2472
        %v2665 = vpack.c.bf16 %v2505, %v2473
        %v2666 = vpack.c.bf16 %v2506, %v2474
        %v2667 = vpack.c.bf16 %v2507, %v2475
        %v2668 = vpack.c.bf16 %v2508, %v2476
        %v2669 = vpack.c.bf16 %v2509, %v2477
        %v2670 = vpack.c.bf16 %v2510, %v2478
        %v2671 = vpack.c.bf16 %v2511, %v2479
        %v2672 = vpack.c.bf16 %v2544, %v2512
        %v2673 = vpack.c.bf16 %v2545, %v2513
        %v2674 = vpack.c.bf16 %v2546, %v2514
        %v2675 = vpack.c.bf16 %v2547, %v2515
        %v2676 = vpack.c.bf16 %v2548, %v2516
        %v2677 = vpack.c.bf16 %v2549, %v2517
        %v2678 = vpack.c.bf16 %v2550, %v2518
        %v2679 = vpack.c.bf16 %v2551, %v2519
        %v2680 = vpack.c.bf16 %v2552, %v2520
        %v2681 = vpack.c.bf16 %v2553, %v2521
        %v2682 = vpack.c.bf16 %v2554, %v2522
        %v2683 = vpack.c.bf16 %v2555, %v2523
        %v2684 = vpack.c.bf16 %v2556, %v2524
        %v2685 = vpack.c.bf16 %v2557, %v2525
        %v2686 = vpack.c.bf16 %v2558, %v2526
        %v2687 = vpack.c.bf16 %v2559, %v2527
        %v2688 = vpack.c.bf16 %v2560, %v2528
        %v2689 = vpack.c.bf16 %v2561, %v2529
        %v2690 = vpack.c.bf16 %v2562, %v2530
        %v2691 = vpack.c.bf16 %v2563, %v2531
        %v2692 = vpack.c.bf16 %v2564, %v2532
        %v2693 = vpack.c.bf16 %v2565, %v2533
        %v2694 = vpack.c.bf16 %v2566, %v2534
        %v2695 = vpack.c.bf16 %v2567, %v2535
        %v2696 = vpack.c.bf16 %v2568, %v2536
        %v2697 = vpack.c.bf16 %v2569, %v2537
        %v2698 = vpack.c.bf16 %v2570, %v2538
        %v2699 = vpack.c.bf16 %v2571, %v2539
        %v2700 = vpack.c.bf16 %v2572, %v2540
        %v2701 = vpack.c.bf16 %v2573, %v2541
        %v2702 = vpack.c.bf16 %v2574, %v2542
        %v2703 = vpack.c.bf16 %v2575, %v2543
        %2704 = vset.pattern.permute.xlu0 1
        %2705 = vperm.xlu0 %2704, %v671
        %v2706 = vpop.permute.xlu0 %2705
        %2708 = vset.pattern.permute.xlu0 1
        %2709 = vperm.xlu0 %2708, %v672
        %v2710 = vpop.permute.xlu0 %2709
        %2712 = vset.pattern.permute.xlu0 1
        %2713 = vperm.xlu0 %2712, %v673
        %v2714 = vpop.permute.xlu0 %2713
        %2716 = vset.pattern.permute.xlu0 1
        %2717 = vperm.xlu0 %2716, %v674
        %v2718 = vpop.permute.xlu0 %2717
        %2720 = vset.pattern.permute.xlu0 1
        %2721 = vperm.xlu0 %2720, %v675
        %v2722 = vpop.permute.xlu0 %2721
        %2724 = vset.pattern.permute.xlu0 1
        %2725 = vperm.xlu0 %2724, %v676
        %v2726 = vpop.permute.xlu0 %2725
        %2728 = vset.pattern.permute.xlu0 1
        %2729 = vperm.xlu0 %2728, %v677
        %v2730 = vpop.permute.xlu0 %2729
        %2732 = vset.pattern.permute.xlu0 1
        %2733 = vperm.xlu0 %2732, %v678
        %v2734 = vpop.permute.xlu0 %2733
        %v2744 = vunpack.c.l.b16 %v501
        %v2745 = vunpack.c.l.b16 %v502
        %v2746 = vunpack.c.l.b16 %v503
        %v2747 = vunpack.c.l.b16 %v504
        %v2748 = vunpack.c.l.b16 %v505
        %v2749 = vunpack.c.l.b16 %v506
        %v2750 = vunpack.c.l.b16 %v507
        %v2751 = vunpack.c.l.b16 %v508
        %v2752 = vpack.c.b16 %v2745, %v2744
        %v2753 = vpack.c.b16 %v2747, %v2746
        %v2754 = vpack.c.b16 %v2749, %v2748
        %v2755 = vpack.c.b16 %v2751, %v2750
        %v2757 = vsel %vm1379, %v2752, 0
        %v2760 = vsel %vm1379, %v2753, 0
        %v2763 = vsel %vm1379, %v2754, 0
        %v2766 = vsel %vm1379, %v2755, 0
        %2768 = vmatpush.bf16.msra.mxu0 0
        %2769 = vmatpush.bf16.msra.mxu0 0
        %2770 = vmatpush.bf16.msra.mxu0 0
        %2771 = vmatpush.bf16.msra.mxu0 0
        %2772 = vmatpush.bf16.msra.mxu0 %v2672
        %2773 = vmatpush.bf16.msra.mxu0 %v2640
        %2774 = vmatpush.bf16.msra.mxu0 %v2608
        %2775 = vmatpush.bf16.msra.mxu0 %v2576
        %2776 = vmatmul.bf16.gmra.mxu0 %v2757
        %v2777 = vpop.f32.mrf.mxu0
        %v2778 = vadd.f32 %v2706, %v2777
        %v2779 = vpop.f32.mrf.mxu0
        %v2780 = vadd.f32 %v2710, %v2779
        %2781 = vmatmul.bf16.gmra.mxu0 %v2760
        %v2782 = vpop.f32.mrf.mxu0
        %v2783 = vadd.f32 %v2714, %v2782
        %v2784 = vpop.f32.mrf.mxu0
        %v2785 = vadd.f32 %v2718, %v2784
        %2786 = vmatmul.bf16.gmra.mxu0 %v2763
        %v2787 = vpop.f32.mrf.mxu0
        %v2788 = vadd.f32 %v2722, %v2787
        %v2789 = vpop.f32.mrf.mxu0
        %v2790 = vadd.f32 %v2726, %v2789
        %2791 = vmatmul.bf16.gmra.mxu0 %v2766
        %v2792 = vpop.f32.mrf.mxu0
        %v2793 = vadd.f32 %v2730, %v2792
        %v2794 = vpop.f32.mrf.mxu0
        %v2795 = vadd.f32 %v2734, %v2794
        %2796 = vdwg.mxu0
        %2797 = vmatpush.bf16.msra.mxu0 0
        %2798 = vmatpush.bf16.msra.mxu0 0
        %2799 = vmatpush.bf16.msra.mxu0 0
        %2800 = vmatpush.bf16.msra.mxu0 0
        %2801 = vmatpush.bf16.msra.mxu0 %v2673
        %2802 = vmatpush.bf16.msra.mxu0 %v2641
        %2803 = vmatpush.bf16.msra.mxu0 %v2609
        %2804 = vmatpush.bf16.msra.mxu0 %v2577
        %2805 = vmatmul.bf16.gmra.mxu0 %v2757
        %v2806 = vpop.f32.mrf.mxu0
        %v2807 = vadd.f32 %v2706, %v2806
        %v2808 = vpop.f32.mrf.mxu0
        %v2809 = vadd.f32 %v2710, %v2808
        %2810 = vmatmul.bf16.gmra.mxu0 %v2760
        %v2811 = vpop.f32.mrf.mxu0
        %v2812 = vadd.f32 %v2714, %v2811
        %v2813 = vpop.f32.mrf.mxu0
        %v2814 = vadd.f32 %v2718, %v2813
        %2815 = vmatmul.bf16.gmra.mxu0 %v2763
        %v2816 = vpop.f32.mrf.mxu0
        %v2817 = vadd.f32 %v2722, %v2816
        %v2818 = vpop.f32.mrf.mxu0
        %v2819 = vadd.f32 %v2726, %v2818
        %2820 = vmatmul.bf16.gmra.mxu0 %v2766
        %v2821 = vpop.f32.mrf.mxu0
        %v2822 = vadd.f32 %v2730, %v2821
        %v2823 = vpop.f32.mrf.mxu0
        %v2824 = vadd.f32 %v2734, %v2823
        %2825 = vdwg.mxu0
        %2826 = vmatpush.bf16.msra.mxu0 0
        %2827 = vmatpush.bf16.msra.mxu0 0
        %2828 = vmatpush.bf16.msra.mxu0 0
        %2829 = vmatpush.bf16.msra.mxu0 0
        %2830 = vmatpush.bf16.msra.mxu0 %v2674
        %2831 = vmatpush.bf16.msra.mxu0 %v2642
        %2832 = vmatpush.bf16.msra.mxu0 %v2610
        %2833 = vmatpush.bf16.msra.mxu0 %v2578
        %2834 = vmatmul.bf16.gmra.mxu0 %v2757
        %v2835 = vpop.f32.mrf.mxu0
        %v2836 = vadd.f32 %v2706, %v2835
        %v2837 = vpop.f32.mrf.mxu0
        %v2838 = vadd.f32 %v2710, %v2837
        %2839 = vmatmul.bf16.gmra.mxu0 %v2760
        %v2840 = vpop.f32.mrf.mxu0
        %v2841 = vadd.f32 %v2714, %v2840
        %v2842 = vpop.f32.mrf.mxu0
        %v2843 = vadd.f32 %v2718, %v2842
        %2844 = vmatmul.bf16.gmra.mxu0 %v2763
        %v2845 = vpop.f32.mrf.mxu0
        %v2846 = vadd.f32 %v2722, %v2845
        %v2847 = vpop.f32.mrf.mxu0
        %v2848 = vadd.f32 %v2726, %v2847
        %2849 = vmatmul.bf16.gmra.mxu0 %v2766
        %v2850 = vpop.f32.mrf.mxu0
        %v2851 = vadd.f32 %v2730, %v2850
        %v2852 = vpop.f32.mrf.mxu0
        %v2853 = vadd.f32 %v2734, %v2852
        %2854 = vdwg.mxu0
        %2855 = vmatpush.bf16.msra.mxu0 0
        %2856 = vmatpush.bf16.msra.mxu0 0
        %2857 = vmatpush.bf16.msra.mxu0 0
        %2858 = vmatpush.bf16.msra.mxu0 0
        %2859 = vmatpush.bf16.msra.mxu0 %v2675
        %2860 = vmatpush.bf16.msra.mxu0 %v2643
        %2861 = vmatpush.bf16.msra.mxu0 %v2611
        %2862 = vmatpush.bf16.msra.mxu0 %v2579
        %2863 = vmatmul.bf16.gmra.mxu0 %v2757
        %v2864 = vpop.f32.mrf.mxu0
        %v2865 = vadd.f32 %v2706, %v2864
        %v2866 = vpop.f32.mrf.mxu0
        %v2867 = vadd.f32 %v2710, %v2866
        %2868 = vmatmul.bf16.gmra.mxu0 %v2760
        %v2869 = vpop.f32.mrf.mxu0
        %v2870 = vadd.f32 %v2714, %v2869
        %v2871 = vpop.f32.mrf.mxu0
        %v2872 = vadd.f32 %v2718, %v2871
        %2873 = vmatmul.bf16.gmra.mxu0 %v2763
        %v2874 = vpop.f32.mrf.mxu0
        %v2875 = vadd.f32 %v2722, %v2874
        %v2876 = vpop.f32.mrf.mxu0
        %v2877 = vadd.f32 %v2726, %v2876
        %2878 = vmatmul.bf16.gmra.mxu0 %v2766
        %v2879 = vpop.f32.mrf.mxu0
        %v2880 = vadd.f32 %v2730, %v2879
        %v2881 = vpop.f32.mrf.mxu0
        %v2882 = vadd.f32 %v2734, %v2881
        %2883 = vdwg.mxu0
        %2884 = vmatpush.bf16.msra.mxu0 0
        %2885 = vmatpush.bf16.msra.mxu0 0
        %2886 = vmatpush.bf16.msra.mxu0 0
        %2887 = vmatpush.bf16.msra.mxu0 0
        %2888 = vmatpush.bf16.msra.mxu0 %v2676
        %2889 = vmatpush.bf16.msra.mxu0 %v2644
        %2890 = vmatpush.bf16.msra.mxu0 %v2612
        %2891 = vmatpush.bf16.msra.mxu0 %v2580
        %2892 = vmatmul.bf16.gmra.mxu0 %v2757
        %v2893 = vpop.f32.mrf.mxu0
        %v2894 = vadd.f32 %v2706, %v2893
        %v2895 = vpop.f32.mrf.mxu0
        %v2896 = vadd.f32 %v2710, %v2895
        %2897 = vmatmul.bf16.gmra.mxu0 %v2760
        %v2898 = vpop.f32.mrf.mxu0
        %v2899 = vadd.f32 %v2714, %v2898
        %v2900 = vpop.f32.mrf.mxu0
        %v2901 = vadd.f32 %v2718, %v2900
        %2902 = vmatmul.bf16.gmra.mxu0 %v2763
        %v2903 = vpop.f32.mrf.mxu0
        %v2904 = vadd.f32 %v2722, %v2903
        %v2905 = vpop.f32.mrf.mxu0
        %v2906 = vadd.f32 %v2726, %v2905
        %2907 = vmatmul.bf16.gmra.mxu0 %v2766
        %v2908 = vpop.f32.mrf.mxu0
        %v2909 = vadd.f32 %v2730, %v2908
        %v2910 = vpop.f32.mrf.mxu0
        %v2911 = vadd.f32 %v2734, %v2910
        %2912 = vdwg.mxu0
        %2913 = vmatpush.bf16.msra.mxu0 0
        %2914 = vmatpush.bf16.msra.mxu0 0
        %2915 = vmatpush.bf16.msra.mxu0 0
        %2916 = vmatpush.bf16.msra.mxu0 0
        %2917 = vmatpush.bf16.msra.mxu0 %v2677
        %2918 = vmatpush.bf16.msra.mxu0 %v2645
        %2919 = vmatpush.bf16.msra.mxu0 %v2613
        %2920 = vmatpush.bf16.msra.mxu0 %v2581
        %2921 = vmatmul.bf16.gmra.mxu0 %v2757
        %v2922 = vpop.f32.mrf.mxu0
        %v2923 = vadd.f32 %v2706, %v2922
        %v2924 = vpop.f32.mrf.mxu0
        %v2925 = vadd.f32 %v2710, %v2924
        %2926 = vmatmul.bf16.gmra.mxu0 %v2760
        %v2927 = vpop.f32.mrf.mxu0
        %v2928 = vadd.f32 %v2714, %v2927
        %v2929 = vpop.f32.mrf.mxu0
        %v2930 = vadd.f32 %v2718, %v2929
        %2931 = vmatmul.bf16.gmra.mxu0 %v2763
        %v2932 = vpop.f32.mrf.mxu0
        %v2933 = vadd.f32 %v2722, %v2932
        %v2934 = vpop.f32.mrf.mxu0
        %v2935 = vadd.f32 %v2726, %v2934
        %2936 = vmatmul.bf16.gmra.mxu0 %v2766
        %v2937 = vpop.f32.mrf.mxu0
        %v2938 = vadd.f32 %v2730, %v2937
        %v2939 = vpop.f32.mrf.mxu0
        %v2940 = vadd.f32 %v2734, %v2939
        %2941 = vdwg.mxu0
        %2942 = vmatpush.bf16.msra.mxu0 0
        %2943 = vmatpush.bf16.msra.mxu0 0
        %2944 = vmatpush.bf16.msra.mxu0 0
        %2945 = vmatpush.bf16.msra.mxu0 0
        %2946 = vmatpush.bf16.msra.mxu0 %v2678
        %2947 = vmatpush.bf16.msra.mxu0 %v2646
        %2948 = vmatpush.bf16.msra.mxu0 %v2614
        %2949 = vmatpush.bf16.msra.mxu0 %v2582
        %2950 = vmatmul.bf16.gmra.mxu0 %v2757
        %v2951 = vpop.f32.mrf.mxu0
        %v2952 = vadd.f32 %v2706, %v2951
        %v2953 = vpop.f32.mrf.mxu0
        %v2954 = vadd.f32 %v2710, %v2953
        %2955 = vmatmul.bf16.gmra.mxu0 %v2760
        %v2956 = vpop.f32.mrf.mxu0
        %v2957 = vadd.f32 %v2714, %v2956
        %v2958 = vpop.f32.mrf.mxu0
        %v2959 = vadd.f32 %v2718, %v2958
        %2960 = vmatmul.bf16.gmra.mxu0 %v2763
        %v2961 = vpop.f32.mrf.mxu0
        %v2962 = vadd.f32 %v2722, %v2961
        %v2963 = vpop.f32.mrf.mxu0
        %v2964 = vadd.f32 %v2726, %v2963
        %2965 = vmatmul.bf16.gmra.mxu0 %v2766
        %v2966 = vpop.f32.mrf.mxu0
        %v2967 = vadd.f32 %v2730, %v2966
        %v2968 = vpop.f32.mrf.mxu0
        %v2969 = vadd.f32 %v2734, %v2968
        %2970 = vdwg.mxu0
        %2971 = vmatpush.bf16.msra.mxu0 0
        %2972 = vmatpush.bf16.msra.mxu0 0
        %2973 = vmatpush.bf16.msra.mxu0 0
        %2974 = vmatpush.bf16.msra.mxu0 0
        %2975 = vmatpush.bf16.msra.mxu0 %v2679
        %2976 = vmatpush.bf16.msra.mxu0 %v2647
        %2977 = vmatpush.bf16.msra.mxu0 %v2615
        %2978 = vmatpush.bf16.msra.mxu0 %v2583
        %2979 = vmatmul.bf16.gmra.mxu0 %v2757
        %v2980 = vpop.f32.mrf.mxu0
        %v2981 = vadd.f32 %v2706, %v2980
        %v2982 = vpop.f32.mrf.mxu0
        %v2983 = vadd.f32 %v2710, %v2982
        %2984 = vmatmul.bf16.gmra.mxu0 %v2760
        %v2985 = vpop.f32.mrf.mxu0
        %v2986 = vadd.f32 %v2714, %v2985
        %v2987 = vpop.f32.mrf.mxu0
        %v2988 = vadd.f32 %v2718, %v2987
        %2989 = vmatmul.bf16.gmra.mxu0 %v2763
        %v2990 = vpop.f32.mrf.mxu0
        %v2991 = vadd.f32 %v2722, %v2990
        %v2992 = vpop.f32.mrf.mxu0
        %v2993 = vadd.f32 %v2726, %v2992
        %2994 = vmatmul.bf16.gmra.mxu0 %v2766
        %v2995 = vpop.f32.mrf.mxu0
        %v2996 = vadd.f32 %v2730, %v2995
        %v2997 = vpop.f32.mrf.mxu0
        %v2998 = vadd.f32 %v2734, %v2997
        %2999 = vdwg.mxu0
        %3000 = vmatpush.bf16.msra.mxu0 0
        %3001 = vmatpush.bf16.msra.mxu0 0
        %3002 = vmatpush.bf16.msra.mxu0 0
        %3003 = vmatpush.bf16.msra.mxu0 0
        %3004 = vmatpush.bf16.msra.mxu0 %v2680
        %3005 = vmatpush.bf16.msra.mxu0 %v2648
        %3006 = vmatpush.bf16.msra.mxu0 %v2616
        %3007 = vmatpush.bf16.msra.mxu0 %v2584
        %3008 = vmatmul.bf16.gmra.mxu0 %v2757
        %v3009 = vpop.f32.mrf.mxu0
        %v3010 = vadd.f32 %v2706, %v3009
        %v3011 = vpop.f32.mrf.mxu0
        %v3012 = vadd.f32 %v2710, %v3011
        %3013 = vmatmul.bf16.gmra.mxu0 %v2760
        %v3014 = vpop.f32.mrf.mxu0
        %v3015 = vadd.f32 %v2714, %v3014
        %v3016 = vpop.f32.mrf.mxu0
        %v3017 = vadd.f32 %v2718, %v3016
        %3018 = vmatmul.bf16.gmra.mxu0 %v2763
        %v3019 = vpop.f32.mrf.mxu0
        %v3020 = vadd.f32 %v2722, %v3019
        %v3021 = vpop.f32.mrf.mxu0
        %v3022 = vadd.f32 %v2726, %v3021
        %3023 = vmatmul.bf16.gmra.mxu0 %v2766
        %v3024 = vpop.f32.mrf.mxu0
        %v3025 = vadd.f32 %v2730, %v3024
        %v3026 = vpop.f32.mrf.mxu0
        %v3027 = vadd.f32 %v2734, %v3026
        %3028 = vdwg.mxu0
        %3029 = vmatpush.bf16.msra.mxu0 0
        %3030 = vmatpush.bf16.msra.mxu0 0
        %3031 = vmatpush.bf16.msra.mxu0 0
        %3032 = vmatpush.bf16.msra.mxu0 0
        %3033 = vmatpush.bf16.msra.mxu0 %v2681
        %3034 = vmatpush.bf16.msra.mxu0 %v2649
        %3035 = vmatpush.bf16.msra.mxu0 %v2617
        %3036 = vmatpush.bf16.msra.mxu0 %v2585
        %3037 = vmatmul.bf16.gmra.mxu0 %v2757
        %v3038 = vpop.f32.mrf.mxu0
        %v3039 = vadd.f32 %v2706, %v3038
        %v3040 = vpop.f32.mrf.mxu0
        %v3041 = vadd.f32 %v2710, %v3040
        %3042 = vmatmul.bf16.gmra.mxu0 %v2760
        %v3043 = vpop.f32.mrf.mxu0
        %v3044 = vadd.f32 %v2714, %v3043
        %v3045 = vpop.f32.mrf.mxu0
        %v3046 = vadd.f32 %v2718, %v3045
        %3047 = vmatmul.bf16.gmra.mxu0 %v2763
        %v3048 = vpop.f32.mrf.mxu0
        %v3049 = vadd.f32 %v2722, %v3048
        %v3050 = vpop.f32.mrf.mxu0
        %v3051 = vadd.f32 %v2726, %v3050
        %3052 = vmatmul.bf16.gmra.mxu0 %v2766
        %v3053 = vpop.f32.mrf.mxu0
        %v3054 = vadd.f32 %v2730, %v3053
        %v3055 = vpop.f32.mrf.mxu0
        %v3056 = vadd.f32 %v2734, %v3055
        %3057 = vdwg.mxu0
        %3058 = vmatpush.bf16.msra.mxu0 0
        %3059 = vmatpush.bf16.msra.mxu0 0
        %3060 = vmatpush.bf16.msra.mxu0 0
        %3061 = vmatpush.bf16.msra.mxu0 0
        %3062 = vmatpush.bf16.msra.mxu0 %v2682
        %3063 = vmatpush.bf16.msra.mxu0 %v2650
        %3064 = vmatpush.bf16.msra.mxu0 %v2618
        %3065 = vmatpush.bf16.msra.mxu0 %v2586
        %3066 = vmatmul.bf16.gmra.mxu0 %v2757
        %v3067 = vpop.f32.mrf.mxu0
        %v3068 = vadd.f32 %v2706, %v3067
        %v3069 = vpop.f32.mrf.mxu0
        %v3070 = vadd.f32 %v2710, %v3069
        %3071 = vmatmul.bf16.gmra.mxu0 %v2760
        %v3072 = vpop.f32.mrf.mxu0
        %v3073 = vadd.f32 %v2714, %v3072
        %v3074 = vpop.f32.mrf.mxu0
        %v3075 = vadd.f32 %v2718, %v3074
        %3076 = vmatmul.bf16.gmra.mxu0 %v2763
        %v3077 = vpop.f32.mrf.mxu0
        %v3078 = vadd.f32 %v2722, %v3077
        %v3079 = vpop.f32.mrf.mxu0
        %v3080 = vadd.f32 %v2726, %v3079
        %3081 = vmatmul.bf16.gmra.mxu0 %v2766
        %v3082 = vpop.f32.mrf.mxu0
        %v3083 = vadd.f32 %v2730, %v3082
        %v3084 = vpop.f32.mrf.mxu0
        %v3085 = vadd.f32 %v2734, %v3084
        %3086 = vdwg.mxu0
        %3087 = vmatpush.bf16.msra.mxu0 0
        %3088 = vmatpush.bf16.msra.mxu0 0
        %3089 = vmatpush.bf16.msra.mxu0 0
        %3090 = vmatpush.bf16.msra.mxu0 0
        %3091 = vmatpush.bf16.msra.mxu0 %v2683
        %3092 = vmatpush.bf16.msra.mxu0 %v2651
        %3093 = vmatpush.bf16.msra.mxu0 %v2619
        %3094 = vmatpush.bf16.msra.mxu0 %v2587
        %3095 = vmatmul.bf16.gmra.mxu0 %v2757
        %v3096 = vpop.f32.mrf.mxu0
        %v3097 = vadd.f32 %v2706, %v3096
        %v3098 = vpop.f32.mrf.mxu0
        %v3099 = vadd.f32 %v2710, %v3098
        %3100 = vmatmul.bf16.gmra.mxu0 %v2760
        %v3101 = vpop.f32.mrf.mxu0
        %v3102 = vadd.f32 %v2714, %v3101
        %v3103 = vpop.f32.mrf.mxu0
        %v3104 = vadd.f32 %v2718, %v3103
        %3105 = vmatmul.bf16.gmra.mxu0 %v2763
        %v3106 = vpop.f32.mrf.mxu0
        %v3107 = vadd.f32 %v2722, %v3106
        %v3108 = vpop.f32.mrf.mxu0
        %v3109 = vadd.f32 %v2726, %v3108
        %3110 = vmatmul.bf16.gmra.mxu0 %v2766
        %v3111 = vpop.f32.mrf.mxu0
        %v3112 = vadd.f32 %v2730, %v3111
        %v3113 = vpop.f32.mrf.mxu0
        %v3114 = vadd.f32 %v2734, %v3113
        %3115 = vdwg.mxu0
        %3116 = vmatpush.bf16.msra.mxu0 0
        %3117 = vmatpush.bf16.msra.mxu0 0
        %3118 = vmatpush.bf16.msra.mxu0 0
        %3119 = vmatpush.bf16.msra.mxu0 0
        %3120 = vmatpush.bf16.msra.mxu0 %v2684
        %3121 = vmatpush.bf16.msra.mxu0 %v2652
        %3122 = vmatpush.bf16.msra.mxu0 %v2620
        %3123 = vmatpush.bf16.msra.mxu0 %v2588
        %3124 = vmatmul.bf16.gmra.mxu0 %v2757
        %v3125 = vpop.f32.mrf.mxu0
        %v3126 = vadd.f32 %v2706, %v3125
        %v3127 = vpop.f32.mrf.mxu0
        %v3128 = vadd.f32 %v2710, %v3127
        %3129 = vmatmul.bf16.gmra.mxu0 %v2760
        %v3130 = vpop.f32.mrf.mxu0
        %v3131 = vadd.f32 %v2714, %v3130
        %v3132 = vpop.f32.mrf.mxu0
        %v3133 = vadd.f32 %v2718, %v3132
        %3134 = vmatmul.bf16.gmra.mxu0 %v2763
        %v3135 = vpop.f32.mrf.mxu0
        %v3136 = vadd.f32 %v2722, %v3135
        %v3137 = vpop.f32.mrf.mxu0
        %v3138 = vadd.f32 %v2726, %v3137
        %3139 = vmatmul.bf16.gmra.mxu0 %v2766
        %v3140 = vpop.f32.mrf.mxu0
        %v3141 = vadd.f32 %v2730, %v3140
        %v3142 = vpop.f32.mrf.mxu0
        %v3143 = vadd.f32 %v2734, %v3142
        %3144 = vdwg.mxu0
        %3145 = vmatpush.bf16.msra.mxu0 0
        %3146 = vmatpush.bf16.msra.mxu0 0
        %3147 = vmatpush.bf16.msra.mxu0 0
        %3148 = vmatpush.bf16.msra.mxu0 0
        %3149 = vmatpush.bf16.msra.mxu0 %v2685
        %3150 = vmatpush.bf16.msra.mxu0 %v2653
        %3151 = vmatpush.bf16.msra.mxu0 %v2621
        %3152 = vmatpush.bf16.msra.mxu0 %v2589
        %3153 = vmatmul.bf16.gmra.mxu0 %v2757
        %v3154 = vpop.f32.mrf.mxu0
        %v3155 = vadd.f32 %v2706, %v3154
        %v3156 = vpop.f32.mrf.mxu0
        %v3157 = vadd.f32 %v2710, %v3156
        %3158 = vmatmul.bf16.gmra.mxu0 %v2760
        %v3159 = vpop.f32.mrf.mxu0
        %v3160 = vadd.f32 %v2714, %v3159
        %v3161 = vpop.f32.mrf.mxu0
        %v3162 = vadd.f32 %v2718, %v3161
        %3163 = vmatmul.bf16.gmra.mxu0 %v2763
        %v3164 = vpop.f32.mrf.mxu0
        %v3165 = vadd.f32 %v2722, %v3164
        %v3166 = vpop.f32.mrf.mxu0
        %v3167 = vadd.f32 %v2726, %v3166
        %3168 = vmatmul.bf16.gmra.mxu0 %v2766
        %v3169 = vpop.f32.mrf.mxu0
        %v3170 = vadd.f32 %v2730, %v3169
        %v3171 = vpop.f32.mrf.mxu0
        %v3172 = vadd.f32 %v2734, %v3171
        %3173 = vdwg.mxu0
        %3174 = vmatpush.bf16.msra.mxu0 0
        %3175 = vmatpush.bf16.msra.mxu0 0
        %3176 = vmatpush.bf16.msra.mxu0 0
        %3177 = vmatpush.bf16.msra.mxu0 0
        %3178 = vmatpush.bf16.msra.mxu0 %v2686
        %3179 = vmatpush.bf16.msra.mxu0 %v2654
        %3180 = vmatpush.bf16.msra.mxu0 %v2622
        %3181 = vmatpush.bf16.msra.mxu0 %v2590
        %3182 = vmatmul.bf16.gmra.mxu0 %v2757
        %v3183 = vpop.f32.mrf.mxu0
        %v3184 = vadd.f32 %v2706, %v3183
        %v3185 = vpop.f32.mrf.mxu0
        %v3186 = vadd.f32 %v2710, %v3185
        %3187 = vmatmul.bf16.gmra.mxu0 %v2760
        %v3188 = vpop.f32.mrf.mxu0
        %v3189 = vadd.f32 %v2714, %v3188
        %v3190 = vpop.f32.mrf.mxu0
        %v3191 = vadd.f32 %v2718, %v3190
        %3192 = vmatmul.bf16.gmra.mxu0 %v2763
        %v3193 = vpop.f32.mrf.mxu0
        %v3194 = vadd.f32 %v2722, %v3193
        %v3195 = vpop.f32.mrf.mxu0
        %v3196 = vadd.f32 %v2726, %v3195
        %3197 = vmatmul.bf16.gmra.mxu0 %v2766
        %v3198 = vpop.f32.mrf.mxu0
        %v3199 = vadd.f32 %v2730, %v3198
        %v3200 = vpop.f32.mrf.mxu0
        %v3201 = vadd.f32 %v2734, %v3200
        %3202 = vdwg.mxu0
        %3203 = vmatpush.bf16.msra.mxu0 0
        %3204 = vmatpush.bf16.msra.mxu0 0
        %3205 = vmatpush.bf16.msra.mxu0 0
        %3206 = vmatpush.bf16.msra.mxu0 0
        %3207 = vmatpush.bf16.msra.mxu0 %v2687
        %3208 = vmatpush.bf16.msra.mxu0 %v2655
        %3209 = vmatpush.bf16.msra.mxu0 %v2623
        %3210 = vmatpush.bf16.msra.mxu0 %v2591
        %3211 = vmatmul.bf16.gmra.mxu0 %v2757
        %v3212 = vpop.f32.mrf.mxu0
        %v3213 = vadd.f32 %v2706, %v3212
        %v3214 = vpop.f32.mrf.mxu0
        %v3215 = vadd.f32 %v2710, %v3214
        %3216 = vmatmul.bf16.gmra.mxu0 %v2760
        %v3217 = vpop.f32.mrf.mxu0
        %v3218 = vadd.f32 %v2714, %v3217
        %v3219 = vpop.f32.mrf.mxu0
        %v3220 = vadd.f32 %v2718, %v3219
        %3221 = vmatmul.bf16.gmra.mxu0 %v2763
        %v3222 = vpop.f32.mrf.mxu0
        %v3223 = vadd.f32 %v2722, %v3222
        %v3224 = vpop.f32.mrf.mxu0
        %v3225 = vadd.f32 %v2726, %v3224
        %3226 = vmatmul.bf16.gmra.mxu0 %v2766
        %v3227 = vpop.f32.mrf.mxu0
        %v3228 = vadd.f32 %v2730, %v3227
        %v3229 = vpop.f32.mrf.mxu0
        %v3230 = vadd.f32 %v2734, %v3229
        %3231 = vdwg.mxu0
        %3232 = vmatpush.bf16.msra.mxu0 0
        %3233 = vmatpush.bf16.msra.mxu0 0
        %3234 = vmatpush.bf16.msra.mxu0 0
        %3235 = vmatpush.bf16.msra.mxu0 0
        %3236 = vmatpush.bf16.msra.mxu0 %v2688
        %3237 = vmatpush.bf16.msra.mxu0 %v2656
        %3238 = vmatpush.bf16.msra.mxu0 %v2624
        %3239 = vmatpush.bf16.msra.mxu0 %v2592
        %3240 = vmatmul.bf16.gmra.mxu0 %v2757
        %v3241 = vpop.f32.mrf.mxu0
        %v3242 = vadd.f32 %v2706, %v3241
        %v3243 = vpop.f32.mrf.mxu0
        %v3244 = vadd.f32 %v2710, %v3243
        %3245 = vmatmul.bf16.gmra.mxu0 %v2760
        %v3246 = vpop.f32.mrf.mxu0
        %v3247 = vadd.f32 %v2714, %v3246
        %v3248 = vpop.f32.mrf.mxu0
        %v3249 = vadd.f32 %v2718, %v3248
        %3250 = vmatmul.bf16.gmra.mxu0 %v2763
        %v3251 = vpop.f32.mrf.mxu0
        %v3252 = vadd.f32 %v2722, %v3251
        %v3253 = vpop.f32.mrf.mxu0
        %v3254 = vadd.f32 %v2726, %v3253
        %3255 = vmatmul.bf16.gmra.mxu0 %v2766
        %v3256 = vpop.f32.mrf.mxu0
        %v3257 = vadd.f32 %v2730, %v3256
        %v3258 = vpop.f32.mrf.mxu0
        %v3259 = vadd.f32 %v2734, %v3258
        %3260 = vdwg.mxu0
        %3261 = vmatpush.bf16.msra.mxu0 0
        %3262 = vmatpush.bf16.msra.mxu0 0
        %3263 = vmatpush.bf16.msra.mxu0 0
        %3264 = vmatpush.bf16.msra.mxu0 0
        %3265 = vmatpush.bf16.msra.mxu0 %v2689
        %3266 = vmatpush.bf16.msra.mxu0 %v2657
        %3267 = vmatpush.bf16.msra.mxu0 %v2625
        %3268 = vmatpush.bf16.msra.mxu0 %v2593
        %3269 = vmatmul.bf16.gmra.mxu0 %v2757
        %v3270 = vpop.f32.mrf.mxu0
        %v3271 = vadd.f32 %v2706, %v3270
        %v3272 = vpop.f32.mrf.mxu0
        %v3273 = vadd.f32 %v2710, %v3272
        %3274 = vmatmul.bf16.gmra.mxu0 %v2760
        %v3275 = vpop.f32.mrf.mxu0
        %v3276 = vadd.f32 %v2714, %v3275
        %v3277 = vpop.f32.mrf.mxu0
        %v3278 = vadd.f32 %v2718, %v3277
        %3279 = vmatmul.bf16.gmra.mxu0 %v2763
        %v3280 = vpop.f32.mrf.mxu0
        %v3281 = vadd.f32 %v2722, %v3280
        %v3282 = vpop.f32.mrf.mxu0
        %v3283 = vadd.f32 %v2726, %v3282
        %3284 = vmatmul.bf16.gmra.mxu0 %v2766
        %v3285 = vpop.f32.mrf.mxu0
        %v3286 = vadd.f32 %v2730, %v3285
        %v3287 = vpop.f32.mrf.mxu0
        %v3288 = vadd.f32 %v2734, %v3287
        %3289 = vdwg.mxu0
        %3290 = vmatpush.bf16.msra.mxu0 0
        %3291 = vmatpush.bf16.msra.mxu0 0
        %3292 = vmatpush.bf16.msra.mxu0 0
        %3293 = vmatpush.bf16.msra.mxu0 0
        %3294 = vmatpush.bf16.msra.mxu0 %v2690
        %3295 = vmatpush.bf16.msra.mxu0 %v2658
        %3296 = vmatpush.bf16.msra.mxu0 %v2626
        %3297 = vmatpush.bf16.msra.mxu0 %v2594
        %3298 = vmatmul.bf16.gmra.mxu0 %v2757
        %v3299 = vpop.f32.mrf.mxu0
        %v3300 = vadd.f32 %v2706, %v3299
        %v3301 = vpop.f32.mrf.mxu0
        %v3302 = vadd.f32 %v2710, %v3301
        %3303 = vmatmul.bf16.gmra.mxu0 %v2760
        %v3304 = vpop.f32.mrf.mxu0
        %v3305 = vadd.f32 %v2714, %v3304
        %v3306 = vpop.f32.mrf.mxu0
        %v3307 = vadd.f32 %v2718, %v3306
        %3308 = vmatmul.bf16.gmra.mxu0 %v2763
        %v3309 = vpop.f32.mrf.mxu0
        %v3310 = vadd.f32 %v2722, %v3309
        %v3311 = vpop.f32.mrf.mxu0
        %v3312 = vadd.f32 %v2726, %v3311
        %3313 = vmatmul.bf16.gmra.mxu0 %v2766
        %v3314 = vpop.f32.mrf.mxu0
        %v3315 = vadd.f32 %v2730, %v3314
        %v3316 = vpop.f32.mrf.mxu0
        %v3317 = vadd.f32 %v2734, %v3316
        %3318 = vdwg.mxu0
        %3319 = vmatpush.bf16.msra.mxu0 0
        %3320 = vmatpush.bf16.msra.mxu0 0
        %3321 = vmatpush.bf16.msra.mxu0 0
        %3322 = vmatpush.bf16.msra.mxu0 0
        %3323 = vmatpush.bf16.msra.mxu0 %v2691
        %3324 = vmatpush.bf16.msra.mxu0 %v2659
        %3325 = vmatpush.bf16.msra.mxu0 %v2627
        %3326 = vmatpush.bf16.msra.mxu0 %v2595
        %3327 = vmatmul.bf16.gmra.mxu0 %v2757
        %v3328 = vpop.f32.mrf.mxu0
        %v3329 = vadd.f32 %v2706, %v3328
        %v3330 = vpop.f32.mrf.mxu0
        %v3331 = vadd.f32 %v2710, %v3330
        %3332 = vmatmul.bf16.gmra.mxu0 %v2760
        %v3333 = vpop.f32.mrf.mxu0
        %v3334 = vadd.f32 %v2714, %v3333
        %v3335 = vpop.f32.mrf.mxu0
        %v3336 = vadd.f32 %v2718, %v3335
        %3337 = vmatmul.bf16.gmra.mxu0 %v2763
        %v3338 = vpop.f32.mrf.mxu0
        %v3339 = vadd.f32 %v2722, %v3338
        %v3340 = vpop.f32.mrf.mxu0
        %v3341 = vadd.f32 %v2726, %v3340
        %3342 = vmatmul.bf16.gmra.mxu0 %v2766
        %v3343 = vpop.f32.mrf.mxu0
        %v3344 = vadd.f32 %v2730, %v3343
        %v3345 = vpop.f32.mrf.mxu0
        %v3346 = vadd.f32 %v2734, %v3345
        %3347 = vdwg.mxu0
        %3348 = vmatpush.bf16.msra.mxu0 0
        %3349 = vmatpush.bf16.msra.mxu0 0
        %3350 = vmatpush.bf16.msra.mxu0 0
        %3351 = vmatpush.bf16.msra.mxu0 0
        %3352 = vmatpush.bf16.msra.mxu0 %v2692
        %3353 = vmatpush.bf16.msra.mxu0 %v2660
        %3354 = vmatpush.bf16.msra.mxu0 %v2628
        %3355 = vmatpush.bf16.msra.mxu0 %v2596
        %3356 = vmatmul.bf16.gmra.mxu0 %v2757
        %v3357 = vpop.f32.mrf.mxu0
        %v3358 = vadd.f32 %v2706, %v3357
        %v3359 = vpop.f32.mrf.mxu0
        %v3360 = vadd.f32 %v2710, %v3359
        %3361 = vmatmul.bf16.gmra.mxu0 %v2760
        %v3362 = vpop.f32.mrf.mxu0
        %v3363 = vadd.f32 %v2714, %v3362
        %v3364 = vpop.f32.mrf.mxu0
        %v3365 = vadd.f32 %v2718, %v3364
        %3366 = vmatmul.bf16.gmra.mxu0 %v2763
        %v3367 = vpop.f32.mrf.mxu0
        %v3368 = vadd.f32 %v2722, %v3367
        %v3369 = vpop.f32.mrf.mxu0
        %v3370 = vadd.f32 %v2726, %v3369
        %3371 = vmatmul.bf16.gmra.mxu0 %v2766
        %v3372 = vpop.f32.mrf.mxu0
        %v3373 = vadd.f32 %v2730, %v3372
        %v3374 = vpop.f32.mrf.mxu0
        %v3375 = vadd.f32 %v2734, %v3374
        %3376 = vdwg.mxu0
        %3377 = vmatpush.bf16.msra.mxu0 0
        %3378 = vmatpush.bf16.msra.mxu0 0
        %3379 = vmatpush.bf16.msra.mxu0 0
        %3380 = vmatpush.bf16.msra.mxu0 0
        %3381 = vmatpush.bf16.msra.mxu0 %v2693
        %3382 = vmatpush.bf16.msra.mxu0 %v2661
        %3383 = vmatpush.bf16.msra.mxu0 %v2629
        %3384 = vmatpush.bf16.msra.mxu0 %v2597
        %3385 = vmatmul.bf16.gmra.mxu0 %v2757
        %v3386 = vpop.f32.mrf.mxu0
        %v3387 = vadd.f32 %v2706, %v3386
        %v3388 = vpop.f32.mrf.mxu0
        %v3389 = vadd.f32 %v2710, %v3388
        %3390 = vmatmul.bf16.gmra.mxu0 %v2760
        %v3391 = vpop.f32.mrf.mxu0
        %v3392 = vadd.f32 %v2714, %v3391
        %v3393 = vpop.f32.mrf.mxu0
        %v3394 = vadd.f32 %v2718, %v3393
        %3395 = vmatmul.bf16.gmra.mxu0 %v2763
        %v3396 = vpop.f32.mrf.mxu0
        %v3397 = vadd.f32 %v2722, %v3396
        %v3398 = vpop.f32.mrf.mxu0
        %v3399 = vadd.f32 %v2726, %v3398
        %3400 = vmatmul.bf16.gmra.mxu0 %v2766
        %v3401 = vpop.f32.mrf.mxu0
        %v3402 = vadd.f32 %v2730, %v3401
        %v3403 = vpop.f32.mrf.mxu0
        %v3404 = vadd.f32 %v2734, %v3403
        %3405 = vdwg.mxu0
        %3406 = vmatpush.bf16.msra.mxu0 0
        %3407 = vmatpush.bf16.msra.mxu0 0
        %3408 = vmatpush.bf16.msra.mxu0 0
        %3409 = vmatpush.bf16.msra.mxu0 0
        %3410 = vmatpush.bf16.msra.mxu0 %v2694
        %3411 = vmatpush.bf16.msra.mxu0 %v2662
        %3412 = vmatpush.bf16.msra.mxu0 %v2630
        %3413 = vmatpush.bf16.msra.mxu0 %v2598
        %3414 = vmatmul.bf16.gmra.mxu0 %v2757
        %v3415 = vpop.f32.mrf.mxu0
        %v3416 = vadd.f32 %v2706, %v3415
        %v3417 = vpop.f32.mrf.mxu0
        %v3418 = vadd.f32 %v2710, %v3417
        %3419 = vmatmul.bf16.gmra.mxu0 %v2760
        %v3420 = vpop.f32.mrf.mxu0
        %v3421 = vadd.f32 %v2714, %v3420
        %v3422 = vpop.f32.mrf.mxu0
        %v3423 = vadd.f32 %v2718, %v3422
        %3424 = vmatmul.bf16.gmra.mxu0 %v2763
        %v3425 = vpop.f32.mrf.mxu0
        %v3426 = vadd.f32 %v2722, %v3425
        %v3427 = vpop.f32.mrf.mxu0
        %v3428 = vadd.f32 %v2726, %v3427
        %3429 = vmatmul.bf16.gmra.mxu0 %v2766
        %v3430 = vpop.f32.mrf.mxu0
        %v3431 = vadd.f32 %v2730, %v3430
        %v3432 = vpop.f32.mrf.mxu0
        %v3433 = vadd.f32 %v2734, %v3432
        %3434 = vdwg.mxu0
        %3435 = vmatpush.bf16.msra.mxu0 0
        %3436 = vmatpush.bf16.msra.mxu0 0
        %3437 = vmatpush.bf16.msra.mxu0 0
        %3438 = vmatpush.bf16.msra.mxu0 0
        %3439 = vmatpush.bf16.msra.mxu0 %v2695
        %3440 = vmatpush.bf16.msra.mxu0 %v2663
        %3441 = vmatpush.bf16.msra.mxu0 %v2631
        %3442 = vmatpush.bf16.msra.mxu0 %v2599
        %3443 = vmatmul.bf16.gmra.mxu0 %v2757
        %v3444 = vpop.f32.mrf.mxu0
        %v3445 = vadd.f32 %v2706, %v3444
        %v3446 = vpop.f32.mrf.mxu0
        %v3447 = vadd.f32 %v2710, %v3446
        %3448 = vmatmul.bf16.gmra.mxu0 %v2760
        %v3449 = vpop.f32.mrf.mxu0
        %v3450 = vadd.f32 %v2714, %v3449
        %v3451 = vpop.f32.mrf.mxu0
        %v3452 = vadd.f32 %v2718, %v3451
        %3453 = vmatmul.bf16.gmra.mxu0 %v2763
        %v3454 = vpop.f32.mrf.mxu0
        %v3455 = vadd.f32 %v2722, %v3454
        %v3456 = vpop.f32.mrf.mxu0
        %v3457 = vadd.f32 %v2726, %v3456
        %3458 = vmatmul.bf16.gmra.mxu0 %v2766
        %v3459 = vpop.f32.mrf.mxu0
        %v3460 = vadd.f32 %v2730, %v3459
        %v3461 = vpop.f32.mrf.mxu0
        %v3462 = vadd.f32 %v2734, %v3461
        %3463 = vdwg.mxu0
        %3464 = vmatpush.bf16.msra.mxu0 0
        %3465 = vmatpush.bf16.msra.mxu0 0
        %3466 = vmatpush.bf16.msra.mxu0 0
        %3467 = vmatpush.bf16.msra.mxu0 0
        %3468 = vmatpush.bf16.msra.mxu0 %v2696
        %3469 = vmatpush.bf16.msra.mxu0 %v2664
        %3470 = vmatpush.bf16.msra.mxu0 %v2632
        %3471 = vmatpush.bf16.msra.mxu0 %v2600
        %3472 = vmatmul.bf16.gmra.mxu0 %v2757
        %v3473 = vpop.f32.mrf.mxu0
        %v3474 = vadd.f32 %v2706, %v3473
        %v3475 = vpop.f32.mrf.mxu0
        %v3476 = vadd.f32 %v2710, %v3475
        %3477 = vmatmul.bf16.gmra.mxu0 %v2760
        %v3478 = vpop.f32.mrf.mxu0
        %v3479 = vadd.f32 %v2714, %v3478
        %v3480 = vpop.f32.mrf.mxu0
        %v3481 = vadd.f32 %v2718, %v3480
        %3482 = vmatmul.bf16.gmra.mxu0 %v2763
        %v3483 = vpop.f32.mrf.mxu0
        %v3484 = vadd.f32 %v2722, %v3483
        %v3485 = vpop.f32.mrf.mxu0
        %v3486 = vadd.f32 %v2726, %v3485
        %3487 = vmatmul.bf16.gmra.mxu0 %v2766
        %v3488 = vpop.f32.mrf.mxu0
        %v3489 = vadd.f32 %v2730, %v3488
        %v3490 = vpop.f32.mrf.mxu0
        %v3491 = vadd.f32 %v2734, %v3490
        %3492 = vdwg.mxu0
        %3493 = vmatpush.bf16.msra.mxu0 0
        %3494 = vmatpush.bf16.msra.mxu0 0
        %3495 = vmatpush.bf16.msra.mxu0 0
        %3496 = vmatpush.bf16.msra.mxu0 0
        %3497 = vmatpush.bf16.msra.mxu0 %v2697
        %3498 = vmatpush.bf16.msra.mxu0 %v2665
        %3499 = vmatpush.bf16.msra.mxu0 %v2633
        %3500 = vmatpush.bf16.msra.mxu0 %v2601
        %3501 = vmatmul.bf16.gmra.mxu0 %v2757
        %v3502 = vpop.f32.mrf.mxu0
        %v3503 = vadd.f32 %v2706, %v3502
        %v3504 = vpop.f32.mrf.mxu0
        %v3505 = vadd.f32 %v2710, %v3504
        %3506 = vmatmul.bf16.gmra.mxu0 %v2760
        %v3507 = vpop.f32.mrf.mxu0
        %v3508 = vadd.f32 %v2714, %v3507
        %v3509 = vpop.f32.mrf.mxu0
        %v3510 = vadd.f32 %v2718, %v3509
        %3511 = vmatmul.bf16.gmra.mxu0 %v2763
        %v3512 = vpop.f32.mrf.mxu0
        %v3513 = vadd.f32 %v2722, %v3512
        %v3514 = vpop.f32.mrf.mxu0
        %v3515 = vadd.f32 %v2726, %v3514
        %3516 = vmatmul.bf16.gmra.mxu0 %v2766
        %v3517 = vpop.f32.mrf.mxu0
        %v3518 = vadd.f32 %v2730, %v3517
        %v3519 = vpop.f32.mrf.mxu0
        %v3520 = vadd.f32 %v2734, %v3519
        %3521 = vdwg.mxu0
        %3522 = vmatpush.bf16.msra.mxu0 0
        %3523 = vmatpush.bf16.msra.mxu0 0
        %3524 = vmatpush.bf16.msra.mxu0 0
        %3525 = vmatpush.bf16.msra.mxu0 0
        %3526 = vmatpush.bf16.msra.mxu0 %v2698
        %3527 = vmatpush.bf16.msra.mxu0 %v2666
        %3528 = vmatpush.bf16.msra.mxu0 %v2634
        %3529 = vmatpush.bf16.msra.mxu0 %v2602
        %3530 = vmatmul.bf16.gmra.mxu0 %v2757
        %v3531 = vpop.f32.mrf.mxu0
        %v3532 = vadd.f32 %v2706, %v3531
        %v3533 = vpop.f32.mrf.mxu0
        %v3534 = vadd.f32 %v2710, %v3533
        %3535 = vmatmul.bf16.gmra.mxu0 %v2760
        %v3536 = vpop.f32.mrf.mxu0
        %v3537 = vadd.f32 %v2714, %v3536
        %v3538 = vpop.f32.mrf.mxu0
        %v3539 = vadd.f32 %v2718, %v3538
        %3540 = vmatmul.bf16.gmra.mxu0 %v2763
        %v3541 = vpop.f32.mrf.mxu0
        %v3542 = vadd.f32 %v2722, %v3541
        %v3543 = vpop.f32.mrf.mxu0
        %v3544 = vadd.f32 %v2726, %v3543
        %3545 = vmatmul.bf16.gmra.mxu0 %v2766
        %v3546 = vpop.f32.mrf.mxu0
        %v3547 = vadd.f32 %v2730, %v3546
        %v3548 = vpop.f32.mrf.mxu0
        %v3549 = vadd.f32 %v2734, %v3548
        %3550 = vdwg.mxu0
        %3551 = vmatpush.bf16.msra.mxu0 0
        %3552 = vmatpush.bf16.msra.mxu0 0
        %3553 = vmatpush.bf16.msra.mxu0 0
        %3554 = vmatpush.bf16.msra.mxu0 0
        %3555 = vmatpush.bf16.msra.mxu0 %v2699
        %3556 = vmatpush.bf16.msra.mxu0 %v2667
        %3557 = vmatpush.bf16.msra.mxu0 %v2635
        %3558 = vmatpush.bf16.msra.mxu0 %v2603
        %3559 = vmatmul.bf16.gmra.mxu0 %v2757
        %v3560 = vpop.f32.mrf.mxu0
        %v3561 = vadd.f32 %v2706, %v3560
        %v3562 = vpop.f32.mrf.mxu0
        %v3563 = vadd.f32 %v2710, %v3562
        %3564 = vmatmul.bf16.gmra.mxu0 %v2760
        %v3565 = vpop.f32.mrf.mxu0
        %v3566 = vadd.f32 %v2714, %v3565
        %v3567 = vpop.f32.mrf.mxu0
        %v3568 = vadd.f32 %v2718, %v3567
        %3569 = vmatmul.bf16.gmra.mxu0 %v2763
        %v3570 = vpop.f32.mrf.mxu0
        %v3571 = vadd.f32 %v2722, %v3570
        %v3572 = vpop.f32.mrf.mxu0
        %v3573 = vadd.f32 %v2726, %v3572
        %3574 = vmatmul.bf16.gmra.mxu0 %v2766
        %v3575 = vpop.f32.mrf.mxu0
        %v3576 = vadd.f32 %v2730, %v3575
        %v3577 = vpop.f32.mrf.mxu0
        %v3578 = vadd.f32 %v2734, %v3577
        %3579 = vdwg.mxu0
        %3580 = vmatpush.bf16.msra.mxu0 0
        %3581 = vmatpush.bf16.msra.mxu0 0
        %3582 = vmatpush.bf16.msra.mxu0 0
        %3583 = vmatpush.bf16.msra.mxu0 0
        %3584 = vmatpush.bf16.msra.mxu0 %v2700
        %3585 = vmatpush.bf16.msra.mxu0 %v2668
        %3586 = vmatpush.bf16.msra.mxu0 %v2636
        %3587 = vmatpush.bf16.msra.mxu0 %v2604
        %3588 = vmatmul.bf16.gmra.mxu0 %v2757
        %v3589 = vpop.f32.mrf.mxu0
        %v3590 = vadd.f32 %v2706, %v3589
        %v3591 = vpop.f32.mrf.mxu0
        %v3592 = vadd.f32 %v2710, %v3591
        %3593 = vmatmul.bf16.gmra.mxu0 %v2760
        %v3594 = vpop.f32.mrf.mxu0
        %v3595 = vadd.f32 %v2714, %v3594
        %v3596 = vpop.f32.mrf.mxu0
        %v3597 = vadd.f32 %v2718, %v3596
        %3598 = vmatmul.bf16.gmra.mxu0 %v2763
        %v3599 = vpop.f32.mrf.mxu0
        %v3600 = vadd.f32 %v2722, %v3599
        %v3601 = vpop.f32.mrf.mxu0
        %v3602 = vadd.f32 %v2726, %v3601
        %3603 = vmatmul.bf16.gmra.mxu0 %v2766
        %v3604 = vpop.f32.mrf.mxu0
        %v3605 = vadd.f32 %v2730, %v3604
        %v3606 = vpop.f32.mrf.mxu0
        %v3607 = vadd.f32 %v2734, %v3606
        %3608 = vdwg.mxu0
        %3609 = vmatpush.bf16.msra.mxu0 0
        %3610 = vmatpush.bf16.msra.mxu0 0
        %3611 = vmatpush.bf16.msra.mxu0 0
        %3612 = vmatpush.bf16.msra.mxu0 0
        %3613 = vmatpush.bf16.msra.mxu0 %v2701
        %3614 = vmatpush.bf16.msra.mxu0 %v2669
        %3615 = vmatpush.bf16.msra.mxu0 %v2637
        %3616 = vmatpush.bf16.msra.mxu0 %v2605
        %3617 = vmatmul.bf16.gmra.mxu0 %v2757
        %v3618 = vpop.f32.mrf.mxu0
        %v3619 = vadd.f32 %v2706, %v3618
        %v3620 = vpop.f32.mrf.mxu0
        %v3621 = vadd.f32 %v2710, %v3620
        %3622 = vmatmul.bf16.gmra.mxu0 %v2760
        %v3623 = vpop.f32.mrf.mxu0
        %v3624 = vadd.f32 %v2714, %v3623
        %v3625 = vpop.f32.mrf.mxu0
        %v3626 = vadd.f32 %v2718, %v3625
        %3627 = vmatmul.bf16.gmra.mxu0 %v2763
        %v3628 = vpop.f32.mrf.mxu0
        %v3629 = vadd.f32 %v2722, %v3628
        %v3630 = vpop.f32.mrf.mxu0
        %v3631 = vadd.f32 %v2726, %v3630
        %3632 = vmatmul.bf16.gmra.mxu0 %v2766
        %v3633 = vpop.f32.mrf.mxu0
        %v3634 = vadd.f32 %v2730, %v3633
        %v3635 = vpop.f32.mrf.mxu0
        %v3636 = vadd.f32 %v2734, %v3635
        %3637 = vdwg.mxu0
        %3638 = vmatpush.bf16.msra.mxu0 0
        %3639 = vmatpush.bf16.msra.mxu0 0
        %3640 = vmatpush.bf16.msra.mxu0 0
        %3641 = vmatpush.bf16.msra.mxu0 0
        %3642 = vmatpush.bf16.msra.mxu0 %v2702
        %3643 = vmatpush.bf16.msra.mxu0 %v2670
        %3644 = vmatpush.bf16.msra.mxu0 %v2638
        %3645 = vmatpush.bf16.msra.mxu0 %v2606
        %3646 = vmatmul.bf16.gmra.mxu0 %v2757
        %v3647 = vpop.f32.mrf.mxu0
        %v3648 = vadd.f32 %v2706, %v3647
        %v3649 = vpop.f32.mrf.mxu0
        %v3650 = vadd.f32 %v2710, %v3649
        %3651 = vmatmul.bf16.gmra.mxu0 %v2760
        %v3652 = vpop.f32.mrf.mxu0
        %v3653 = vadd.f32 %v2714, %v3652
        %v3654 = vpop.f32.mrf.mxu0
        %v3655 = vadd.f32 %v2718, %v3654
        %3656 = vmatmul.bf16.gmra.mxu0 %v2763
        %v3657 = vpop.f32.mrf.mxu0
        %v3658 = vadd.f32 %v2722, %v3657
        %v3659 = vpop.f32.mrf.mxu0
        %v3660 = vadd.f32 %v2726, %v3659
        %3661 = vmatmul.bf16.gmra.mxu0 %v2766
        %v3662 = vpop.f32.mrf.mxu0
        %v3663 = vadd.f32 %v2730, %v3662
        %v3664 = vpop.f32.mrf.mxu0
        %v3665 = vadd.f32 %v2734, %v3664
        %3666 = vdwg.mxu0
        %3667 = vmatpush.bf16.msra.mxu0 0
        %3668 = vmatpush.bf16.msra.mxu0 0
        %3669 = vmatpush.bf16.msra.mxu0 0
        %3670 = vmatpush.bf16.msra.mxu0 0
        %3671 = vmatpush.bf16.msra.mxu0 %v2703
        %3672 = vmatpush.bf16.msra.mxu0 %v2671
        %3673 = vmatpush.bf16.msra.mxu0 %v2639
        %3674 = vmatpush.bf16.msra.mxu0 %v2607
        %3675 = vmatmul.bf16.gmra.mxu0 %v2757
        %v3676 = vpop.f32.mrf.mxu0
        %v3677 = vadd.f32 %v2706, %v3676
        %v3678 = vpop.f32.mrf.mxu0
        %v3679 = vadd.f32 %v2710, %v3678
        %3680 = vmatmul.bf16.gmra.mxu0 %v2760
        %v3681 = vpop.f32.mrf.mxu0
        %v3682 = vadd.f32 %v2714, %v3681
        %v3683 = vpop.f32.mrf.mxu0
        %v3684 = vadd.f32 %v2718, %v3683
        %3685 = vmatmul.bf16.gmra.mxu0 %v2763
        %v3686 = vpop.f32.mrf.mxu0
        %v3687 = vadd.f32 %v2722, %v3686
        %v3688 = vpop.f32.mrf.mxu0
        %v3689 = vadd.f32 %v2726, %v3688
        %3690 = vmatmul.bf16.gmra.mxu0 %v2766
        %v3691 = vpop.f32.mrf.mxu0
        %v3692 = vadd.f32 %v2730, %v3691
        %v3693 = vpop.f32.mrf.mxu0
        %v3694 = vadd.f32 %v2734, %v3693
        %3695 = vdwg.mxu0
        %v3696 = vmax.f32 %v2778, 0.0
        %v3697 = vmax.f32 %v2807, 0.0
        %v3698 = vmax.f32 %v2836, 0.0
        %v3699 = vmax.f32 %v2865, 0.0
        %v3700 = vmax.f32 %v2894, 0.0
        %v3701 = vmax.f32 %v2923, 0.0
        %v3702 = vmax.f32 %v2952, 0.0
        %v3703 = vmax.f32 %v2981, 0.0
        %v3704 = vmax.f32 %v3010, 0.0
        %v3705 = vmax.f32 %v3039, 0.0
        %v3706 = vmax.f32 %v3068, 0.0
        %v3707 = vmax.f32 %v3097, 0.0
        %v3708 = vmax.f32 %v3126, 0.0
        %v3709 = vmax.f32 %v3155, 0.0
        %v3710 = vmax.f32 %v3184, 0.0
        %v3711 = vmax.f32 %v3213, 0.0
        %v3712 = vmax.f32 %v3242, 0.0
        %v3713 = vmax.f32 %v3271, 0.0
        %v3714 = vmax.f32 %v3300, 0.0
        %v3715 = vmax.f32 %v3329, 0.0
        %v3716 = vmax.f32 %v3358, 0.0
        %v3717 = vmax.f32 %v3387, 0.0
        %v3718 = vmax.f32 %v3416, 0.0
        %v3719 = vmax.f32 %v3445, 0.0
        %v3720 = vmax.f32 %v3474, 0.0
        %v3721 = vmax.f32 %v3503, 0.0
        %v3722 = vmax.f32 %v3532, 0.0
        %v3723 = vmax.f32 %v3561, 0.0
        %v3724 = vmax.f32 %v3590, 0.0
        %v3725 = vmax.f32 %v3619, 0.0
        %v3726 = vmax.f32 %v3648, 0.0
        %v3727 = vmax.f32 %v3677, 0.0
        %v3728 = vmax.f32 %v2780, 0.0
        %v3729 = vmax.f32 %v2809, 0.0
        %v3730 = vmax.f32 %v2838, 0.0
        %v3731 = vmax.f32 %v2867, 0.0
        %v3732 = vmax.f32 %v2896, 0.0
        %v3733 = vmax.f32 %v2925, 0.0
        %v3734 = vmax.f32 %v2954, 0.0
        %v3735 = vmax.f32 %v2983, 0.0
        %v3736 = vmax.f32 %v3012, 0.0
        %v3737 = vmax.f32 %v3041, 0.0
        %v3738 = vmax.f32 %v3070, 0.0
        %v3739 = vmax.f32 %v3099, 0.0
        %v3740 = vmax.f32 %v3128, 0.0
        %v3741 = vmax.f32 %v3157, 0.0
        %v3742 = vmax.f32 %v3186, 0.0
        %v3743 = vmax.f32 %v3215, 0.0
        %v3744 = vmax.f32 %v3244, 0.0
        %v3745 = vmax.f32 %v3273, 0.0
        %v3746 = vmax.f32 %v3302, 0.0
        %v3747 = vmax.f32 %v3331, 0.0
        %v3748 = vmax.f32 %v3360, 0.0
        %v3749 = vmax.f32 %v3389, 0.0
        %v3750 = vmax.f32 %v3418, 0.0
        %v3751 = vmax.f32 %v3447, 0.0
        %v3752 = vmax.f32 %v3476, 0.0
        %v3753 = vmax.f32 %v3505, 0.0
        %v3754 = vmax.f32 %v3534, 0.0
        %v3755 = vmax.f32 %v3563, 0.0
        %v3756 = vmax.f32 %v3592, 0.0
        %v3757 = vmax.f32 %v3621, 0.0
        %v3758 = vmax.f32 %v3650, 0.0
        %v3759 = vmax.f32 %v3679, 0.0
        %v3760 = vmax.f32 %v2783, 0.0
        %v3761 = vmax.f32 %v2812, 0.0
        %v3762 = vmax.f32 %v2841, 0.0
        %v3763 = vmax.f32 %v2870, 0.0
        %v3764 = vmax.f32 %v2899, 0.0
        %v3765 = vmax.f32 %v2928, 0.0
        %v3766 = vmax.f32 %v2957, 0.0
        %v3767 = vmax.f32 %v2986, 0.0
        %v3768 = vmax.f32 %v3015, 0.0
        %v3769 = vmax.f32 %v3044, 0.0
        %v3770 = vmax.f32 %v3073, 0.0
        %v3771 = vmax.f32 %v3102, 0.0
        %v3772 = vmax.f32 %v3131, 0.0
        %v3773 = vmax.f32 %v3160, 0.0
        %v3774 = vmax.f32 %v3189, 0.0
        %v3775 = vmax.f32 %v3218, 0.0
        %v3776 = vmax.f32 %v3247, 0.0
        %v3777 = vmax.f32 %v3276, 0.0
        %v3778 = vmax.f32 %v3305, 0.0
        %v3779 = vmax.f32 %v3334, 0.0
        %v3780 = vmax.f32 %v3363, 0.0
        %v3781 = vmax.f32 %v3392, 0.0
        %v3782 = vmax.f32 %v3421, 0.0
        %v3783 = vmax.f32 %v3450, 0.0
        %v3784 = vmax.f32 %v3479, 0.0
        %v3785 = vmax.f32 %v3508, 0.0
        %v3786 = vmax.f32 %v3537, 0.0
        %v3787 = vmax.f32 %v3566, 0.0
        %v3788 = vmax.f32 %v3595, 0.0
        %v3789 = vmax.f32 %v3624, 0.0
        %v3790 = vmax.f32 %v3653, 0.0
        %v3791 = vmax.f32 %v3682, 0.0
        %v3792 = vmax.f32 %v2785, 0.0
        %v3793 = vmax.f32 %v2814, 0.0
        %v3794 = vmax.f32 %v2843, 0.0
        %v3795 = vmax.f32 %v2872, 0.0
        %v3796 = vmax.f32 %v2901, 0.0
        %v3797 = vmax.f32 %v2930, 0.0
        %v3798 = vmax.f32 %v2959, 0.0
        %v3799 = vmax.f32 %v2988, 0.0
        %v3800 = vmax.f32 %v3017, 0.0
        %v3801 = vmax.f32 %v3046, 0.0
        %v3802 = vmax.f32 %v3075, 0.0
        %v3803 = vmax.f32 %v3104, 0.0
        %v3804 = vmax.f32 %v3133, 0.0
        %v3805 = vmax.f32 %v3162, 0.0
        %v3806 = vmax.f32 %v3191, 0.0
        %v3807 = vmax.f32 %v3220, 0.0
        %v3808 = vmax.f32 %v3249, 0.0
        %v3809 = vmax.f32 %v3278, 0.0
        %v3810 = vmax.f32 %v3307, 0.0
        %v3811 = vmax.f32 %v3336, 0.0
        %v3812 = vmax.f32 %v3365, 0.0
        %v3813 = vmax.f32 %v3394, 0.0
        %v3814 = vmax.f32 %v3423, 0.0
        %v3815 = vmax.f32 %v3452, 0.0
        %v3816 = vmax.f32 %v3481, 0.0
        %v3817 = vmax.f32 %v3510, 0.0
        %v3818 = vmax.f32 %v3539, 0.0
        %v3819 = vmax.f32 %v3568, 0.0
        %v3820 = vmax.f32 %v3597, 0.0
        %v3821 = vmax.f32 %v3626, 0.0
        %v3822 = vmax.f32 %v3655, 0.0
        %v3823 = vmax.f32 %v3684, 0.0
        %v3824 = vmax.f32 %v2788, 0.0
        %v3825 = vmax.f32 %v2817, 0.0
        %v3826 = vmax.f32 %v2846, 0.0
        %v3827 = vmax.f32 %v2875, 0.0
        %v3828 = vmax.f32 %v2904, 0.0
        %v3829 = vmax.f32 %v2933, 0.0
        %v3830 = vmax.f32 %v2962, 0.0
        %v3831 = vmax.f32 %v2991, 0.0
        %v3832 = vmax.f32 %v3020, 0.0
        %v3833 = vmax.f32 %v3049, 0.0
        %v3834 = vmax.f32 %v3078, 0.0
        %v3835 = vmax.f32 %v3107, 0.0
        %v3836 = vmax.f32 %v3136, 0.0
        %v3837 = vmax.f32 %v3165, 0.0
        %v3838 = vmax.f32 %v3194, 0.0
        %v3839 = vmax.f32 %v3223, 0.0
        %v3840 = vmax.f32 %v3252, 0.0
        %v3841 = vmax.f32 %v3281, 0.0
        %v3842 = vmax.f32 %v3310, 0.0
        %v3843 = vmax.f32 %v3339, 0.0
        %v3844 = vmax.f32 %v3368, 0.0
        %v3845 = vmax.f32 %v3397, 0.0
        %v3846 = vmax.f32 %v3426, 0.0
        %v3847 = vmax.f32 %v3455, 0.0
        %v3848 = vmax.f32 %v3484, 0.0
        %v3849 = vmax.f32 %v3513, 0.0
        %v3850 = vmax.f32 %v3542, 0.0
        %v3851 = vmax.f32 %v3571, 0.0
        %v3852 = vmax.f32 %v3600, 0.0
        %v3853 = vmax.f32 %v3629, 0.0
        %v3854 = vmax.f32 %v3658, 0.0
        %v3855 = vmax.f32 %v3687, 0.0
        %v3856 = vmax.f32 %v2790, 0.0
        %v3857 = vmax.f32 %v2819, 0.0
        %v3858 = vmax.f32 %v2848, 0.0
        %v3859 = vmax.f32 %v2877, 0.0
        %v3860 = vmax.f32 %v2906, 0.0
        %v3861 = vmax.f32 %v2935, 0.0
        %v3862 = vmax.f32 %v2964, 0.0
        %v3863 = vmax.f32 %v2993, 0.0
        %v3864 = vmax.f32 %v3022, 0.0
        %v3865 = vmax.f32 %v3051, 0.0
        %v3866 = vmax.f32 %v3080, 0.0
        %v3867 = vmax.f32 %v3109, 0.0
        %v3868 = vmax.f32 %v3138, 0.0
        %v3869 = vmax.f32 %v3167, 0.0
        %v3870 = vmax.f32 %v3196, 0.0
        %v3871 = vmax.f32 %v3225, 0.0
        %v3872 = vmax.f32 %v3254, 0.0
        %v3873 = vmax.f32 %v3283, 0.0
        %v3874 = vmax.f32 %v3312, 0.0
        %v3875 = vmax.f32 %v3341, 0.0
        %v3876 = vmax.f32 %v3370, 0.0
        %v3877 = vmax.f32 %v3399, 0.0
        %v3878 = vmax.f32 %v3428, 0.0
        %v3879 = vmax.f32 %v3457, 0.0
        %v3880 = vmax.f32 %v3486, 0.0
        %v3881 = vmax.f32 %v3515, 0.0
        %v3882 = vmax.f32 %v3544, 0.0
        %v3883 = vmax.f32 %v3573, 0.0
        %v3884 = vmax.f32 %v3602, 0.0
        %v3885 = vmax.f32 %v3631, 0.0
        %v3886 = vmax.f32 %v3660, 0.0
        %v3887 = vmax.f32 %v3689, 0.0
        %v3888 = vmax.f32 %v2793, 0.0
        %v3889 = vmax.f32 %v2822, 0.0
        %v3890 = vmax.f32 %v2851, 0.0
        %v3891 = vmax.f32 %v2880, 0.0
        %v3892 = vmax.f32 %v2909, 0.0
        %v3893 = vmax.f32 %v2938, 0.0
        %v3894 = vmax.f32 %v2967, 0.0
        %v3895 = vmax.f32 %v2996, 0.0
        %v3896 = vmax.f32 %v3025, 0.0
        %v3897 = vmax.f32 %v3054, 0.0
        %v3898 = vmax.f32 %v3083, 0.0
        %v3899 = vmax.f32 %v3112, 0.0
        %v3900 = vmax.f32 %v3141, 0.0
        %v3901 = vmax.f32 %v3170, 0.0
        %v3902 = vmax.f32 %v3199, 0.0
        %v3903 = vmax.f32 %v3228, 0.0
        %v3904 = vmax.f32 %v3257, 0.0
        %v3905 = vmax.f32 %v3286, 0.0
        %v3906 = vmax.f32 %v3315, 0.0
        %v3907 = vmax.f32 %v3344, 0.0
        %v3908 = vmax.f32 %v3373, 0.0
        %v3909 = vmax.f32 %v3402, 0.0
        %v3910 = vmax.f32 %v3431, 0.0
        %v3911 = vmax.f32 %v3460, 0.0
        %v3912 = vmax.f32 %v3489, 0.0
        %v3913 = vmax.f32 %v3518, 0.0
        %v3914 = vmax.f32 %v3547, 0.0
        %v3915 = vmax.f32 %v3576, 0.0
        %v3916 = vmax.f32 %v3605, 0.0
        %v3917 = vmax.f32 %v3634, 0.0
        %v3918 = vmax.f32 %v3663, 0.0
        %v3919 = vmax.f32 %v3692, 0.0
        %v3920 = vmax.f32 %v2795, 0.0
        %v3921 = vmax.f32 %v2824, 0.0
        %v3922 = vmax.f32 %v2853, 0.0
        %v3923 = vmax.f32 %v2882, 0.0
        %v3924 = vmax.f32 %v2911, 0.0
        %v3925 = vmax.f32 %v2940, 0.0
        %v3926 = vmax.f32 %v2969, 0.0
        %v3927 = vmax.f32 %v2998, 0.0
        %v3928 = vmax.f32 %v3027, 0.0
        %v3929 = vmax.f32 %v3056, 0.0
        %v3930 = vmax.f32 %v3085, 0.0
        %v3931 = vmax.f32 %v3114, 0.0
        %v3932 = vmax.f32 %v3143, 0.0
        %v3933 = vmax.f32 %v3172, 0.0
        %v3934 = vmax.f32 %v3201, 0.0
        %v3935 = vmax.f32 %v3230, 0.0
        %v3936 = vmax.f32 %v3259, 0.0
        %v3937 = vmax.f32 %v3288, 0.0
        %v3938 = vmax.f32 %v3317, 0.0
        %v3939 = vmax.f32 %v3346, 0.0
        %v3940 = vmax.f32 %v3375, 0.0
        %v3941 = vmax.f32 %v3404, 0.0
        %v3942 = vmax.f32 %v3433, 0.0
        %v3943 = vmax.f32 %v3462, 0.0
        %v3944 = vmax.f32 %v3491, 0.0
        %v3945 = vmax.f32 %v3520, 0.0
        %v3946 = vmax.f32 %v3549, 0.0
        %v3947 = vmax.f32 %v3578, 0.0
        %v3948 = vmax.f32 %v3607, 0.0
        %v3949 = vmax.f32 %v3636, 0.0
        %v3950 = vmax.f32 %v3665, 0.0
        %v3951 = vmax.f32 %v3694, 0.0
        %v3952 = vadd.f32 %v3696, %v3728
        %v3953 = vadd.f32 %v3952, %v3760
        %v3954 = vadd.f32 %v3953, %v3792
        %v3955 = vadd.f32 %v3954, %v3824
        %v3956 = vadd.f32 %v3955, %v3856
        %v3957 = vadd.f32 %v3956, %v3888
        %v3958 = vadd.f32 %v3957, %v3920
        %v3959 = vrot.slane %v3958, 4
        %v3960 = vadd.f32 %v3958, %v3959
        %v3961 = vrot.slane %v3960, 2
        %v3962 = vadd.f32 %v3960, %v3961
        %v3963 = vrot.slane %v3962, 1
        %v3964 = vadd.f32 %v3962, %v3963
        %v3965 = vadd.f32 %v3697, %v3729
        %v3966 = vadd.f32 %v3965, %v3761
        %v3967 = vadd.f32 %v3966, %v3793
        %v3968 = vadd.f32 %v3967, %v3825
        %v3969 = vadd.f32 %v3968, %v3857
        %v3970 = vadd.f32 %v3969, %v3889
        %v3971 = vadd.f32 %v3970, %v3921
        %v3972 = vrot.slane %v3971, 4
        %v3973 = vadd.f32 %v3971, %v3972
        %v3974 = vrot.slane %v3973, 2
        %v3975 = vadd.f32 %v3973, %v3974
        %v3976 = vrot.slane %v3975, 1
        %v3977 = vadd.f32 %v3975, %v3976
        %v3978 = vadd.f32 %v3698, %v3730
        %v3979 = vadd.f32 %v3978, %v3762
        %v3980 = vadd.f32 %v3979, %v3794
        %v3981 = vadd.f32 %v3980, %v3826
        %v3982 = vadd.f32 %v3981, %v3858
        %v3983 = vadd.f32 %v3982, %v3890
        %v3984 = vadd.f32 %v3983, %v3922
        %v3985 = vrot.slane %v3984, 4
        %v3986 = vadd.f32 %v3984, %v3985
        %v3987 = vrot.slane %v3986, 2
        %v3988 = vadd.f32 %v3986, %v3987
        %v3989 = vrot.slane %v3988, 1
        %v3990 = vadd.f32 %v3988, %v3989
        %v3991 = vadd.f32 %v3699, %v3731
        %v3992 = vadd.f32 %v3991, %v3763
        %v3993 = vadd.f32 %v3992, %v3795
        %v3994 = vadd.f32 %v3993, %v3827
        %v3995 = vadd.f32 %v3994, %v3859
        %v3996 = vadd.f32 %v3995, %v3891
        %v3997 = vadd.f32 %v3996, %v3923
        %v3998 = vrot.slane %v3997, 4
        %v3999 = vadd.f32 %v3997, %v3998
        %v4000 = vrot.slane %v3999, 2
        %v4001 = vadd.f32 %v3999, %v4000
        %v4002 = vrot.slane %v4001, 1
        %v4003 = vadd.f32 %v4001, %v4002
        %v4004 = vadd.f32 %v3700, %v3732
        %v4005 = vadd.f32 %v4004, %v3764
        %v4006 = vadd.f32 %v4005, %v3796
        %v4007 = vadd.f32 %v4006, %v3828
        %v4008 = vadd.f32 %v4007, %v3860
        %v4009 = vadd.f32 %v4008, %v3892
        %v4010 = vadd.f32 %v4009, %v3924
        %v4011 = vrot.slane %v4010, 4
        %v4012 = vadd.f32 %v4010, %v4011
        %v4013 = vrot.slane %v4012, 2
        %v4014 = vadd.f32 %v4012, %v4013
        %v4015 = vrot.slane %v4014, 1
        %v4016 = vadd.f32 %v4014, %v4015
        %v4017 = vadd.f32 %v3701, %v3733
        %v4018 = vadd.f32 %v4017, %v3765
        %v4019 = vadd.f32 %v4018, %v3797
        %v4020 = vadd.f32 %v4019, %v3829
        %v4021 = vadd.f32 %v4020, %v3861
        %v4022 = vadd.f32 %v4021, %v3893
        %v4023 = vadd.f32 %v4022, %v3925
        %v4024 = vrot.slane %v4023, 4
        %v4025 = vadd.f32 %v4023, %v4024
        %v4026 = vrot.slane %v4025, 2
        %v4027 = vadd.f32 %v4025, %v4026
        %v4028 = vrot.slane %v4027, 1
        %v4029 = vadd.f32 %v4027, %v4028
        %v4030 = vadd.f32 %v3702, %v3734
        %v4031 = vadd.f32 %v4030, %v3766
        %v4032 = vadd.f32 %v4031, %v3798
        %v4033 = vadd.f32 %v4032, %v3830
        %v4034 = vadd.f32 %v4033, %v3862
        %v4035 = vadd.f32 %v4034, %v3894
        %v4036 = vadd.f32 %v4035, %v3926
        %v4037 = vrot.slane %v4036, 4
        %v4038 = vadd.f32 %v4036, %v4037
        %v4039 = vrot.slane %v4038, 2
        %v4040 = vadd.f32 %v4038, %v4039
        %v4041 = vrot.slane %v4040, 1
        %v4042 = vadd.f32 %v4040, %v4041
        %v4043 = vadd.f32 %v3703, %v3735
        %v4044 = vadd.f32 %v4043, %v3767
        %v4045 = vadd.f32 %v4044, %v3799
        %v4046 = vadd.f32 %v4045, %v3831
        %v4047 = vadd.f32 %v4046, %v3863
        %v4048 = vadd.f32 %v4047, %v3895
        %v4049 = vadd.f32 %v4048, %v3927
        %v4050 = vrot.slane %v4049, 4
        %v4051 = vadd.f32 %v4049, %v4050
        %v4052 = vrot.slane %v4051, 2
        %v4053 = vadd.f32 %v4051, %v4052
        %v4054 = vrot.slane %v4053, 1
        %v4055 = vadd.f32 %v4053, %v4054
        %v4056 = vadd.f32 %v3704, %v3736
        %v4057 = vadd.f32 %v4056, %v3768
        %v4058 = vadd.f32 %v4057, %v3800
        %v4059 = vadd.f32 %v4058, %v3832
        %v4060 = vadd.f32 %v4059, %v3864
        %v4061 = vadd.f32 %v4060, %v3896
        %v4062 = vadd.f32 %v4061, %v3928
        %v4063 = vrot.slane %v4062, 4
        %v4064 = vadd.f32 %v4062, %v4063
        %v4065 = vrot.slane %v4064, 2
        %v4066 = vadd.f32 %v4064, %v4065
        %v4067 = vrot.slane %v4066, 1
        %v4068 = vadd.f32 %v4066, %v4067
        %v4069 = vadd.f32 %v3705, %v3737
        %v4070 = vadd.f32 %v4069, %v3769
        %v4071 = vadd.f32 %v4070, %v3801
        %v4072 = vadd.f32 %v4071, %v3833
        %v4073 = vadd.f32 %v4072, %v3865
        %v4074 = vadd.f32 %v4073, %v3897
        %v4075 = vadd.f32 %v4074, %v3929
        %v4076 = vrot.slane %v4075, 4
        %v4077 = vadd.f32 %v4075, %v4076
        %v4078 = vrot.slane %v4077, 2
        %v4079 = vadd.f32 %v4077, %v4078
        %v4080 = vrot.slane %v4079, 1
        %v4081 = vadd.f32 %v4079, %v4080
        %v4082 = vadd.f32 %v3706, %v3738
        %v4083 = vadd.f32 %v4082, %v3770
        %v4084 = vadd.f32 %v4083, %v3802
        %v4085 = vadd.f32 %v4084, %v3834
        %v4086 = vadd.f32 %v4085, %v3866
        %v4087 = vadd.f32 %v4086, %v3898
        %v4088 = vadd.f32 %v4087, %v3930
        %v4089 = vrot.slane %v4088, 4
        %v4090 = vadd.f32 %v4088, %v4089
        %v4091 = vrot.slane %v4090, 2
        %v4092 = vadd.f32 %v4090, %v4091
        %v4093 = vrot.slane %v4092, 1
        %v4094 = vadd.f32 %v4092, %v4093
        %v4095 = vadd.f32 %v3707, %v3739
        %v4096 = vadd.f32 %v4095, %v3771
        %v4097 = vadd.f32 %v4096, %v3803
        %v4098 = vadd.f32 %v4097, %v3835
        %v4099 = vadd.f32 %v4098, %v3867
        %v4100 = vadd.f32 %v4099, %v3899
        %v4101 = vadd.f32 %v4100, %v3931
        %v4102 = vrot.slane %v4101, 4
        %v4103 = vadd.f32 %v4101, %v4102
        %v4104 = vrot.slane %v4103, 2
        %v4105 = vadd.f32 %v4103, %v4104
        %v4106 = vrot.slane %v4105, 1
        %v4107 = vadd.f32 %v4105, %v4106
        %v4108 = vadd.f32 %v3708, %v3740
        %v4109 = vadd.f32 %v4108, %v3772
        %v4110 = vadd.f32 %v4109, %v3804
        %v4111 = vadd.f32 %v4110, %v3836
        %v4112 = vadd.f32 %v4111, %v3868
        %v4113 = vadd.f32 %v4112, %v3900
        %v4114 = vadd.f32 %v4113, %v3932
        %v4115 = vrot.slane %v4114, 4
        %v4116 = vadd.f32 %v4114, %v4115
        %v4117 = vrot.slane %v4116, 2
        %v4118 = vadd.f32 %v4116, %v4117
        %v4119 = vrot.slane %v4118, 1
        %v4120 = vadd.f32 %v4118, %v4119
        %v4121 = vadd.f32 %v3709, %v3741
        %v4122 = vadd.f32 %v4121, %v3773
        %v4123 = vadd.f32 %v4122, %v3805
        %v4124 = vadd.f32 %v4123, %v3837
        %v4125 = vadd.f32 %v4124, %v3869
        %v4126 = vadd.f32 %v4125, %v3901
        %v4127 = vadd.f32 %v4126, %v3933
        %v4128 = vrot.slane %v4127, 4
        %v4129 = vadd.f32 %v4127, %v4128
        %v4130 = vrot.slane %v4129, 2
        %v4131 = vadd.f32 %v4129, %v4130
        %v4132 = vrot.slane %v4131, 1
        %v4133 = vadd.f32 %v4131, %v4132
        %v4134 = vadd.f32 %v3710, %v3742
        %v4135 = vadd.f32 %v4134, %v3774
        %v4136 = vadd.f32 %v4135, %v3806
        %v4137 = vadd.f32 %v4136, %v3838
        %v4138 = vadd.f32 %v4137, %v3870
        %v4139 = vadd.f32 %v4138, %v3902
        %v4140 = vadd.f32 %v4139, %v3934
        %v4141 = vrot.slane %v4140, 4
        %v4142 = vadd.f32 %v4140, %v4141
        %v4143 = vrot.slane %v4142, 2
        %v4144 = vadd.f32 %v4142, %v4143
        %v4145 = vrot.slane %v4144, 1
        %v4146 = vadd.f32 %v4144, %v4145
        %v4147 = vadd.f32 %v3711, %v3743
        %v4148 = vadd.f32 %v4147, %v3775
        %v4149 = vadd.f32 %v4148, %v3807
        %v4150 = vadd.f32 %v4149, %v3839
        %v4151 = vadd.f32 %v4150, %v3871
        %v4152 = vadd.f32 %v4151, %v3903
        %v4153 = vadd.f32 %v4152, %v3935
        %v4154 = vrot.slane %v4153, 4
        %v4155 = vadd.f32 %v4153, %v4154
        %v4156 = vrot.slane %v4155, 2
        %v4157 = vadd.f32 %v4155, %v4156
        %v4158 = vrot.slane %v4157, 1
        %v4159 = vadd.f32 %v4157, %v4158
        %v4160 = vadd.f32 %v3712, %v3744
        %v4161 = vadd.f32 %v4160, %v3776
        %v4162 = vadd.f32 %v4161, %v3808
        %v4163 = vadd.f32 %v4162, %v3840
        %v4164 = vadd.f32 %v4163, %v3872
        %v4165 = vadd.f32 %v4164, %v3904
        %v4166 = vadd.f32 %v4165, %v3936
        %v4167 = vrot.slane %v4166, 4
        %v4168 = vadd.f32 %v4166, %v4167
        %v4169 = vrot.slane %v4168, 2
        %v4170 = vadd.f32 %v4168, %v4169
        %v4171 = vrot.slane %v4170, 1
        %v4172 = vadd.f32 %v4170, %v4171
        %v4173 = vadd.f32 %v3713, %v3745
        %v4174 = vadd.f32 %v4173, %v3777
        %v4175 = vadd.f32 %v4174, %v3809
        %v4176 = vadd.f32 %v4175, %v3841
        %v4177 = vadd.f32 %v4176, %v3873
        %v4178 = vadd.f32 %v4177, %v3905
        %v4179 = vadd.f32 %v4178, %v3937
        %v4180 = vrot.slane %v4179, 4
        %v4181 = vadd.f32 %v4179, %v4180
        %v4182 = vrot.slane %v4181, 2
        %v4183 = vadd.f32 %v4181, %v4182
        %v4184 = vrot.slane %v4183, 1
        %v4185 = vadd.f32 %v4183, %v4184
        %v4186 = vadd.f32 %v3714, %v3746
        %v4187 = vadd.f32 %v4186, %v3778
        %v4188 = vadd.f32 %v4187, %v3810
        %v4189 = vadd.f32 %v4188, %v3842
        %v4190 = vadd.f32 %v4189, %v3874
        %v4191 = vadd.f32 %v4190, %v3906
        %v4192 = vadd.f32 %v4191, %v3938
        %v4193 = vrot.slane %v4192, 4
        %v4194 = vadd.f32 %v4192, %v4193
        %v4195 = vrot.slane %v4194, 2
        %v4196 = vadd.f32 %v4194, %v4195
        %v4197 = vrot.slane %v4196, 1
        %v4198 = vadd.f32 %v4196, %v4197
        %v4199 = vadd.f32 %v3715, %v3747
        %v4200 = vadd.f32 %v4199, %v3779
        %v4201 = vadd.f32 %v4200, %v3811
        %v4202 = vadd.f32 %v4201, %v3843
        %v4203 = vadd.f32 %v4202, %v3875
        %v4204 = vadd.f32 %v4203, %v3907
        %v4205 = vadd.f32 %v4204, %v3939
        %v4206 = vrot.slane %v4205, 4
        %v4207 = vadd.f32 %v4205, %v4206
        %v4208 = vrot.slane %v4207, 2
        %v4209 = vadd.f32 %v4207, %v4208
        %v4210 = vrot.slane %v4209, 1
        %v4211 = vadd.f32 %v4209, %v4210
        %v4212 = vadd.f32 %v3716, %v3748
        %v4213 = vadd.f32 %v4212, %v3780
        %v4214 = vadd.f32 %v4213, %v3812
        %v4215 = vadd.f32 %v4214, %v3844
        %v4216 = vadd.f32 %v4215, %v3876
        %v4217 = vadd.f32 %v4216, %v3908
        %v4218 = vadd.f32 %v4217, %v3940
        %v4219 = vrot.slane %v4218, 4
        %v4220 = vadd.f32 %v4218, %v4219
        %v4221 = vrot.slane %v4220, 2
        %v4222 = vadd.f32 %v4220, %v4221
        %v4223 = vrot.slane %v4222, 1
        %v4224 = vadd.f32 %v4222, %v4223
        %v4225 = vadd.f32 %v3717, %v3749
        %v4226 = vadd.f32 %v4225, %v3781
        %v4227 = vadd.f32 %v4226, %v3813
        %v4228 = vadd.f32 %v4227, %v3845
        %v4229 = vadd.f32 %v4228, %v3877
        %v4230 = vadd.f32 %v4229, %v3909
        %v4231 = vadd.f32 %v4230, %v3941
        %v4232 = vrot.slane %v4231, 4
        %v4233 = vadd.f32 %v4231, %v4232
        %v4234 = vrot.slane %v4233, 2
        %v4235 = vadd.f32 %v4233, %v4234
        %v4236 = vrot.slane %v4235, 1
        %v4237 = vadd.f32 %v4235, %v4236
        %v4238 = vadd.f32 %v3718, %v3750
        %v4239 = vadd.f32 %v4238, %v3782
        %v4240 = vadd.f32 %v4239, %v3814
        %v4241 = vadd.f32 %v4240, %v3846
        %v4242 = vadd.f32 %v4241, %v3878
        %v4243 = vadd.f32 %v4242, %v3910
        %v4244 = vadd.f32 %v4243, %v3942
        %v4245 = vrot.slane %v4244, 4
        %v4246 = vadd.f32 %v4244, %v4245
        %v4247 = vrot.slane %v4246, 2
        %v4248 = vadd.f32 %v4246, %v4247
        %v4249 = vrot.slane %v4248, 1
        %v4250 = vadd.f32 %v4248, %v4249
        %v4251 = vadd.f32 %v3719, %v3751
        %v4252 = vadd.f32 %v4251, %v3783
        %v4253 = vadd.f32 %v4252, %v3815
        %v4254 = vadd.f32 %v4253, %v3847
        %v4255 = vadd.f32 %v4254, %v3879
        %v4256 = vadd.f32 %v4255, %v3911
        %v4257 = vadd.f32 %v4256, %v3943
        %v4258 = vrot.slane %v4257, 4
        %v4259 = vadd.f32 %v4257, %v4258
        %v4260 = vrot.slane %v4259, 2
        %v4261 = vadd.f32 %v4259, %v4260
        %v4262 = vrot.slane %v4261, 1
        %v4263 = vadd.f32 %v4261, %v4262
        %v4264 = vadd.f32 %v3720, %v3752
        %v4265 = vadd.f32 %v4264, %v3784
        %v4266 = vadd.f32 %v4265, %v3816
        %v4267 = vadd.f32 %v4266, %v3848
        %v4268 = vadd.f32 %v4267, %v3880
        %v4269 = vadd.f32 %v4268, %v3912
        %v4270 = vadd.f32 %v4269, %v3944
        %v4271 = vrot.slane %v4270, 4
        %v4272 = vadd.f32 %v4270, %v4271
        %v4273 = vrot.slane %v4272, 2
        %v4274 = vadd.f32 %v4272, %v4273
        %v4275 = vrot.slane %v4274, 1
        %v4276 = vadd.f32 %v4274, %v4275
        %v4277 = vadd.f32 %v3721, %v3753
        %v4278 = vadd.f32 %v4277, %v3785
        %v4279 = vadd.f32 %v4278, %v3817
        %v4280 = vadd.f32 %v4279, %v3849
        %v4281 = vadd.f32 %v4280, %v3881
        %v4282 = vadd.f32 %v4281, %v3913
        %v4283 = vadd.f32 %v4282, %v3945
        %v4284 = vrot.slane %v4283, 4
        %v4285 = vadd.f32 %v4283, %v4284
        %v4286 = vrot.slane %v4285, 2
        %v4287 = vadd.f32 %v4285, %v4286
        %v4288 = vrot.slane %v4287, 1
        %v4289 = vadd.f32 %v4287, %v4288
        %v4290 = vadd.f32 %v3722, %v3754
        %v4291 = vadd.f32 %v4290, %v3786
        %v4292 = vadd.f32 %v4291, %v3818
        %v4293 = vadd.f32 %v4292, %v3850
        %v4294 = vadd.f32 %v4293, %v3882
        %v4295 = vadd.f32 %v4294, %v3914
        %v4296 = vadd.f32 %v4295, %v3946
        %v4297 = vrot.slane %v4296, 4
        %v4298 = vadd.f32 %v4296, %v4297
        %v4299 = vrot.slane %v4298, 2
        %v4300 = vadd.f32 %v4298, %v4299
        %v4301 = vrot.slane %v4300, 1
        %v4302 = vadd.f32 %v4300, %v4301
        %v4303 = vadd.f32 %v3723, %v3755
        %v4304 = vadd.f32 %v4303, %v3787
        %v4305 = vadd.f32 %v4304, %v3819
        %v4306 = vadd.f32 %v4305, %v3851
        %v4307 = vadd.f32 %v4306, %v3883
        %v4308 = vadd.f32 %v4307, %v3915
        %v4309 = vadd.f32 %v4308, %v3947
        %v4310 = vrot.slane %v4309, 4
        %v4311 = vadd.f32 %v4309, %v4310
        %v4312 = vrot.slane %v4311, 2
        %v4313 = vadd.f32 %v4311, %v4312
        %v4314 = vrot.slane %v4313, 1
        %v4315 = vadd.f32 %v4313, %v4314
        %v4316 = vadd.f32 %v3724, %v3756
        %v4317 = vadd.f32 %v4316, %v3788
        %v4318 = vadd.f32 %v4317, %v3820
        %v4319 = vadd.f32 %v4318, %v3852
        %v4320 = vadd.f32 %v4319, %v3884
        %v4321 = vadd.f32 %v4320, %v3916
        %v4322 = vadd.f32 %v4321, %v3948
        %v4323 = vrot.slane %v4322, 4
        %v4324 = vadd.f32 %v4322, %v4323
        %v4325 = vrot.slane %v4324, 2
        %v4326 = vadd.f32 %v4324, %v4325
        %v4327 = vrot.slane %v4326, 1
        %v4328 = vadd.f32 %v4326, %v4327
        %v4329 = vadd.f32 %v3725, %v3757
        %v4330 = vadd.f32 %v4329, %v3789
        %v4331 = vadd.f32 %v4330, %v3821
        %v4332 = vadd.f32 %v4331, %v3853
        %v4333 = vadd.f32 %v4332, %v3885
        %v4334 = vadd.f32 %v4333, %v3917
        %v4335 = vadd.f32 %v4334, %v3949
        %v4336 = vrot.slane %v4335, 4
        %v4337 = vadd.f32 %v4335, %v4336
        %v4338 = vrot.slane %v4337, 2
        %v4339 = vadd.f32 %v4337, %v4338
        %v4340 = vrot.slane %v4339, 1
        %v4341 = vadd.f32 %v4339, %v4340
        %v4342 = vadd.f32 %v3726, %v3758
        %v4343 = vadd.f32 %v4342, %v3790
        %v4344 = vadd.f32 %v4343, %v3822
        %v4345 = vadd.f32 %v4344, %v3854
        %v4346 = vadd.f32 %v4345, %v3886
        %v4347 = vadd.f32 %v4346, %v3918
        %v4348 = vadd.f32 %v4347, %v3950
        %v4349 = vrot.slane %v4348, 4
        %v4350 = vadd.f32 %v4348, %v4349
        %v4351 = vrot.slane %v4350, 2
        %v4352 = vadd.f32 %v4350, %v4351
        %v4353 = vrot.slane %v4352, 1
        %v4354 = vadd.f32 %v4352, %v4353
        %v4355 = vadd.f32 %v3727, %v3759
        %v4356 = vadd.f32 %v4355, %v3791
        %v4357 = vadd.f32 %v4356, %v3823
        %v4358 = vadd.f32 %v4357, %v3855
        %v4359 = vadd.f32 %v4358, %v3887
        %v4360 = vadd.f32 %v4359, %v3919
        %v4361 = vadd.f32 %v4360, %v3951
        %v4362 = vrot.slane %v4361, 4
        %v4363 = vadd.f32 %v4361, %v4362
        %v4364 = vrot.slane %v4363, 2
        %v4365 = vadd.f32 %v4363, %v4364
        %v4366 = vrot.slane %v4365, 1
        %v4367 = vadd.f32 %v4365, %v4366
        %4368 = vst [vmem:[#allocation3] sm:$0x1] %v3964
        %4369 = vst [vmem:[#allocation3 + $0x1] sm:$0x1] %v3977
        %4370 = vst [vmem:[#allocation3 + $0x2] sm:$0x1] %v3990
        %4371 = vst [vmem:[#allocation3 + $0x3] sm:$0x1] %v4003
        %4372 = vst [vmem:[#allocation3 + $0x4] sm:$0x1] %v4016
        %4373 = vst [vmem:[#allocation3 + $0x5] sm:$0x1] %v4029
        %4374 = vst [vmem:[#allocation3 + $0x6] sm:$0x1] %v4042
        %4375 = vst [vmem:[#allocation3 + $0x7] sm:$0x1] %v4055
        %4376 = vst [vmem:[#allocation3 + $0x8] sm:$0x1] %v4068
        %4377 = vst [vmem:[#allocation3 + $0x9] sm:$0x1] %v4081
        %4378 = vst [vmem:[#allocation3 + $0xa] sm:$0x1] %v4094
        %4379 = vst [vmem:[#allocation3 + $0xb] sm:$0x1] %v4107
        %4380 = vst [vmem:[#allocation3 + $0xc] sm:$0x1] %v4120
        %4381 = vst [vmem:[#allocation3 + $0xd] sm:$0x1] %v4133
        %4382 = vst [vmem:[#allocation3 + $0xe] sm:$0x1] %v4146
        %4383 = vst [vmem:[#allocation3 + $0xf] sm:$0x1] %v4159
        %4384 = vst [vmem:[#allocation3 + $0x10] sm:$0x1] %v4172
        %4385 = vst [vmem:[#allocation3 + $0x11] sm:$0x1] %v4185
        %4386 = vst [vmem:[#allocation3 + $0x12] sm:$0x1] %v4198
        %4387 = vst [vmem:[#allocation3 + $0x13] sm:$0x1] %v4211
        %4388 = vst [vmem:[#allocation3 + $0x14] sm:$0x1] %v4224
        %4389 = vst [vmem:[#allocation3 + $0x15] sm:$0x1] %v4237
        %4390 = vst [vmem:[#allocation3 + $0x16] sm:$0x1] %v4250
        %4391 = vst [vmem:[#allocation3 + $0x17] sm:$0x1] %v4263
        %4392 = vst [vmem:[#allocation3 + $0x18] sm:$0x1] %v4276
        %4393 = vst [vmem:[#allocation3 + $0x19] sm:$0x1] %v4289
        %4394 = vst [vmem:[#allocation3 + $0x1a] sm:$0x1] %v4302
        %4395 = vst [vmem:[#allocation3 + $0x1b] sm:$0x1] %v4315
        %4396 = vst [vmem:[#allocation3 + $0x1c] sm:$0x1] %v4328
        %4397 = vst [vmem:[#allocation3 + $0x1d] sm:$0x1] %v4341
        %4398 = vst [vmem:[#allocation3 + $0x1e] sm:$0x1] %v4354
        %4399 = vst [vmem:[#allocation3 + $0x1f] sm:$0x1] %v4367
        %v4400 = vld [vmem:[#allocation3] sm:$0xff]
        %v4401 = vld [vmem:[#allocation3 + $0x8] sm:$0xff]
        %v4402 = vld [vmem:[#allocation3 + $0x10] sm:$0xff]
        %v4403 = vld [vmem:[#allocation3 + $0x18] sm:$0xff]
        %v4404 = vpack.c.bf16 %v4401, %v4400
        %v4405 = vpack.c.bf16 %v4403, %v4402
        %v4406 = vld [vmem:[%s3] sm:$0x1]
        %v4407 = vperm.slane %v4406, 0
        %v4424 = vunpack.c.l.b16 %v510
        %v4425 = vunpack.c.l.b16 %v511
        %v4426 = vunpack.c.l.b16 %v512
        %v4427 = vunpack.c.l.b16 %v513
        %v4428 = vunpack.c.l.b16 %v514
        %v4429 = vunpack.c.l.b16 %v515
        %v4430 = vunpack.c.l.b16 %v516
        %v4431 = vunpack.c.l.b16 %v517
        %v4432 = vunpack.c.l.b16 %v518
        %v4433 = vunpack.c.l.b16 %v519
        %v4434 = vunpack.c.l.b16 %v520
        %v4435 = vunpack.c.l.b16 %v521
        %v4436 = vunpack.c.l.b16 %v522
        %v4437 = vunpack.c.l.b16 %v523
        %v4438 = vunpack.c.l.b16 %v524
        %v4439 = vunpack.c.l.b16 %v525
        %v4440 = vpack.c.b16 %v4425, %v4424
        %v4441 = vpack.c.b16 %v4427, %v4426
        %v4442 = vpack.c.b16 %v4429, %v4428
        %v4443 = vpack.c.b16 %v4431, %v4430
        %v4444 = vpack.c.b16 %v4433, %v4432
        %v4445 = vpack.c.b16 %v4435, %v4434
        %v4446 = vpack.c.b16 %v4437, %v4436
        %v4447 = vpack.c.b16 %v4439, %v4438
        %4456 = vmatpush.bf16.msra.mxu0 %v4447
        %4457 = vmatpush.bf16.msra.mxu0 %v4446
        %4458 = vmatpush.bf16.msra.mxu0 %v4445
        %4459 = vmatpush.bf16.msra.mxu0 %v4444
        %4460 = vmatpush.bf16.msra.mxu0 %v4443
        %4461 = vmatpush.bf16.msra.mxu0 %v4442
        %4462 = vmatpush.bf16.msra.mxu0 %v4441
        %4463 = vmatpush.bf16.msra.mxu0 %v4440
        %4464 = vmatmul.bf16.gmra.mxu0 %v4404
        %v4465 = vpop.f32.mrf.mxu0
        %v4466 = vadd.f32 %v4407, %v4465
        %v4467 = vpop.f32.mrf.mxu0
        %v4468 = vadd.f32 %v4407, %v4467
        %4469 = vmatmul.bf16.gmra.mxu0 %v4405
        %v4470 = vpop.f32.mrf.mxu0
        %v4471 = vadd.f32 %v4407, %v4470
        %v4472 = vpop.f32.mrf.mxu0
        %v4473 = vadd.f32 %v4407, %v4472
        %4474 = vdwg.mxu0
        %v4475 = vmax.f32 %v4466, 0.0
        %v4476 = vmax.f32 %v4468, 0.0
        %v4477 = vmax.f32 %v4471, 0.0
        %v4478 = vmax.f32 %v4473, 0.0
        %v4479 = vpack.c.bf16 %v4476, %v4475
        %v4480 = vpack.c.bf16 %v4478, %v4477
        %v4497 = vunpack.c.l.b16 %v527
        %v4498 = vunpack.c.l.b16 %v528
        %v4499 = vunpack.c.l.b16 %v529
        %v4500 = vunpack.c.l.b16 %v530
        %v4501 = vunpack.c.l.b16 %v531
        %v4502 = vunpack.c.l.b16 %v532
        %v4503 = vunpack.c.l.b16 %v533
        %v4504 = vunpack.c.l.b16 %v534
        %v4505 = vunpack.c.l.b16 %v535
        %v4506 = vunpack.c.l.b16 %v536
        %v4507 = vunpack.c.l.b16 %v537
        %v4508 = vunpack.c.l.b16 %v538
        %v4509 = vunpack.c.l.b16 %v539
        %v4510 = vunpack.c.l.b16 %v540
        %v4511 = vunpack.c.l.b16 %v541
        %v4512 = vunpack.c.l.b16 %v542
        %v4513 = vpack.c.b16 %v4498, %v4497
        %v4514 = vpack.c.b16 %v4500, %v4499
        %v4515 = vpack.c.b16 %v4502, %v4501
        %v4516 = vpack.c.b16 %v4504, %v4503
        %v4517 = vpack.c.b16 %v4506, %v4505
        %v4518 = vpack.c.b16 %v4508, %v4507
        %v4519 = vpack.c.b16 %v4510, %v4509
        %v4520 = vpack.c.b16 %v4512, %v4511
        %4529 = vmatpush.bf16.msra.mxu0 %v4520
        %4530 = vmatpush.bf16.msra.mxu0 %v4519
        %4531 = vmatpush.bf16.msra.mxu0 %v4518
        %4532 = vmatpush.bf16.msra.mxu0 %v4517
        %4533 = vmatpush.bf16.msra.mxu0 %v4516
        %4534 = vmatpush.bf16.msra.mxu0 %v4515
        %4535 = vmatpush.bf16.msra.mxu0 %v4514
        %4536 = vmatpush.bf16.msra.mxu0 %v4513
        %4537 = vmatmul.bf16.gmra.mxu0 %v4479
        %v4538 = vpop.f32.mrf.mxu0
        %v4539 = vadd.f32 0.0, %v4538
        %v4540 = vpop.f32.mrf.mxu0
        %v4541 = vadd.f32 0.0, %v4540
        %4542 = vmatmul.bf16.gmra.mxu0 %v4480
        %v4543 = vpop.f32.mrf.mxu0
        %v4544 = vadd.f32 0.0, %v4543
        %v4545 = vpop.f32.mrf.mxu0
        %v4546 = vadd.f32 0.0, %v4545
        %4547 = vdwg.mxu0
        %v4548 = vadd.f32 %v4539, %v4541
        %v4549 = vadd.f32 %v4548, %v4544
        %v4550 = vadd.f32 %v4549, %v4546
        %v4551 = vrot.slane %v4550, 4
        %v4552 = vadd.f32 %v4550, %v4551
        %v4553 = vrot.slane %v4552, 2
        %v4554 = vadd.f32 %v4552, %v4553
        %v4555 = vrot.slane %v4554, 1
        %v4556 = vadd.f32 %v4554, %v4555
        %v4557 = vld [vmem:[#allocation2] sm:$0x1]
        %4559 = vrot.lane.b32.xlu0 %v4556, 64
        %v4560 = vpop.permute.xlu0 %4559
        %v4562 = vadd.f32 %v4556, %v4560
        %v4563 = vadd.f32 %v4557, %v4562
        %vm4564 = vcmask 516096
        %4565 = vst.msk [vmem:[#allocation2] sm:$0x1] %vm4564, %v4563
        // Predicated region
        $region64: #{gwnet_forward.1} parent=54 // pred_check
          %p4566 = pneg %p487
        $region65: #{gwnet_forward.1} parent=54 // pred_check_branch
          %4568 = sbr.rel (%p4566) target = $region67
        $region66: #{gwnet_forward.1} parent=54 // pred_region
          %v4569 = vld [vmem:[#allocation2] sm:$0x1]
          %v4570 = vmul.f32 %v4569, 0.015625
          %v4571 = vld [vmem:[%s3 + $0x1] sm:$0x1]
          %v4572 = vadd.f32 %v4570, %v4571
          %4573 = vst.msk [vmem:[%s483] sm:$0x1] %vm4564, %v4572
        $region67: #{gwnet_forward.1} parent=54 // pred_fallthru
          _
        %s4574 = sand.u32 %s129, 1
        %s4575 = scalar_lea.sflag [#allocation6], %s4574
        %s4576 = sand.u32 %s129, 1
        %s4577 = scalar_lea.vmem [#allocation5], %s4576
        // Predicated region
        $region68: #{gwnet_forward.1} parent=54 // pred_check
          %p4578 = pneg %p139
        $region69: #{gwnet_forward.1} parent=54 // pred_check_branch
          %4580 = sbr.rel (%p4578) target = $region71
        $region70: #{gwnet_forward.1} parent=54 // pred_region
          %4582 = vsyncadd %s4575, 0
          %s4583 = scalar_lea.hbm %s4, %s22
          %s4585 = sshll.u32 %s4577, 4
          %s4586 = int_to_ptr.vmem [resolvable:$true] %s4585
          %s4587 = sshll.u32 %s4583, 4
          %s4588 = int_to_ptr.hbm [resolvable:$true] %s4587
          %4590 = dma.vmem_to_hbm [thread:$0]  %s4586, 16, %s4588, %s4575
        $region71: #{gwnet_forward.1} parent=54 // pred_fallthru
          _
      $region55: #{gwnet_forward.1} parent=5 // pred_fallthru
        _
      %p4591 = scmp.le.s32.totalorder 2, %s13
      // Predicated region
      $region72: #{gwnet_forward.1} parent=5 // pred_check
        %p4592 = pneg %p4591
      $region73: #{gwnet_forward.1} parent=5 // pred_check_branch
        %4594 = sbr.rel (%p4592) target = $region75
      $region74: #{gwnet_forward.1} parent=5 // pred_region
        %s4595 = ssub.s32 %s13, 2
        // Predicated region
        $region76: #{gwnet_forward.1} parent=74 // pred_check
          %p4596 = pneg %p145
        $region77: #{gwnet_forward.1} parent=74 // pred_check_branch
          %4598 = sbr.rel (%p4596) target = $region79
        $region78: #{gwnet_forward.1} parent=74 // pred_region
          %s4599 = sand.u32 %s130, 1
          %s4600 = scalar_lea.sflag [#allocation6], %s4599
          %s4601 = sand.u32 %s130, 1
          %s4602 = scalar_lea.vmem [#allocation5], %s4601
          %4604 = dma.done %s4600, 16
        $region79: #{gwnet_forward.1} parent=74 // pred_fallthru
          _
      $region75: #{gwnet_forward.1} parent=5 // pred_fallthru
        _
    $region6: #{gwnet_forward.1} parent=1 // loop_footer
      %s17 = sadd.s32 1, %s13
    $region7: #{gwnet_forward.1} parent=1 // loop_footer_branch
      %12 = sbr.rel target = $region3
    $region8: #{gwnet_forward.1} parent=1 // loop_exit
      _
    %4605 = vsyncpa [#allocation6], 1
    %s4606 = scalar_lea.sflag [#allocation6], 1
    %4607 = vsyncpa %s4606, 1

</llo_original>
